<compile_context>
chip_gen: v5e
topology: v5e:2x2
jax: 0.10.0
libtpu: 0.0.40
codegen_flags: <defaults>
</compile_context>

<pallas_src>
import math
from functools import partial

import jax
import jax.numpy as jnp
from jax.experimental import pallas as pl

# ----------------------------- toy config ------------------------------------
F = 2                      # flows (outer batch)
NB = 8                     # num_bursts per flow
MBL = 8                    # max_burst_length
H = 32                     # hidden_size
NUM_HEADS = 2
HEAD_DIM = H // NUM_HEADS
INTER = 64                 # intermediate_size
NUM_LAYERS = 2             # num_hidden_layers
LN_EPS = 1e-12

W_ROWS = 2 * H + INTER     # 128 packed weight rows
W_COLS = 3 * H             # 96  packed weight cols
V_ROWS = 8                 # packed bias / LN-vector rows (sublane aligned)

_INV_SQRT2 = 0.7071067811865476
# Abramowitz & Stegun 7.1.26 erf coefficients (max abs error 1.5e-7)
_ERF_P = 0.3275911
_ERF_A1 = 0.254829592
_ERF_A2 = -0.284496736
_ERF_A3 = 1.421413741
_ERF_A4 = -1.453152027
_ERF_A5 = 1.061405429


# ----------------------------- kernel helpers --------------------------------
def _layer_norm(x, gamma, beta):
    mu = jnp.mean(x, axis=-1, keepdims=True)
    var = jnp.mean((x - mu) ** 2, axis=-1, keepdims=True)
    return (x - mu) * jax.lax.rsqrt(var + LN_EPS) * gamma + beta


def _erf(x):
    ax = jnp.abs(x)
    t = 1.0 / (1.0 + _ERF_P * ax)
    poly = ((((_ERF_A5 * t + _ERF_A4) * t + _ERF_A3) * t + _ERF_A2) * t + _ERF_A1) * t
    y = 1.0 - poly * jnp.exp(-ax * ax)
    return jnp.where(x >= 0.0, y, -y)


def _gelu(x):
    # exact (erf-based) GELU, matching HF Roberta's default hidden_act="gelu"
    return 0.5 * x * (1.0 + _erf(x * _INV_SQRT2))


# ----------------------------- Pallas kernel ----------------------------------
def _transformer_layer_kernel(x_ref, mask_ref, w_ref, v_ref, out_ref, *, n, s):
    """One Roberta TransformerLayer over n independent sequences of length s."""
    x = x_ref[...]                 # (n*s, H)
    m = mask_ref[...]              # (n, s) additive mask
    w = w_ref[...]                 # (W_ROWS, W_COLS) packed weights
    vec = v_ref[...]               # (V_ROWS, W_COLS) packed bias / LN vectors

    # --- unpack parameter slabs (static slices) ---
    w_qkv = w[0:H, :]                              # (H, 3H); Q block pre-scaled
    w_ao = w[H:2 * H, 0:H]                         # (H, H)
    w_i = w[H:2 * H, H:H + INTER]                  # (H, INTER)
    w_o = w[2 * H:2 * H + INTER, 0:H]              # (INTER, H)

    b_qkv = vec[0:1, :]                            # (1, 3H); Q bias pre-scaled
    b_ao = vec[1:2, 0:H]
    b_i = vec[1:2, H:H + INTER]
    g1 = vec[2:3, 0:H]
    be1 = vec[3:4, 0:H]
    b_o = vec[4:5, 0:H]
    g2 = vec[5:6, 0:H]
    be2 = vec[6:7, 0:H]

    # --- fused Q/K/V projection for the whole slab in one MXU pass ---
    qkv = jnp.dot(x, w_qkv, preferred_element_type=jnp.float32) + b_qkv   # (n*s, 3H)

    # --- self attention: static unrolled loop over (sequence, head); fold each
    #     head's context straight into the output projection (no lane concat) ---
    attn_rows = []
    for b in range(n):
        rows = slice(b * s, (b + 1) * s)
        m_b = m[b:b + 1, :]                        # (1, s), broadcast over queries
        acc = jnp.zeros((s, H), jnp.float32)
        for h in range(NUM_HEADS):
            lo, hi = h * HEAD_DIM, (h + 1) * HEAD_DIM
            q_bh = qkv[rows, lo:hi]
            k_bh = qkv[rows, H + lo:H + hi]
            v_bh = qkv[rows, 2 * H + lo:2 * H + hi]
            # q @ k^T without materializing a transpose (contract last dims)
            sc = jax.lax.dot_general(
                q_bh, k_bh, (((1,), (1,)), ((), ())),
                preferred_element_type=jnp.float32) + m_b
            sc = sc - jnp.max(sc, axis=-1, keepdims=True)
            p = jnp.exp(sc)
            p = p * pl.reciprocal(jnp.sum(p, axis=-1, keepdims=True), approx=True)
            ctx_h = jnp.dot(p, v_bh, preferred_element_type=jnp.float32)
            acc = acc + jnp.dot(ctx_h, w_ao[lo:hi, :],
                                preferred_element_type=jnp.float32)
        attn_rows.append(acc)
    attn = jnp.concatenate(attn_rows, axis=0) + b_ao      # (n*s, H), sublane concat

    # --- attention output LN (dropout = identity, eval mode) ---
    attn_ln = _layer_norm(attn + x, g1, be1)

    # --- intermediate dense + GELU, output dense + LN ---
    inter = _gelu(jnp.dot(attn_ln, w_i, preferred_element_type=jnp.float32) + b_i)
    o = jnp.dot(inter, w_o, preferred_element_type=jnp.float32) + b_o
    out_ref[...] = _layer_norm(o + attn_ln, g2, be2).astype(out_ref.dtype)


# ----------------------------- parameter packing ------------------------------
def pack_params(p):
    """Pack one TransformerLayer's 16 tensors into two slabs; fold 1/sqrt(hd) into Q."""
    scale = 1.0 / math.sqrt(HEAD_DIM)
    w_qkv = jnp.concatenate([p["wq"] * scale, p["wk"], p["wv"]], axis=1)   # (H, 3H)
    b_qkv = jnp.concatenate([p["bq"] * scale, p["bk"], p["bv"]], axis=1)   # (1, 3H)

    W = jnp.zeros((W_ROWS, W_COLS), jnp.float32)
    W = W.at[0:H, :].set(w_qkv)
    W = W.at[H:2 * H, 0:H].set(p["wao"])
    W = W.at[H:2 * H, H:H + INTER].set(p["wi"])
    W = W.at[2 * H:2 * H + INTER, 0:H].set(p["wo"])

    V = jnp.zeros((V_ROWS, W_COLS), jnp.float32)
    V = V.at[0:1, :].set(b_qkv)
    V = V.at[1:2, 0:H].set(p["bao"])
    V = V.at[1:2, H:H + INTER].set(p["bi"])
    V = V.at[2:3, 0:H].set(p["g1"])
    V = V.at[3:4, 0:H].set(p["be1"])
    V = V.at[4:5, 0:H].set(p["bo"])
    V = V.at[5:6, 0:H].set(p["g2"])
    V = V.at[6:7, 0:H].set(p["be2"])
    return W, V


# ----------------------------- Pallas wrappers --------------------------------
_TL_CALLS = {}


def _get_tl_call(n, s):
    key = (n, s)
    if key not in _TL_CALLS:
        _TL_CALLS[key] = pl.pallas_call(
            partial(_transformer_layer_kernel, n=n, s=s),
            out_shape=jax.ShapeDtypeStruct((n * s, H), jnp.float32),
        )
    return _TL_CALLS[key]


def transformer_layer_pallas(x3, mask2, W, V):
    """x3: (n, s, H); mask2: (n, s) additive mask; W/V: packed parameter slabs."""
    n, s, _ = x3.shape
    out_flat = _get_tl_call(n, s)(x3.reshape(n * s, H), mask2, W, V)
    return out_flat.reshape(n, s, H)


def netfound_layer_pallas(hidden, mask_flat, burst_packed, flow_packed):
    """One NetFoundLayer: burst encoder -> global-token flow encoder -> scatter."""
    f = hidden.shape[0]
    # transform_tokens2bursts / transform_masks2bursts
    burst_x = hidden.reshape(f * NB, MBL, H)
    burst_mask = mask_flat.reshape(f * NB, MBL)
    burst_out = transformer_layer_pallas(burst_x, burst_mask, *burst_packed)
    # transform_bursts2tokens
    outputs = burst_out.reshape(f, NB * MBL, H)
    # global (first) token of every burst + its mask column
    global_tokens = outputs[:, ::MBL]          # (f, NB, H)
    global_mask = mask_flat[:, ::MBL]          # (f, NB)
    # TODO(synk): burst-position nn.Embedding add at the global slots is
    # overwritten by the flow-encoder output in the reference code -> omitted.
    flow_out = transformer_layer_pallas(global_tokens, global_mask, *flow_packed)
    return outputs.at[:, ::MBL].set(flow_out)


def netfound_encoder_pallas(hidden, mask_flat, packed_layers):
    for burst_packed, flow_packed in packed_layers:
        hidden = netfound_layer_pallas(hidden, mask_flat, burst_packed, flow_packed)
    return hidden


# ------------------------- pure-JAX reference ---------------------------------
def _ln_ref(v, g, b):
    mu = v.mean(-1, keepdims=True)
    var = ((v - mu) ** 2).mean(-1, keepdims=True)
    return (v - mu) / jnp.sqrt(var + LN_EPS) * g + b


def transformer_layer_ref(x, mask_add, p):
    n, s, _ = x.shape
    hp = "highest"
    q = jnp.einsum("nsh,hd->nsd", x, p["wq"], precision=hp) + p["bq"]
    k = jnp.einsum("nsh,hd->nsd", x, p["wk"], precision=hp) + p["bk"]
    v = jnp.einsum("nsh,hd->nsd", x, p["wv"], precision=hp) + p["bv"]

    def split(t):
        return t.reshape(n, s, NUM_HEADS, HEAD_DIM).transpose(0, 2, 1, 3)

    qh, kh, vh = split(q), split(k), split(v)
    scores = jnp.einsum("nhqd,nhkd->nhqk", qh, kh, precision=hp) / math.sqrt(HEAD_DIM)
    scores = scores + mask_add[:, None, None, :]
    probs = jax.nn.softmax(scores, axis=-1)
    ctx = jnp.einsum("nhqk,nhkd->nhqd", probs, vh, precision=hp)
    ctx = ctx.transpose(0, 2, 1, 3).reshape(n, s, H)
    attn = jnp.einsum("nsh,hd->nsd", ctx, p["wao"], precision=hp) + p["bao"]
    attn_ln = _ln_ref(attn + x, p["g1"], p["be1"])
    inter = jax.nn.gelu(
        jnp.einsum("nsh,hd->nsd", attn_ln, p["wi"], precision=hp) + p["bi"],
        approximate=False)
    out = jnp.einsum("nsh,hd->nsd", inter, p["wo"], precision=hp) + p["bo"]
    return _ln_ref(out + attn_ln, p["g2"], p["be2"])


def netfound_layer_ref(hidden, mask_flat, burst_p, flow_p):
    f = hidden.shape[0]
    burst_out = transformer_layer_ref(
        hidden.reshape(f * NB, MBL, H), mask_flat.reshape(f * NB, MBL), burst_p)
    outputs = burst_out.reshape(f, NB * MBL, H)
    flow_out = transformer_layer_ref(outputs[:, ::MBL], mask_flat[:, ::MBL], flow_p)
    return outputs.at[:, ::MBL].set(flow_out)


def netfound_encoder_ref(hidden, mask_flat, layers_raw):
    for bp, fp in layers_raw:
        hidden = netfound_layer_ref(hidden, mask_flat, bp, fp)
    return hidden


# ----------------------------- main -------------------------------------------
def make_tl_params(key):
    ks = jax.random.split(key, 16)

    def w(k, shape, scale=0.02):
        return (scale * jax.random.normal(k, shape)).astype(jnp.float32)

    return {
        "wq": w(ks[0], (H, H)),   "bq": w(ks[1], (1, H)),
        "wk": w(ks[2], (H, H)),   "bk": w(ks[3], (1, H)),
        "wv": w(ks[4], (H, H)),   "bv": w(ks[5], (1, H)),
        "wao": w(ks[6], (H, H)),  "bao": w(ks[7], (1, H)),
        "g1": 1.0 + w(ks[8], (1, H), 0.05),  "be1": w(ks[9], (1, H), 0.05),
        "wi": w(ks[10], (H, INTER)), "bi": w(ks[11], (1, INTER)),
        "wo": w(ks[12], (INTER, H)), "bo": w(ks[13], (1, H)),
        "g2": 1.0 + w(ks[14], (1, H), 0.05), "be2": w(ks[15], (1, H), 0.05),
    }


if __name__ == "__main__":
    key = jax.random.PRNGKey(0)
    k_params, k_x = jax.random.split(key)
    layer_keys = jax.random.split(k_params, NUM_LAYERS * 2)

    layers_raw = []
    for li in range(NUM_LAYERS):
        burst_p = make_tl_params(layer_keys[2 * li])
        flow_p = make_tl_params(layer_keys[2 * li + 1])
        layers_raw.append((burst_p, flow_p))
    packed_layers = [(pack_params(bp), pack_params(fp)) for bp, fp in layers_raw]

    # hidden states: (flows, num_bursts * max_burst_length, hidden)
    x = jax.random.normal(k_x, (F, NB * MBL, H), dtype=jnp.float32)
    # additive extended attention mask (0 = keep, -10000 = masked), flattened
    mask = jnp.zeros((F, NB * MBL), jnp.float32)
    mask = mask.at[0, -3:].set(-10000.0)          # flow 0: last 3 tokens padded
    mask = mask.at[1, MBL:2 * MBL].set(-10000.0)  # flow 1: entire 2nd burst padded

    out = netfound_encoder_pallas(x, mask, packed_layers)
    out = jax.block_until_ready(out)

    ref = netfound_encoder_ref(x, mask, layers_raw)
    assert out.shape == (F, NB * MBL, H)
    max_err = float(jnp.max(jnp.abs(out - ref)))
    assert jnp.allclose(out, ref, atol=2e-3, rtol=2e-3), max_err
    print("KERNEL_OK")
</pallas_src>

<mosaic_0001>
module attributes {stable_mosaic.version = 11 : i64} {
  func.func @_transformer_layer_kernel(%arg0: memref<128x32xf32, #tpu.memory_space<vmem>>, %arg1: memref<16x8xf32, #tpu.memory_space<vmem>>, %arg2: memref<128x96xf32, #tpu.memory_space<vmem>>, %arg3: memref<8x96xf32, #tpu.memory_space<vmem>>, %arg4: memref<128x32xf32, #tpu.memory_space<vmem>>) attributes {dimension_semantics = [], scalar_prefetch = 0 : i64, scratch_operands = 0 : i64, tpu.core_type = #tpu.core_type<tc>} {
    %c0 = arith.constant 0 : index
    %c0_0 = arith.constant 0 : index
    %0 = vector.load %arg0[%c0, %c0_0] : memref<128x32xf32, #tpu.memory_space<vmem>>, vector<128x32xf32>
    %c0_1 = arith.constant 0 : index
    %c0_2 = arith.constant 0 : index
    %1 = vector.load %arg1[%c0_1, %c0_2] : memref<16x8xf32, #tpu.memory_space<vmem>>, vector<16x8xf32>
    %c0_3 = arith.constant 0 : index
    %c0_4 = arith.constant 0 : index
    %2 = vector.load %arg2[%c0_3, %c0_4] : memref<128x96xf32, #tpu.memory_space<vmem>>, vector<128x96xf32>
    %c0_5 = arith.constant 0 : index
    %c0_6 = arith.constant 0 : index
    %3 = vector.load %arg3[%c0_5, %c0_6] : memref<8x96xf32, #tpu.memory_space<vmem>>, vector<8x96xf32>
    %4 = vector.extract_strided_slice %2 {offsets = [0, 0], sizes = [32, 96], strides = [1, 1]} : vector<128x96xf32> to vector<32x96xf32>
    %5 = vector.extract_strided_slice %2 {offsets = [32, 0], sizes = [32, 32], strides = [1, 1]} : vector<128x96xf32> to vector<32x32xf32>
    %6 = vector.extract_strided_slice %2 {offsets = [32, 32], sizes = [32, 64], strides = [1, 1]} : vector<128x96xf32> to vector<32x64xf32>
    %7 = vector.extract_strided_slice %2 {offsets = [64, 0], sizes = [64, 32], strides = [1, 1]} : vector<128x96xf32> to vector<64x32xf32>
    %8 = vector.extract_strided_slice %3 {offsets = [0, 0], sizes = [1, 96], strides = [1, 1]} : vector<8x96xf32> to vector<1x96xf32>
    %9 = vector.extract_strided_slice %3 {offsets = [1, 0], sizes = [1, 32], strides = [1, 1]} : vector<8x96xf32> to vector<1x32xf32>
    %10 = vector.extract_strided_slice %3 {offsets = [1, 32], sizes = [1, 64], strides = [1, 1]} : vector<8x96xf32> to vector<1x64xf32>
    %11 = vector.extract_strided_slice %3 {offsets = [2, 0], sizes = [1, 32], strides = [1, 1]} : vector<8x96xf32> to vector<1x32xf32>
    %12 = vector.extract_strided_slice %3 {offsets = [3, 0], sizes = [1, 32], strides = [1, 1]} : vector<8x96xf32> to vector<1x32xf32>
    %13 = vector.extract_strided_slice %3 {offsets = [4, 0], sizes = [1, 32], strides = [1, 1]} : vector<8x96xf32> to vector<1x32xf32>
    %14 = vector.extract_strided_slice %3 {offsets = [5, 0], sizes = [1, 32], strides = [1, 1]} : vector<8x96xf32> to vector<1x32xf32>
    %15 = vector.extract_strided_slice %3 {offsets = [6, 0], sizes = [1, 32], strides = [1, 1]} : vector<8x96xf32> to vector<1x32xf32>
    %cst = arith.constant dense<0.000000e+00> : vector<128x96xf32>
    %16 = tpu.matmul %0, %4, %cst {dimension_numbers = #tpu.dot_dimension_numbers<[1], [0], [0], [1], [0, 0, 1, 1], [], []>} : vector<128x32xf32>, vector<32x96xf32>, vector<128x96xf32> -> vector<128x96xf32>
    %17 = vector.broadcast %8 : vector<1x96xf32> to vector<128x96xf32>
    %18 = arith.addf %16, %17 : vector<128x96xf32>
    %19 = vector.extract_strided_slice %1 {offsets = [0, 0], sizes = [1, 8], strides = [1, 1]} : vector<16x8xf32> to vector<1x8xf32>
    %cst_7 = arith.constant 0.000000e+00 : f32
    %20 = vector.broadcast %cst_7 : f32 to vector<8x32xf32>
    %21 = vector.extract_strided_slice %18 {offsets = [0, 0], sizes = [8, 16], strides = [1, 1]} : vector<128x96xf32> to vector<8x16xf32>
    %22 = vector.extract_strided_slice %18 {offsets = [0, 32], sizes = [8, 16], strides = [1, 1]} : vector<128x96xf32> to vector<8x16xf32>
    %23 = vector.extract_strided_slice %18 {offsets = [0, 64], sizes = [8, 16], strides = [1, 1]} : vector<128x96xf32> to vector<8x16xf32>
    %cst_8 = arith.constant dense<0.000000e+00> : vector<8x8xf32>
    %24 = tpu.matmul %21, %22, %cst_8 {dimension_numbers = #tpu.dot_dimension_numbers<[1], [1], [0], [0], [0, 0, 1, 0], [], []>} : vector<8x16xf32>, vector<8x16xf32>, vector<8x8xf32> -> vector<8x8xf32>
    %25 = vector.broadcast %19 : vector<1x8xf32> to vector<8x8xf32>
    %26 = arith.addf %24, %25 : vector<8x8xf32>
    %cst_9 = arith.constant dense<0xFF800000> : vector<8xf32>
    %27 = vector.multi_reduction <maximumf>, %26, %cst_9 [1] : vector<8x8xf32> to vector<8xf32>
    %28 = vector.shape_cast %27 : vector<8xf32> to vector<8x1xf32>
    %29 = vector.broadcast %28 : vector<8x1xf32> to vector<8x8xf32>
    %30 = arith.subf %26, %29 : vector<8x8xf32>
    %31 = math.exp %30 : vector<8x8xf32>
    %cst_10 = arith.constant dense<0.000000e+00> : vector<8xf32>
    %32 = vector.multi_reduction <add>, %31, %cst_10 [1] : vector<8x8xf32> to vector<8xf32>
    %33 = vector.shape_cast %32 : vector<8xf32> to vector<8x1xf32>
    %34 = tpu.reciprocal %33 {approx = true} : vector<8x1xf32> -> vector<8x1xf32>
    %35 = vector.broadcast %34 : vector<8x1xf32> to vector<8x8xf32>
    %36 = arith.mulf %31, %35 : vector<8x8xf32>
    %cst_11 = arith.constant dense<0.000000e+00> : vector<8x16xf32>
    %37 = tpu.matmul %36, %23, %cst_11 {dimension_numbers = #tpu.dot_dimension_numbers<[1], [0], [0], [1], [0, 0, 1, 1], [], []>} : vector<8x8xf32>, vector<8x16xf32>, vector<8x16xf32> -> vector<8x16xf32>
    %38 = vector.extract_strided_slice %5 {offsets = [0, 0], sizes = [16, 32], strides = [1, 1]} : vector<32x32xf32> to vector<16x32xf32>
    %cst_12 = arith.constant dense<0.000000e+00> : vector<8x32xf32>
    %39 = tpu.matmul %37, %38, %cst_12 {dimension_numbers = #tpu.dot_dimension_numbers<[1], [0], [0], [1], [0, 0, 1, 1], [], []>} : vector<8x16xf32>, vector<16x32xf32>, vector<8x32xf32> -> vector<8x32xf32>
    %40 = arith.addf %20, %39 : vector<8x32xf32>
    %41 = vector.extract_strided_slice %18 {offsets = [0, 16], sizes = [8, 16], strides = [1, 1]} : vector<128x96xf32> to vector<8x16xf32>
    %42 = vector.extract_strided_slice %18 {offsets = [0, 48], sizes = [8, 16], strides = [1, 1]} : vector<128x96xf32> to vector<8x16xf32>
    %43 = vector.extract_strided_slice %18 {offsets = [0, 80], sizes = [8, 16], strides = [1, 1]} : vector<128x96xf32> to vector<8x16xf32>
    %cst_13 = arith.constant dense<0.000000e+00> : vector<8x8xf32>
    %44 = tpu.matmul %41, %42, %cst_13 {dimension_numbers = #tpu.dot_dimension_numbers<[1], [1], [0], [0], [0, 0, 1, 0], [], []>} : vector<8x16xf32>, vector<8x16xf32>, vector<8x8xf32> -> vector<8x8xf32>
    %45 = vector.broadcast %19 : vector<1x8xf32> to vector<8x8xf32>
    %46 = arith.addf %44, %45 : vector<8x8xf32>
    %cst_14 = arith.constant dense<0xFF800000> : vector<8xf32>
    %47 = vector.multi_reduction <maximumf>, %46, %cst_14 [1] : vector<8x8xf32> to vector<8xf32>
    %48 = vector.shape_cast %47 : vector<8xf32> to vector<8x1xf32>
    %49 = vector.broadcast %48 : vector<8x1xf32> to vector<8x8xf32>
    %50 = arith.subf %46, %49 : vector<8x8xf32>
    %51 = math.exp %50 : vector<8x8xf32>
    %cst_15 = arith.constant dense<0.000000e+00> : vector<8xf32>
    %52 = vector.multi_reduction <add>, %51, %cst_15 [1] : vector<8x8xf32> to vector<8xf32>
    %53 = vector.shape_cast %52 : vector<8xf32> to vector<8x1xf32>
    %54 = tpu.reciprocal %53 {approx = true} : vector<8x1xf32> -> vector<8x1xf32>
    %55 = vector.broadcast %54 : vector<8x1xf32> to vector<8x8xf32>
    %56 = arith.mulf %51, %55 : vector<8x8xf32>
    %cst_16 = arith.constant dense<0.000000e+00> : vector<8x16xf32>
    %57 = tpu.matmul %56, %43, %cst_16 {dimension_numbers = #tpu.dot_dimension_numbers<[1], [0], [0], [1], [0, 0, 1, 1], [], []>} : vector<8x8xf32>, vector<8x16xf32>, vector<8x16xf32> -> vector<8x16xf32>
    %58 = vector.extract_strided_slice %5 {offsets = [16, 0], sizes = [16, 32], strides = [1, 1]} : vector<32x32xf32> to vector<16x32xf32>
    %cst_17 = arith.constant dense<0.000000e+00> : vector<8x32xf32>
    %59 = tpu.matmul %57, %58, %cst_17 {dimension_numbers = #tpu.dot_dimension_numbers<[1], [0], [0], [1], [0, 0, 1, 1], [], []>} : vector<8x16xf32>, vector<16x32xf32>, vector<8x32xf32> -> vector<8x32xf32>
    %60 = arith.addf %40, %59 : vector<8x32xf32>
    %61 = vector.extract_strided_slice %1 {offsets = [1, 0], sizes = [1, 8], strides = [1, 1]} : vector<16x8xf32> to vector<1x8xf32>
    %cst_18 = arith.constant 0.000000e+00 : f32
    %62 = vector.broadcast %cst_18 : f32 to vector<8x32xf32>
    %63 = vector.extract_strided_slice %18 {offsets = [8, 0], sizes = [8, 16], strides = [1, 1]} : vector<128x96xf32> to vector<8x16xf32>
    %64 = vector.extract_strided_slice %18 {offsets = [8, 32], sizes = [8, 16], strides = [1, 1]} : vector<128x96xf32> to vector<8x16xf32>
    %65 = vector.extract_strided_slice %18 {offsets = [8, 64], sizes = [8, 16], strides = [1, 1]} : vector<128x96xf32> to vector<8x16xf32>
    %cst_19 = arith.constant dense<0.000000e+00> : vector<8x8xf32>
    %66 = tpu.matmul %63, %64, %cst_19 {dimension_numbers = #tpu.dot_dimension_numbers<[1], [1], [0], [0], [0, 0, 1, 0], [], []>} : vector<8x16xf32>, vector<8x16xf32>, vector<8x8xf32> -> vector<8x8xf32>
    %67 = vector.broadcast %61 : vector<1x8xf32> to vector<8x8xf32>
    %68 = arith.addf %66, %67 : vector<8x8xf32>
    %cst_20 = arith.constant dense<0xFF800000> : vector<8xf32>
    %69 = vector.multi_reduction <maximumf>, %68, %cst_20 [1] : vector<8x8xf32> to vector<8xf32>
    %70 = vector.shape_cast %69 : vector<8xf32> to vector<8x1xf32>
    %71 = vector.broadcast %70 : vector<8x1xf32> to vector<8x8xf32>
    %72 = arith.subf %68, %71 : vector<8x8xf32>
    %73 = math.exp %72 : vector<8x8xf32>
    %cst_21 = arith.constant dense<0.000000e+00> : vector<8xf32>
    %74 = vector.multi_reduction <add>, %73, %cst_21 [1] : vector<8x8xf32> to vector<8xf32>
    %75 = vector.shape_cast %74 : vector<8xf32> to vector<8x1xf32>
    %76 = tpu.reciprocal %75 {approx = true} : vector<8x1xf32> -> vector<8x1xf32>
    %77 = vector.broadcast %76 : vector<8x1xf32> to vector<8x8xf32>
    %78 = arith.mulf %73, %77 : vector<8x8xf32>
    %cst_22 = arith.constant dense<0.000000e+00> : vector<8x16xf32>
    %79 = tpu.matmul %78, %65, %cst_22 {dimension_numbers = #tpu.dot_dimension_numbers<[1], [0], [0], [1], [0, 0, 1, 1], [], []>} : vector<8x8xf32>, vector<8x16xf32>, vector<8x16xf32> -> vector<8x16xf32>
    %80 = vector.extract_strided_slice %5 {offsets = [0, 0], sizes = [16, 32], strides = [1, 1]} : vector<32x32xf32> to vector<16x32xf32>
    %cst_23 = arith.constant dense<0.000000e+00> : vector<8x32xf32>
    %81 = tpu.matmul %79, %80, %cst_23 {dimension_numbers = #tpu.dot_dimension_numbers<[1], [0], [0], [1], [0, 0, 1, 1], [], []>} : vector<8x16xf32>, vector<16x32xf32>, vector<8x32xf32> -> vector<8x32xf32>
    %82 = arith.addf %62, %81 : vector<8x32xf32>
    %83 = vector.extract_strided_slice %18 {offsets = [8, 16], sizes = [8, 16], strides = [1, 1]} : vector<128x96xf32> to vector<8x16xf32>
    %84 = vector.extract_strided_slice %18 {offsets = [8, 48], sizes = [8, 16], strides = [1, 1]} : vector<128x96xf32> to vector<8x16xf32>
    %85 = vector.extract_strided_slice %18 {offsets = [8, 80], sizes = [8, 16], strides = [1, 1]} : vector<128x96xf32> to vector<8x16xf32>
    %cst_24 = arith.constant dense<0.000000e+00> : vector<8x8xf32>
    %86 = tpu.matmul %83, %84, %cst_24 {dimension_numbers = #tpu.dot_dimension_numbers<[1], [1], [0], [0], [0, 0, 1, 0], [], []>} : vector<8x16xf32>, vector<8x16xf32>, vector<8x8xf32> -> vector<8x8xf32>
    %87 = vector.broadcast %61 : vector<1x8xf32> to vector<8x8xf32>
    %88 = arith.addf %86, %87 : vector<8x8xf32>
    %cst_25 = arith.constant dense<0xFF800000> : vector<8xf32>
    %89 = vector.multi_reduction <maximumf>, %88, %cst_25 [1] : vector<8x8xf32> to vector<8xf32>
    %90 = vector.shape_cast %89 : vector<8xf32> to vector<8x1xf32>
    %91 = vector.broadcast %90 : vector<8x1xf32> to vector<8x8xf32>
    %92 = arith.subf %88, %91 : vector<8x8xf32>
    %93 = math.exp %92 : vector<8x8xf32>
    %cst_26 = arith.constant dense<0.000000e+00> : vector<8xf32>
    %94 = vector.multi_reduction <add>, %93, %cst_26 [1] : vector<8x8xf32> to vector<8xf32>
    %95 = vector.shape_cast %94 : vector<8xf32> to vector<8x1xf32>
    %96 = tpu.reciprocal %95 {approx = true} : vector<8x1xf32> -> vector<8x1xf32>
    %97 = vector.broadcast %96 : vector<8x1xf32> to vector<8x8xf32>
    %98 = arith.mulf %93, %97 : vector<8x8xf32>
    %cst_27 = arith.constant dense<0.000000e+00> : vector<8x16xf32>
    %99 = tpu.matmul %98, %85, %cst_27 {dimension_numbers = #tpu.dot_dimension_numbers<[1], [0], [0], [1], [0, 0, 1, 1], [], []>} : vector<8x8xf32>, vector<8x16xf32>, vector<8x16xf32> -> vector<8x16xf32>
    %100 = vector.extract_strided_slice %5 {offsets = [16, 0], sizes = [16, 32], strides = [1, 1]} : vector<32x32xf32> to vector<16x32xf32>
    %cst_28 = arith.constant dense<0.000000e+00> : vector<8x32xf32>
    %101 = tpu.matmul %99, %100, %cst_28 {dimension_numbers = #tpu.dot_dimension_numbers<[1], [0], [0], [1], [0, 0, 1, 1], [], []>} : vector<8x16xf32>, vector<16x32xf32>, vector<8x32xf32> -> vector<8x32xf32>
    %102 = arith.addf %82, %101 : vector<8x32xf32>
    %103 = vector.extract_strided_slice %1 {offsets = [2, 0], sizes = [1, 8], strides = [1, 1]} : vector<16x8xf32> to vector<1x8xf32>
    %cst_29 = arith.constant 0.000000e+00 : f32
    %104 = vector.broadcast %cst_29 : f32 to vector<8x32xf32>
    %105 = vector.extract_strided_slice %18 {offsets = [16, 0], sizes = [8, 16], strides = [1, 1]} : vector<128x96xf32> to vector<8x16xf32>
    %106 = vector.extract_strided_slice %18 {offsets = [16, 32], sizes = [8, 16], strides = [1, 1]} : vector<128x96xf32> to vector<8x16xf32>
    %107 = vector.extract_strided_slice %18 {offsets = [16, 64], sizes = [8, 16], strides = [1, 1]} : vector<128x96xf32> to vector<8x16xf32>
    %cst_30 = arith.constant dense<0.000000e+00> : vector<8x8xf32>
    %108 = tpu.matmul %105, %106, %cst_30 {dimension_numbers = #tpu.dot_dimension_numbers<[1], [1], [0], [0], [0, 0, 1, 0], [], []>} : vector<8x16xf32>, vector<8x16xf32>, vector<8x8xf32> -> vector<8x8xf32>
    %109 = vector.broadcast %103 : vector<1x8xf32> to vector<8x8xf32>
    %110 = arith.addf %108, %109 : vector<8x8xf32>
    %cst_31 = arith.constant dense<0xFF800000> : vector<8xf32>
    %111 = vector.multi_reduction <maximumf>, %110, %cst_31 [1] : vector<8x8xf32> to vector<8xf32>
    %112 = vector.shape_cast %111 : vector<8xf32> to vector<8x1xf32>
    %113 = vector.broadcast %112 : vector<8x1xf32> to vector<8x8xf32>
    %114 = arith.subf %110, %113 : vector<8x8xf32>
    %115 = math.exp %114 : vector<8x8xf32>
    %cst_32 = arith.constant dense<0.000000e+00> : vector<8xf32>
    %116 = vector.multi_reduction <add>, %115, %cst_32 [1] : vector<8x8xf32> to vector<8xf32>
    %117 = vector.shape_cast %116 : vector<8xf32> to vector<8x1xf32>
    %118 = tpu.reciprocal %117 {approx = true} : vector<8x1xf32> -> vector<8x1xf32>
    %119 = vector.broadcast %118 : vector<8x1xf32> to vector<8x8xf32>
    %120 = arith.mulf %115, %119 : vector<8x8xf32>
    %cst_33 = arith.constant dense<0.000000e+00> : vector<8x16xf32>
    %121 = tpu.matmul %120, %107, %cst_33 {dimension_numbers = #tpu.dot_dimension_numbers<[1], [0], [0], [1], [0, 0, 1, 1], [], []>} : vector<8x8xf32>, vector<8x16xf32>, vector<8x16xf32> -> vector<8x16xf32>
    %122 = vector.extract_strided_slice %5 {offsets = [0, 0], sizes = [16, 32], strides = [1, 1]} : vector<32x32xf32> to vector<16x32xf32>
    %cst_34 = arith.constant dense<0.000000e+00> : vector<8x32xf32>
    %123 = tpu.matmul %121, %122, %cst_34 {dimension_numbers = #tpu.dot_dimension_numbers<[1], [0], [0], [1], [0, 0, 1, 1], [], []>} : vector<8x16xf32>, vector<16x32xf32>, vector<8x32xf32> -> vector<8x32xf32>
    %124 = arith.addf %104, %123 : vector<8x32xf32>
    %125 = vector.extract_strided_slice %18 {offsets = [16, 16], sizes = [8, 16], strides = [1, 1]} : vector<128x96xf32> to vector<8x16xf32>
    %126 = vector.extract_strided_slice %18 {offsets = [16, 48], sizes = [8, 16], strides = [1, 1]} : vector<128x96xf32> to vector<8x16xf32>
    %127 = vector.extract_strided_slice %18 {offsets = [16, 80], sizes = [8, 16], strides = [1, 1]} : vector<128x96xf32> to vector<8x16xf32>
    %cst_35 = arith.constant dense<0.000000e+00> : vector<8x8xf32>
    %128 = tpu.matmul %125, %126, %cst_35 {dimension_numbers = #tpu.dot_dimension_numbers<[1], [1], [0], [0], [0, 0, 1, 0], [], []>} : vector<8x16xf32>, vector<8x16xf32>, vector<8x8xf32> -> vector<8x8xf32>
    %129 = vector.broadcast %103 : vector<1x8xf32> to vector<8x8xf32>
    %130 = arith.addf %128, %129 : vector<8x8xf32>
    %cst_36 = arith.constant dense<0xFF800000> : vector<8xf32>
    %131 = vector.multi_reduction <maximumf>, %130, %cst_36 [1] : vector<8x8xf32> to vector<8xf32>
    %132 = vector.shape_cast %131 : vector<8xf32> to vector<8x1xf32>
    %133 = vector.broadcast %132 : vector<8x1xf32> to vector<8x8xf32>
    %134 = arith.subf %130, %133 : vector<8x8xf32>
    %135 = math.exp %134 : vector<8x8xf32>
    %cst_37 = arith.constant dense<0.000000e+00> : vector<8xf32>
    %136 = vector.multi_reduction <add>, %135, %cst_37 [1] : vector<8x8xf32> to vector<8xf32>
    %137 = vector.shape_cast %136 : vector<8xf32> to vector<8x1xf32>
    %138 = tpu.reciprocal %137 {approx = true} : vector<8x1xf32> -> vector<8x1xf32>
    %139 = vector.broadcast %138 : vector<8x1xf32> to vector<8x8xf32>
    %140 = arith.mulf %135, %139 : vector<8x8xf32>
    %cst_38 = arith.constant dense<0.000000e+00> : vector<8x16xf32>
    %141 = tpu.matmul %140, %127, %cst_38 {dimension_numbers = #tpu.dot_dimension_numbers<[1], [0], [0], [1], [0, 0, 1, 1], [], []>} : vector<8x8xf32>, vector<8x16xf32>, vector<8x16xf32> -> vector<8x16xf32>
    %142 = vector.extract_strided_slice %5 {offsets = [16, 0], sizes = [16, 32], strides = [1, 1]} : vector<32x32xf32> to vector<16x32xf32>
    %cst_39 = arith.constant dense<0.000000e+00> : vector<8x32xf32>
    %143 = tpu.matmul %141, %142, %cst_39 {dimension_numbers = #tpu.dot_dimension_numbers<[1], [0], [0], [1], [0, 0, 1, 1], [], []>} : vector<8x16xf32>, vector<16x32xf32>, vector<8x32xf32> -> vector<8x32xf32>
    %144 = arith.addf %124, %143 : vector<8x32xf32>
    %145 = vector.extract_strided_slice %1 {offsets = [3, 0], sizes = [1, 8], strides = [1, 1]} : vector<16x8xf32> to vector<1x8xf32>
    %cst_40 = arith.constant 0.000000e+00 : f32
    %146 = vector.broadcast %cst_40 : f32 to vector<8x32xf32>
    %147 = vector.extract_strided_slice %18 {offsets = [24, 0], sizes = [8, 16], strides = [1, 1]} : vector<128x96xf32> to vector<8x16xf32>
    %148 = vector.extract_strided_slice %18 {offsets = [24, 32], sizes = [8, 16], strides = [1, 1]} : vector<128x96xf32> to vector<8x16xf32>
    %149 = vector.extract_strided_slice %18 {offsets = [24, 64], sizes = [8, 16], strides = [1, 1]} : vector<128x96xf32> to vector<8x16xf32>
    %cst_41 = arith.constant dense<0.000000e+00> : vector<8x8xf32>
    %150 = tpu.matmul %147, %148, %cst_41 {dimension_numbers = #tpu.dot_dimension_numbers<[1], [1], [0], [0], [0, 0, 1, 0], [], []>} : vector<8x16xf32>, vector<8x16xf32>, vector<8x8xf32> -> vector<8x8xf32>
    %151 = vector.broadcast %145 : vector<1x8xf32> to vector<8x8xf32>
    %152 = arith.addf %150, %151 : vector<8x8xf32>
    %cst_42 = arith.constant dense<0xFF800000> : vector<8xf32>
    %153 = vector.multi_reduction <maximumf>, %152, %cst_42 [1] : vector<8x8xf32> to vector<8xf32>
    %154 = vector.shape_cast %153 : vector<8xf32> to vector<8x1xf32>
    %155 = vector.broadcast %154 : vector<8x1xf32> to vector<8x8xf32>
    %156 = arith.subf %152, %155 : vector<8x8xf32>
    %157 = math.exp %156 : vector<8x8xf32>
    %cst_43 = arith.constant dense<0.000000e+00> : vector<8xf32>
    %158 = vector.multi_reduction <add>, %157, %cst_43 [1] : vector<8x8xf32> to vector<8xf32>
    %159 = vector.shape_cast %158 : vector<8xf32> to vector<8x1xf32>
    %160 = tpu.reciprocal %159 {approx = true} : vector<8x1xf32> -> vector<8x1xf32>
    %161 = vector.broadcast %160 : vector<8x1xf32> to vector<8x8xf32>
    %162 = arith.mulf %157, %161 : vector<8x8xf32>
    %cst_44 = arith.constant dense<0.000000e+00> : vector<8x16xf32>
    %163 = tpu.matmul %162, %149, %cst_44 {dimension_numbers = #tpu.dot_dimension_numbers<[1], [0], [0], [1], [0, 0, 1, 1], [], []>} : vector<8x8xf32>, vector<8x16xf32>, vector<8x16xf32> -> vector<8x16xf32>
    %164 = vector.extract_strided_slice %5 {offsets = [0, 0], sizes = [16, 32], strides = [1, 1]} : vector<32x32xf32> to vector<16x32xf32>
    %cst_45 = arith.constant dense<0.000000e+00> : vector<8x32xf32>
    %165 = tpu.matmul %163, %164, %cst_45 {dimension_numbers = #tpu.dot_dimension_numbers<[1], [0], [0], [1], [0, 0, 1, 1], [], []>} : vector<8x16xf32>, vector<16x32xf32>, vector<8x32xf32> -> vector<8x32xf32>
    %166 = arith.addf %146, %165 : vector<8x32xf32>
    %167 = vector.extract_strided_slice %18 {offsets = [24, 16], sizes = [8, 16], strides = [1, 1]} : vector<128x96xf32> to vector<8x16xf32>
    %168 = vector.extract_strided_slice %18 {offsets = [24, 48], sizes = [8, 16], strides = [1, 1]} : vector<128x96xf32> to vector<8x16xf32>
    %169 = vector.extract_strided_slice %18 {offsets = [24, 80], sizes = [8, 16], strides = [1, 1]} : vector<128x96xf32> to vector<8x16xf32>
    %cst_46 = arith.constant dense<0.000000e+00> : vector<8x8xf32>
    %170 = tpu.matmul %167, %168, %cst_46 {dimension_numbers = #tpu.dot_dimension_numbers<[1], [1], [0], [0], [0, 0, 1, 0], [], []>} : vector<8x16xf32>, vector<8x16xf32>, vector<8x8xf32> -> vector<8x8xf32>
    %171 = vector.broadcast %145 : vector<1x8xf32> to vector<8x8xf32>
    %172 = arith.addf %170, %171 : vector<8x8xf32>
    %cst_47 = arith.constant dense<0xFF800000> : vector<8xf32>
    %173 = vector.multi_reduction <maximumf>, %172, %cst_47 [1] : vector<8x8xf32> to vector<8xf32>
    %174 = vector.shape_cast %173 : vector<8xf32> to vector<8x1xf32>
    %175 = vector.broadcast %174 : vector<8x1xf32> to vector<8x8xf32>
    %176 = arith.subf %172, %175 : vector<8x8xf32>
    %177 = math.exp %176 : vector<8x8xf32>
    %cst_48 = arith.constant dense<0.000000e+00> : vector<8xf32>
    %178 = vector.multi_reduction <add>, %177, %cst_48 [1] : vector<8x8xf32> to vector<8xf32>
    %179 = vector.shape_cast %178 : vector<8xf32> to vector<8x1xf32>
    %180 = tpu.reciprocal %179 {approx = true} : vector<8x1xf32> -> vector<8x1xf32>
    %181 = vector.broadcast %180 : vector<8x1xf32> to vector<8x8xf32>
    %182 = arith.mulf %177, %181 : vector<8x8xf32>
    %cst_49 = arith.constant dense<0.000000e+00> : vector<8x16xf32>
    %183 = tpu.matmul %182, %169, %cst_49 {dimension_numbers = #tpu.dot_dimension_numbers<[1], [0], [0], [1], [0, 0, 1, 1], [], []>} : vector<8x8xf32>, vector<8x16xf32>, vector<8x16xf32> -> vector<8x16xf32>
    %184 = vector.extract_strided_slice %5 {offsets = [16, 0], sizes = [16, 32], strides = [1, 1]} : vector<32x32xf32> to vector<16x32xf32>
    %cst_50 = arith.constant dense<0.000000e+00> : vector<8x32xf32>
    %185 = tpu.matmul %183, %184, %cst_50 {dimension_numbers = #tpu.dot_dimension_numbers<[1], [0], [0], [1], [0, 0, 1, 1], [], []>} : vector<8x16xf32>, vector<16x32xf32>, vector<8x32xf32> -> vector<8x32xf32>
    %186 = arith.addf %166, %185 : vector<8x32xf32>
    %187 = vector.extract_strided_slice %1 {offsets = [4, 0], sizes = [1, 8], strides = [1, 1]} : vector<16x8xf32> to vector<1x8xf32>
    %cst_51 = arith.constant 0.000000e+00 : f32
    %188 = vector.broadcast %cst_51 : f32 to vector<8x32xf32>
    %189 = vector.extract_strided_slice %18 {offsets = [32, 0], sizes = [8, 16], strides = [1, 1]} : vector<128x96xf32> to vector<8x16xf32>
    %190 = vector.extract_strided_slice %18 {offsets = [32, 32], sizes = [8, 16], strides = [1, 1]} : vector<128x96xf32> to vector<8x16xf32>
    %191 = vector.extract_strided_slice %18 {offsets = [32, 64], sizes = [8, 16], strides = [1, 1]} : vector<128x96xf32> to vector<8x16xf32>
    %cst_52 = arith.constant dense<0.000000e+00> : vector<8x8xf32>
    %192 = tpu.matmul %189, %190, %cst_52 {dimension_numbers = #tpu.dot_dimension_numbers<[1], [1], [0], [0], [0, 0, 1, 0], [], []>} : vector<8x16xf32>, vector<8x16xf32>, vector<8x8xf32> -> vector<8x8xf32>
    %193 = vector.broadcast %187 : vector<1x8xf32> to vector<8x8xf32>
    %194 = arith.addf %192, %193 : vector<8x8xf32>
    %cst_53 = arith.constant dense<0xFF800000> : vector<8xf32>
    %195 = vector.multi_reduction <maximumf>, %194, %cst_53 [1] : vector<8x8xf32> to vector<8xf32>
    %196 = vector.shape_cast %195 : vector<8xf32> to vector<8x1xf32>
    %197 = vector.broadcast %196 : vector<8x1xf32> to vector<8x8xf32>
    %198 = arith.subf %194, %197 : vector<8x8xf32>
    %199 = math.exp %198 : vector<8x8xf32>
    %cst_54 = arith.constant dense<0.000000e+00> : vector<8xf32>
    %200 = vector.multi_reduction <add>, %199, %cst_54 [1] : vector<8x8xf32> to vector<8xf32>
    %201 = vector.shape_cast %200 : vector<8xf32> to vector<8x1xf32>
    %202 = tpu.reciprocal %201 {approx = true} : vector<8x1xf32> -> vector<8x1xf32>
    %203 = vector.broadcast %202 : vector<8x1xf32> to vector<8x8xf32>
    %204 = arith.mulf %199, %203 : vector<8x8xf32>
    %cst_55 = arith.constant dense<0.000000e+00> : vector<8x16xf32>
    %205 = tpu.matmul %204, %191, %cst_55 {dimension_numbers = #tpu.dot_dimension_numbers<[1], [0], [0], [1], [0, 0, 1, 1], [], []>} : vector<8x8xf32>, vector<8x16xf32>, vector<8x16xf32> -> vector<8x16xf32>
    %206 = vector.extract_strided_slice %5 {offsets = [0, 0], sizes = [16, 32], strides = [1, 1]} : vector<32x32xf32> to vector<16x32xf32>
    %cst_56 = arith.constant dense<0.000000e+00> : vector<8x32xf32>
    %207 = tpu.matmul %205, %206, %cst_56 {dimension_numbers = #tpu.dot_dimension_numbers<[1], [0], [0], [1], [0, 0, 1, 1], [], []>} : vector<8x16xf32>, vector<16x32xf32>, vector<8x32xf32> -> vector<8x32xf32>
    %208 = arith.addf %188, %207 : vector<8x32xf32>
    %209 = vector.extract_strided_slice %18 {offsets = [32, 16], sizes = [8, 16], strides = [1, 1]} : vector<128x96xf32> to vector<8x16xf32>
    %210 = vector.extract_strided_slice %18 {offsets = [32, 48], sizes = [8, 16], strides = [1, 1]} : vector<128x96xf32> to vector<8x16xf32>
    %211 = vector.extract_strided_slice %18 {offsets = [32, 80], sizes = [8, 16], strides = [1, 1]} : vector<128x96xf32> to vector<8x16xf32>
    %cst_57 = arith.constant dense<0.000000e+00> : vector<8x8xf32>
    %212 = tpu.matmul %209, %210, %cst_57 {dimension_numbers = #tpu.dot_dimension_numbers<[1], [1], [0], [0], [0, 0, 1, 0], [], []>} : vector<8x16xf32>, vector<8x16xf32>, vector<8x8xf32> -> vector<8x8xf32>
    %213 = vector.broadcast %187 : vector<1x8xf32> to vector<8x8xf32>
    %214 = arith.addf %212, %213 : vector<8x8xf32>
    %cst_58 = arith.constant dense<0xFF800000> : vector<8xf32>
    %215 = vector.multi_reduction <maximumf>, %214, %cst_58 [1] : vector<8x8xf32> to vector<8xf32>
    %216 = vector.shape_cast %215 : vector<8xf32> to vector<8x1xf32>
    %217 = vector.broadcast %216 : vector<8x1xf32> to vector<8x8xf32>
    %218 = arith.subf %214, %217 : vector<8x8xf32>
    %219 = math.exp %218 : vector<8x8xf32>
    %cst_59 = arith.constant dense<0.000000e+00> : vector<8xf32>
    %220 = vector.multi_reduction <add>, %219, %cst_59 [1] : vector<8x8xf32> to vector<8xf32>
    %221 = vector.shape_cast %220 : vector<8xf32> to vector<8x1xf32>
    %222 = tpu.reciprocal %221 {approx = true} : vector<8x1xf32> -> vector<8x1xf32>
    %223 = vector.broadcast %222 : vector<8x1xf32> to vector<8x8xf32>
    %224 = arith.mulf %219, %223 : vector<8x8xf32>
    %cst_60 = arith.constant dense<0.000000e+00> : vector<8x16xf32>
    %225 = tpu.matmul %224, %211, %cst_60 {dimension_numbers = #tpu.dot_dimension_numbers<[1], [0], [0], [1], [0, 0, 1, 1], [], []>} : vector<8x8xf32>, vector<8x16xf32>, vector<8x16xf32> -> vector<8x16xf32>
    %226 = vector.extract_strided_slice %5 {offsets = [16, 0], sizes = [16, 32], strides = [1, 1]} : vector<32x32xf32> to vector<16x32xf32>
    %cst_61 = arith.constant dense<0.000000e+00> : vector<8x32xf32>
    %227 = tpu.matmul %225, %226, %cst_61 {dimension_numbers = #tpu.dot_dimension_numbers<[1], [0], [0], [1], [0, 0, 1, 1], [], []>} : vector<8x16xf32>, vector<16x32xf32>, vector<8x32xf32> -> vector<8x32xf32>
    %228 = arith.addf %208, %227 : vector<8x32xf32>
    %229 = vector.extract_strided_slice %1 {offsets = [5, 0], sizes = [1, 8], strides = [1, 1]} : vector<16x8xf32> to vector<1x8xf32>
    %cst_62 = arith.constant 0.000000e+00 : f32
    %230 = vector.broadcast %cst_62 : f32 to vector<8x32xf32>
    %231 = vector.extract_strided_slice %18 {offsets = [40, 0], sizes = [8, 16], strides = [1, 1]} : vector<128x96xf32> to vector<8x16xf32>
    %232 = vector.extract_strided_slice %18 {offsets = [40, 32], sizes = [8, 16], strides = [1, 1]} : vector<128x96xf32> to vector<8x16xf32>
    %233 = vector.extract_strided_slice %18 {offsets = [40, 64], sizes = [8, 16], strides = [1, 1]} : vector<128x96xf32> to vector<8x16xf32>
    %cst_63 = arith.constant dense<0.000000e+00> : vector<8x8xf32>
    %234 = tpu.matmul %231, %232, %cst_63 {dimension_numbers = #tpu.dot_dimension_numbers<[1], [1], [0], [0], [0, 0, 1, 0], [], []>} : vector<8x16xf32>, vector<8x16xf32>, vector<8x8xf32> -> vector<8x8xf32>
    %235 = vector.broadcast %229 : vector<1x8xf32> to vector<8x8xf32>
    %236 = arith.addf %234, %235 : vector<8x8xf32>
    %cst_64 = arith.constant dense<0xFF800000> : vector<8xf32>
    %237 = vector.multi_reduction <maximumf>, %236, %cst_64 [1] : vector<8x8xf32> to vector<8xf32>
    %238 = vector.shape_cast %237 : vector<8xf32> to vector<8x1xf32>
    %239 = vector.broadcast %238 : vector<8x1xf32> to vector<8x8xf32>
    %240 = arith.subf %236, %239 : vector<8x8xf32>
    %241 = math.exp %240 : vector<8x8xf32>
    %cst_65 = arith.constant dense<0.000000e+00> : vector<8xf32>
    %242 = vector.multi_reduction <add>, %241, %cst_65 [1] : vector<8x8xf32> to vector<8xf32>
    %243 = vector.shape_cast %242 : vector<8xf32> to vector<8x1xf32>
    %244 = tpu.reciprocal %243 {approx = true} : vector<8x1xf32> -> vector<8x1xf32>
    %245 = vector.broadcast %244 : vector<8x1xf32> to vector<8x8xf32>
    %246 = arith.mulf %241, %245 : vector<8x8xf32>
    %cst_66 = arith.constant dense<0.000000e+00> : vector<8x16xf32>
    %247 = tpu.matmul %246, %233, %cst_66 {dimension_numbers = #tpu.dot_dimension_numbers<[1], [0], [0], [1], [0, 0, 1, 1], [], []>} : vector<8x8xf32>, vector<8x16xf32>, vector<8x16xf32> -> vector<8x16xf32>
    %248 = vector.extract_strided_slice %5 {offsets = [0, 0], sizes = [16, 32], strides = [1, 1]} : vector<32x32xf32> to vector<16x32xf32>
    %cst_67 = arith.constant dense<0.000000e+00> : vector<8x32xf32>
    %249 = tpu.matmul %247, %248, %cst_67 {dimension_numbers = #tpu.dot_dimension_numbers<[1], [0], [0], [1], [0, 0, 1, 1], [], []>} : vector<8x16xf32>, vector<16x32xf32>, vector<8x32xf32> -> vector<8x32xf32>
    %250 = arith.addf %230, %249 : vector<8x32xf32>
    %251 = vector.extract_strided_slice %18 {offsets = [40, 16], sizes = [8, 16], strides = [1, 1]} : vector<128x96xf32> to vector<8x16xf32>
    %252 = vector.extract_strided_slice %18 {offsets = [40, 48], sizes = [8, 16], strides = [1, 1]} : vector<128x96xf32> to vector<8x16xf32>
    %253 = vector.extract_strided_slice %18 {offsets = [40, 80], sizes = [8, 16], strides = [1, 1]} : vector<128x96xf32> to vector<8x16xf32>
    %cst_68 = arith.constant dense<0.000000e+00> : vector<8x8xf32>
    %254 = tpu.matmul %251, %252, %cst_68 {dimension_numbers = #tpu.dot_dimension_numbers<[1], [1], [0], [0], [0, 0, 1, 0], [], []>} : vector<8x16xf32>, vector<8x16xf32>, vector<8x8xf32> -> vector<8x8xf32>
    %255 = vector.broadcast %229 : vector<1x8xf32> to vector<8x8xf32>
    %256 = arith.addf %254, %255 : vector<8x8xf32>
    %cst_69 = arith.constant dense<0xFF800000> : vector<8xf32>
    %257 = vector.multi_reduction <maximumf>, %256, %cst_69 [1] : vector<8x8xf32> to vector<8xf32>
    %258 = vector.shape_cast %257 : vector<8xf32> to vector<8x1xf32>
    %259 = vector.broadcast %258 : vector<8x1xf32> to vector<8x8xf32>
    %260 = arith.subf %256, %259 : vector<8x8xf32>
    %261 = math.exp %260 : vector<8x8xf32>
    %cst_70 = arith.constant dense<0.000000e+00> : vector<8xf32>
    %262 = vector.multi_reduction <add>, %261, %cst_70 [1] : vector<8x8xf32> to vector<8xf32>
    %263 = vector.shape_cast %262 : vector<8xf32> to vector<8x1xf32>
    %264 = tpu.reciprocal %263 {approx = true} : vector<8x1xf32> -> vector<8x1xf32>
    %265 = vector.broadcast %264 : vector<8x1xf32> to vector<8x8xf32>
    %266 = arith.mulf %261, %265 : vector<8x8xf32>
    %cst_71 = arith.constant dense<0.000000e+00> : vector<8x16xf32>
    %267 = tpu.matmul %266, %253, %cst_71 {dimension_numbers = #tpu.dot_dimension_numbers<[1], [0], [0], [1], [0, 0, 1, 1], [], []>} : vector<8x8xf32>, vector<8x16xf32>, vector<8x16xf32> -> vector<8x16xf32>
    %268 = vector.extract_strided_slice %5 {offsets = [16, 0], sizes = [16, 32], strides = [1, 1]} : vector<32x32xf32> to vector<16x32xf32>
    %cst_72 = arith.constant dense<0.000000e+00> : vector<8x32xf32>
    %269 = tpu.matmul %267, %268, %cst_72 {dimension_numbers = #tpu.dot_dimension_numbers<[1], [0], [0], [1], [0, 0, 1, 1], [], []>} : vector<8x16xf32>, vector<16x32xf32>, vector<8x32xf32> -> vector<8x32xf32>
    %270 = arith.addf %250, %269 : vector<8x32xf32>
    %271 = vector.extract_strided_slice %1 {offsets = [6, 0], sizes = [1, 8], strides = [1, 1]} : vector<16x8xf32> to vector<1x8xf32>
    %cst_73 = arith.constant 0.000000e+00 : f32
    %272 = vector.broadcast %cst_73 : f32 to vector<8x32xf32>
    %273 = vector.extract_strided_slice %18 {offsets = [48, 0], sizes = [8, 16], strides = [1, 1]} : vector<128x96xf32> to vector<8x16xf32>
    %274 = vector.extract_strided_slice %18 {offsets = [48, 32], sizes = [8, 16], strides = [1, 1]} : vector<128x96xf32> to vector<8x16xf32>
    %275 = vector.extract_strided_slice %18 {offsets = [48, 64], sizes = [8, 16], strides = [1, 1]} : vector<128x96xf32> to vector<8x16xf32>
    %cst_74 = arith.constant dense<0.000000e+00> : vector<8x8xf32>
    %276 = tpu.matmul %273, %274, %cst_74 {dimension_numbers = #tpu.dot_dimension_numbers<[1], [1], [0], [0], [0, 0, 1, 0], [], []>} : vector<8x16xf32>, vector<8x16xf32>, vector<8x8xf32> -> vector<8x8xf32>
    %277 = vector.broadcast %271 : vector<1x8xf32> to vector<8x8xf32>
    %278 = arith.addf %276, %277 : vector<8x8xf32>
    %cst_75 = arith.constant dense<0xFF800000> : vector<8xf32>
    %279 = vector.multi_reduction <maximumf>, %278, %cst_75 [1] : vector<8x8xf32> to vector<8xf32>
    %280 = vector.shape_cast %279 : vector<8xf32> to vector<8x1xf32>
    %281 = vector.broadcast %280 : vector<8x1xf32> to vector<8x8xf32>
    %282 = arith.subf %278, %281 : vector<8x8xf32>
    %283 = math.exp %282 : vector<8x8xf32>
    %cst_76 = arith.constant dense<0.000000e+00> : vector<8xf32>
    %284 = vector.multi_reduction <add>, %283, %cst_76 [1] : vector<8x8xf32> to vector<8xf32>
    %285 = vector.shape_cast %284 : vector<8xf32> to vector<8x1xf32>
    %286 = tpu.reciprocal %285 {approx = true} : vector<8x1xf32> -> vector<8x1xf32>
    %287 = vector.broadcast %286 : vector<8x1xf32> to vector<8x8xf32>
    %288 = arith.mulf %283, %287 : vector<8x8xf32>
    %cst_77 = arith.constant dense<0.000000e+00> : vector<8x16xf32>
    %289 = tpu.matmul %288, %275, %cst_77 {dimension_numbers = #tpu.dot_dimension_numbers<[1], [0], [0], [1], [0, 0, 1, 1], [], []>} : vector<8x8xf32>, vector<8x16xf32>, vector<8x16xf32> -> vector<8x16xf32>
    %290 = vector.extract_strided_slice %5 {offsets = [0, 0], sizes = [16, 32], strides = [1, 1]} : vector<32x32xf32> to vector<16x32xf32>
    %cst_78 = arith.constant dense<0.000000e+00> : vector<8x32xf32>
    %291 = tpu.matmul %289, %290, %cst_78 {dimension_numbers = #tpu.dot_dimension_numbers<[1], [0], [0], [1], [0, 0, 1, 1], [], []>} : vector<8x16xf32>, vector<16x32xf32>, vector<8x32xf32> -> vector<8x32xf32>
    %292 = arith.addf %272, %291 : vector<8x32xf32>
    %293 = vector.extract_strided_slice %18 {offsets = [48, 16], sizes = [8, 16], strides = [1, 1]} : vector<128x96xf32> to vector<8x16xf32>
    %294 = vector.extract_strided_slice %18 {offsets = [48, 48], sizes = [8, 16], strides = [1, 1]} : vector<128x96xf32> to vector<8x16xf32>
    %295 = vector.extract_strided_slice %18 {offsets = [48, 80], sizes = [8, 16], strides = [1, 1]} : vector<128x96xf32> to vector<8x16xf32>
    %cst_79 = arith.constant dense<0.000000e+00> : vector<8x8xf32>
    %296 = tpu.matmul %293, %294, %cst_79 {dimension_numbers = #tpu.dot_dimension_numbers<[1], [1], [0], [0], [0, 0, 1, 0], [], []>} : vector<8x16xf32>, vector<8x16xf32>, vector<8x8xf32> -> vector<8x8xf32>
    %297 = vector.broadcast %271 : vector<1x8xf32> to vector<8x8xf32>
    %298 = arith.addf %296, %297 : vector<8x8xf32>
    %cst_80 = arith.constant dense<0xFF800000> : vector<8xf32>
    %299 = vector.multi_reduction <maximumf>, %298, %cst_80 [1] : vector<8x8xf32> to vector<8xf32>
    %300 = vector.shape_cast %299 : vector<8xf32> to vector<8x1xf32>
    %301 = vector.broadcast %300 : vector<8x1xf32> to vector<8x8xf32>
    %302 = arith.subf %298, %301 : vector<8x8xf32>
    %303 = math.exp %302 : vector<8x8xf32>
    %cst_81 = arith.constant dense<0.000000e+00> : vector<8xf32>
    %304 = vector.multi_reduction <add>, %303, %cst_81 [1] : vector<8x8xf32> to vector<8xf32>
    %305 = vector.shape_cast %304 : vector<8xf32> to vector<8x1xf32>
    %306 = tpu.reciprocal %305 {approx = true} : vector<8x1xf32> -> vector<8x1xf32>
    %307 = vector.broadcast %306 : vector<8x1xf32> to vector<8x8xf32>
    %308 = arith.mulf %303, %307 : vector<8x8xf32>
    %cst_82 = arith.constant dense<0.000000e+00> : vector<8x16xf32>
    %309 = tpu.matmul %308, %295, %cst_82 {dimension_numbers = #tpu.dot_dimension_numbers<[1], [0], [0], [1], [0, 0, 1, 1], [], []>} : vector<8x8xf32>, vector<8x16xf32>, vector<8x16xf32> -> vector<8x16xf32>
    %310 = vector.extract_strided_slice %5 {offsets = [16, 0], sizes = [16, 32], strides = [1, 1]} : vector<32x32xf32> to vector<16x32xf32>
    %cst_83 = arith.constant dense<0.000000e+00> : vector<8x32xf32>
    %311 = tpu.matmul %309, %310, %cst_83 {dimension_numbers = #tpu.dot_dimension_numbers<[1], [0], [0], [1], [0, 0, 1, 1], [], []>} : vector<8x16xf32>, vector<16x32xf32>, vector<8x32xf32> -> vector<8x32xf32>
    %312 = arith.addf %292, %311 : vector<8x32xf32>
    %313 = vector.extract_strided_slice %1 {offsets = [7, 0], sizes = [1, 8], strides = [1, 1]} : vector<16x8xf32> to vector<1x8xf32>
    %cst_84 = arith.constant 0.000000e+00 : f32
    %314 = vector.broadcast %cst_84 : f32 to vector<8x32xf32>
    %315 = vector.extract_strided_slice %18 {offsets = [56, 0], sizes = [8, 16], strides = [1, 1]} : vector<128x96xf32> to vector<8x16xf32>
    %316 = vector.extract_strided_slice %18 {offsets = [56, 32], sizes = [8, 16], strides = [1, 1]} : vector<128x96xf32> to vector<8x16xf32>
    %317 = vector.extract_strided_slice %18 {offsets = [56, 64], sizes = [8, 16], strides = [1, 1]} : vector<128x96xf32> to vector<8x16xf32>
    %cst_85 = arith.constant dense<0.000000e+00> : vector<8x8xf32>
    %318 = tpu.matmul %315, %316, %cst_85 {dimension_numbers = #tpu.dot_dimension_numbers<[1], [1], [0], [0], [0, 0, 1, 0], [], []>} : vector<8x16xf32>, vector<8x16xf32>, vector<8x8xf32> -> vector<8x8xf32>
    %319 = vector.broadcast %313 : vector<1x8xf32> to vector<8x8xf32>
    %320 = arith.addf %318, %319 : vector<8x8xf32>
    %cst_86 = arith.constant dense<0xFF800000> : vector<8xf32>
    %321 = vector.multi_reduction <maximumf>, %320, %cst_86 [1] : vector<8x8xf32> to vector<8xf32>
    %322 = vector.shape_cast %321 : vector<8xf32> to vector<8x1xf32>
    %323 = vector.broadcast %322 : vector<8x1xf32> to vector<8x8xf32>
    %324 = arith.subf %320, %323 : vector<8x8xf32>
    %325 = math.exp %324 : vector<8x8xf32>
    %cst_87 = arith.constant dense<0.000000e+00> : vector<8xf32>
    %326 = vector.multi_reduction <add>, %325, %cst_87 [1] : vector<8x8xf32> to vector<8xf32>
    %327 = vector.shape_cast %326 : vector<8xf32> to vector<8x1xf32>
    %328 = tpu.reciprocal %327 {approx = true} : vector<8x1xf32> -> vector<8x1xf32>
    %329 = vector.broadcast %328 : vector<8x1xf32> to vector<8x8xf32>
    %330 = arith.mulf %325, %329 : vector<8x8xf32>
    %cst_88 = arith.constant dense<0.000000e+00> : vector<8x16xf32>
    %331 = tpu.matmul %330, %317, %cst_88 {dimension_numbers = #tpu.dot_dimension_numbers<[1], [0], [0], [1], [0, 0, 1, 1], [], []>} : vector<8x8xf32>, vector<8x16xf32>, vector<8x16xf32> -> vector<8x16xf32>
    %332 = vector.extract_strided_slice %5 {offsets = [0, 0], sizes = [16, 32], strides = [1, 1]} : vector<32x32xf32> to vector<16x32xf32>
    %cst_89 = arith.constant dense<0.000000e+00> : vector<8x32xf32>
    %333 = tpu.matmul %331, %332, %cst_89 {dimension_numbers = #tpu.dot_dimension_numbers<[1], [0], [0], [1], [0, 0, 1, 1], [], []>} : vector<8x16xf32>, vector<16x32xf32>, vector<8x32xf32> -> vector<8x32xf32>
    %334 = arith.addf %314, %333 : vector<8x32xf32>
    %335 = vector.extract_strided_slice %18 {offsets = [56, 16], sizes = [8, 16], strides = [1, 1]} : vector<128x96xf32> to vector<8x16xf32>
    %336 = vector.extract_strided_slice %18 {offsets = [56, 48], sizes = [8, 16], strides = [1, 1]} : vector<128x96xf32> to vector<8x16xf32>
    %337 = vector.extract_strided_slice %18 {offsets = [56, 80], sizes = [8, 16], strides = [1, 1]} : vector<128x96xf32> to vector<8x16xf32>
    %cst_90 = arith.constant dense<0.000000e+00> : vector<8x8xf32>
    %338 = tpu.matmul %335, %336, %cst_90 {dimension_numbers = #tpu.dot_dimension_numbers<[1], [1], [0], [0], [0, 0, 1, 0], [], []>} : vector<8x16xf32>, vector<8x16xf32>, vector<8x8xf32> -> vector<8x8xf32>
    %339 = vector.broadcast %313 : vector<1x8xf32> to vector<8x8xf32>
    %340 = arith.addf %338, %339 : vector<8x8xf32>
    %cst_91 = arith.constant dense<0xFF800000> : vector<8xf32>
    %341 = vector.multi_reduction <maximumf>, %340, %cst_91 [1] : vector<8x8xf32> to vector<8xf32>
    %342 = vector.shape_cast %341 : vector<8xf32> to vector<8x1xf32>
    %343 = vector.broadcast %342 : vector<8x1xf32> to vector<8x8xf32>
    %344 = arith.subf %340, %343 : vector<8x8xf32>
    %345 = math.exp %344 : vector<8x8xf32>
    %cst_92 = arith.constant dense<0.000000e+00> : vector<8xf32>
    %346 = vector.multi_reduction <add>, %345, %cst_92 [1] : vector<8x8xf32> to vector<8xf32>
    %347 = vector.shape_cast %346 : vector<8xf32> to vector<8x1xf32>
    %348 = tpu.reciprocal %347 {approx = true} : vector<8x1xf32> -> vector<8x1xf32>
    %349 = vector.broadcast %348 : vector<8x1xf32> to vector<8x8xf32>
    %350 = arith.mulf %345, %349 : vector<8x8xf32>
    %cst_93 = arith.constant dense<0.000000e+00> : vector<8x16xf32>
    %351 = tpu.matmul %350, %337, %cst_93 {dimension_numbers = #tpu.dot_dimension_numbers<[1], [0], [0], [1], [0, 0, 1, 1], [], []>} : vector<8x8xf32>, vector<8x16xf32>, vector<8x16xf32> -> vector<8x16xf32>
    %352 = vector.extract_strided_slice %5 {offsets = [16, 0], sizes = [16, 32], strides = [1, 1]} : vector<32x32xf32> to vector<16x32xf32>
    %cst_94 = arith.constant dense<0.000000e+00> : vector<8x32xf32>
    %353 = tpu.matmul %351, %352, %cst_94 {dimension_numbers = #tpu.dot_dimension_numbers<[1], [0], [0], [1], [0, 0, 1, 1], [], []>} : vector<8x16xf32>, vector<16x32xf32>, vector<8x32xf32> -> vector<8x32xf32>
    %354 = arith.addf %334, %353 : vector<8x32xf32>
    %355 = vector.extract_strided_slice %1 {offsets = [8, 0], sizes = [1, 8], strides = [1, 1]} : vector<16x8xf32> to vector<1x8xf32>
    %cst_95 = arith.constant 0.000000e+00 : f32
    %356 = vector.broadcast %cst_95 : f32 to vector<8x32xf32>
    %357 = vector.extract_strided_slice %18 {offsets = [64, 0], sizes = [8, 16], strides = [1, 1]} : vector<128x96xf32> to vector<8x16xf32>
    %358 = vector.extract_strided_slice %18 {offsets = [64, 32], sizes = [8, 16], strides = [1, 1]} : vector<128x96xf32> to vector<8x16xf32>
    %359 = vector.extract_strided_slice %18 {offsets = [64, 64], sizes = [8, 16], strides = [1, 1]} : vector<128x96xf32> to vector<8x16xf32>
    %cst_96 = arith.constant dense<0.000000e+00> : vector<8x8xf32>
    %360 = tpu.matmul %357, %358, %cst_96 {dimension_numbers = #tpu.dot_dimension_numbers<[1], [1], [0], [0], [0, 0, 1, 0], [], []>} : vector<8x16xf32>, vector<8x16xf32>, vector<8x8xf32> -> vector<8x8xf32>
    %361 = vector.broadcast %355 : vector<1x8xf32> to vector<8x8xf32>
    %362 = arith.addf %360, %361 : vector<8x8xf32>
    %cst_97 = arith.constant dense<0xFF800000> : vector<8xf32>
    %363 = vector.multi_reduction <maximumf>, %362, %cst_97 [1] : vector<8x8xf32> to vector<8xf32>
    %364 = vector.shape_cast %363 : vector<8xf32> to vector<8x1xf32>
    %365 = vector.broadcast %364 : vector<8x1xf32> to vector<8x8xf32>
    %366 = arith.subf %362, %365 : vector<8x8xf32>
    %367 = math.exp %366 : vector<8x8xf32>
    %cst_98 = arith.constant dense<0.000000e+00> : vector<8xf32>
    %368 = vector.multi_reduction <add>, %367, %cst_98 [1] : vector<8x8xf32> to vector<8xf32>
    %369 = vector.shape_cast %368 : vector<8xf32> to vector<8x1xf32>
    %370 = tpu.reciprocal %369 {approx = true} : vector<8x1xf32> -> vector<8x1xf32>
    %371 = vector.broadcast %370 : vector<8x1xf32> to vector<8x8xf32>
    %372 = arith.mulf %367, %371 : vector<8x8xf32>
    %cst_99 = arith.constant dense<0.000000e+00> : vector<8x16xf32>
    %373 = tpu.matmul %372, %359, %cst_99 {dimension_numbers = #tpu.dot_dimension_numbers<[1], [0], [0], [1], [0, 0, 1, 1], [], []>} : vector<8x8xf32>, vector<8x16xf32>, vector<8x16xf32> -> vector<8x16xf32>
    %374 = vector.extract_strided_slice %5 {offsets = [0, 0], sizes = [16, 32], strides = [1, 1]} : vector<32x32xf32> to vector<16x32xf32>
    %cst_100 = arith.constant dense<0.000000e+00> : vector<8x32xf32>
    %375 = tpu.matmul %373, %374, %cst_100 {dimension_numbers = #tpu.dot_dimension_numbers<[1], [0], [0], [1], [0, 0, 1, 1], [], []>} : vector<8x16xf32>, vector<16x32xf32>, vector<8x32xf32> -> vector<8x32xf32>
    %376 = arith.addf %356, %375 : vector<8x32xf32>
    %377 = vector.extract_strided_slice %18 {offsets = [64, 16], sizes = [8, 16], strides = [1, 1]} : vector<128x96xf32> to vector<8x16xf32>
    %378 = vector.extract_strided_slice %18 {offsets = [64, 48], sizes = [8, 16], strides = [1, 1]} : vector<128x96xf32> to vector<8x16xf32>
    %379 = vector.extract_strided_slice %18 {offsets = [64, 80], sizes = [8, 16], strides = [1, 1]} : vector<128x96xf32> to vector<8x16xf32>
    %cst_101 = arith.constant dense<0.000000e+00> : vector<8x8xf32>
    %380 = tpu.matmul %377, %378, %cst_101 {dimension_numbers = #tpu.dot_dimension_numbers<[1], [1], [0], [0], [0, 0, 1, 0], [], []>} : vector<8x16xf32>, vector<8x16xf32>, vector<8x8xf32> -> vector<8x8xf32>
    %381 = vector.broadcast %355 : vector<1x8xf32> to vector<8x8xf32>
    %382 = arith.addf %380, %381 : vector<8x8xf32>
    %cst_102 = arith.constant dense<0xFF800000> : vector<8xf32>
    %383 = vector.multi_reduction <maximumf>, %382, %cst_102 [1] : vector<8x8xf32> to vector<8xf32>
    %384 = vector.shape_cast %383 : vector<8xf32> to vector<8x1xf32>
    %385 = vector.broadcast %384 : vector<8x1xf32> to vector<8x8xf32>
    %386 = arith.subf %382, %385 : vector<8x8xf32>
    %387 = math.exp %386 : vector<8x8xf32>
    %cst_103 = arith.constant dense<0.000000e+00> : vector<8xf32>
    %388 = vector.multi_reduction <add>, %387, %cst_103 [1] : vector<8x8xf32> to vector<8xf32>
    %389 = vector.shape_cast %388 : vector<8xf32> to vector<8x1xf32>
    %390 = tpu.reciprocal %389 {approx = true} : vector<8x1xf32> -> vector<8x1xf32>
    %391 = vector.broadcast %390 : vector<8x1xf32> to vector<8x8xf32>
    %392 = arith.mulf %387, %391 : vector<8x8xf32>
    %cst_104 = arith.constant dense<0.000000e+00> : vector<8x16xf32>
    %393 = tpu.matmul %392, %379, %cst_104 {dimension_numbers = #tpu.dot_dimension_numbers<[1], [0], [0], [1], [0, 0, 1, 1], [], []>} : vector<8x8xf32>, vector<8x16xf32>, vector<8x16xf32> -> vector<8x16xf32>
    %394 = vector.extract_strided_slice %5 {offsets = [16, 0], sizes = [16, 32], strides = [1, 1]} : vector<32x32xf32> to vector<16x32xf32>
    %cst_105 = arith.constant dense<0.000000e+00> : vector<8x32xf32>
    %395 = tpu.matmul %393, %394, %cst_105 {dimension_numbers = #tpu.dot_dimension_numbers<[1], [0], [0], [1], [0, 0, 1, 1], [], []>} : vector<8x16xf32>, vector<16x32xf32>, vector<8x32xf32> -> vector<8x32xf32>
    %396 = arith.addf %376, %395 : vector<8x32xf32>
    %397 = vector.extract_strided_slice %1 {offsets = [9, 0], sizes = [1, 8], strides = [1, 1]} : vector<16x8xf32> to vector<1x8xf32>
    %cst_106 = arith.constant 0.000000e+00 : f32
    %398 = vector.broadcast %cst_106 : f32 to vector<8x32xf32>
    %399 = vector.extract_strided_slice %18 {offsets = [72, 0], sizes = [8, 16], strides = [1, 1]} : vector<128x96xf32> to vector<8x16xf32>
    %400 = vector.extract_strided_slice %18 {offsets = [72, 32], sizes = [8, 16], strides = [1, 1]} : vector<128x96xf32> to vector<8x16xf32>
    %401 = vector.extract_strided_slice %18 {offsets = [72, 64], sizes = [8, 16], strides = [1, 1]} : vector<128x96xf32> to vector<8x16xf32>
    %cst_107 = arith.constant dense<0.000000e+00> : vector<8x8xf32>
    %402 = tpu.matmul %399, %400, %cst_107 {dimension_numbers = #tpu.dot_dimension_numbers<[1], [1], [0], [0], [0, 0, 1, 0], [], []>} : vector<8x16xf32>, vector<8x16xf32>, vector<8x8xf32> -> vector<8x8xf32>
    %403 = vector.broadcast %397 : vector<1x8xf32> to vector<8x8xf32>
    %404 = arith.addf %402, %403 : vector<8x8xf32>
    %cst_108 = arith.constant dense<0xFF800000> : vector<8xf32>
    %405 = vector.multi_reduction <maximumf>, %404, %cst_108 [1] : vector<8x8xf32> to vector<8xf32>
    %406 = vector.shape_cast %405 : vector<8xf32> to vector<8x1xf32>
    %407 = vector.broadcast %406 : vector<8x1xf32> to vector<8x8xf32>
    %408 = arith.subf %404, %407 : vector<8x8xf32>
    %409 = math.exp %408 : vector<8x8xf32>
    %cst_109 = arith.constant dense<0.000000e+00> : vector<8xf32>
    %410 = vector.multi_reduction <add>, %409, %cst_109 [1] : vector<8x8xf32> to vector<8xf32>
    %411 = vector.shape_cast %410 : vector<8xf32> to vector<8x1xf32>
    %412 = tpu.reciprocal %411 {approx = true} : vector<8x1xf32> -> vector<8x1xf32>
    %413 = vector.broadcast %412 : vector<8x1xf32> to vector<8x8xf32>
    %414 = arith.mulf %409, %413 : vector<8x8xf32>
    %cst_110 = arith.constant dense<0.000000e+00> : vector<8x16xf32>
    %415 = tpu.matmul %414, %401, %cst_110 {dimension_numbers = #tpu.dot_dimension_numbers<[1], [0], [0], [1], [0, 0, 1, 1], [], []>} : vector<8x8xf32>, vector<8x16xf32>, vector<8x16xf32> -> vector<8x16xf32>
    %416 = vector.extract_strided_slice %5 {offsets = [0, 0], sizes = [16, 32], strides = [1, 1]} : vector<32x32xf32> to vector<16x32xf32>
    %cst_111 = arith.constant dense<0.000000e+00> : vector<8x32xf32>
    %417 = tpu.matmul %415, %416, %cst_111 {dimension_numbers = #tpu.dot_dimension_numbers<[1], [0], [0], [1], [0, 0, 1, 1], [], []>} : vector<8x16xf32>, vector<16x32xf32>, vector<8x32xf32> -> vector<8x32xf32>
    %418 = arith.addf %398, %417 : vector<8x32xf32>
    %419 = vector.extract_strided_slice %18 {offsets = [72, 16], sizes = [8, 16], strides = [1, 1]} : vector<128x96xf32> to vector<8x16xf32>
    %420 = vector.extract_strided_slice %18 {offsets = [72, 48], sizes = [8, 16], strides = [1, 1]} : vector<128x96xf32> to vector<8x16xf32>
    %421 = vector.extract_strided_slice %18 {offsets = [72, 80], sizes = [8, 16], strides = [1, 1]} : vector<128x96xf32> to vector<8x16xf32>
    %cst_112 = arith.constant dense<0.000000e+00> : vector<8x8xf32>
    %422 = tpu.matmul %419, %420, %cst_112 {dimension_numbers = #tpu.dot_dimension_numbers<[1], [1], [0], [0], [0, 0, 1, 0], [], []>} : vector<8x16xf32>, vector<8x16xf32>, vector<8x8xf32> -> vector<8x8xf32>
    %423 = vector.broadcast %397 : vector<1x8xf32> to vector<8x8xf32>
    %424 = arith.addf %422, %423 : vector<8x8xf32>
    %cst_113 = arith.constant dense<0xFF800000> : vector<8xf32>
    %425 = vector.multi_reduction <maximumf>, %424, %cst_113 [1] : vector<8x8xf32> to vector<8xf32>
    %426 = vector.shape_cast %425 : vector<8xf32> to vector<8x1xf32>
    %427 = vector.broadcast %426 : vector<8x1xf32> to vector<8x8xf32>
    %428 = arith.subf %424, %427 : vector<8x8xf32>
    %429 = math.exp %428 : vector<8x8xf32>
    %cst_114 = arith.constant dense<0.000000e+00> : vector<8xf32>
    %430 = vector.multi_reduction <add>, %429, %cst_114 [1] : vector<8x8xf32> to vector<8xf32>
    %431 = vector.shape_cast %430 : vector<8xf32> to vector<8x1xf32>
    %432 = tpu.reciprocal %431 {approx = true} : vector<8x1xf32> -> vector<8x1xf32>
    %433 = vector.broadcast %432 : vector<8x1xf32> to vector<8x8xf32>
    %434 = arith.mulf %429, %433 : vector<8x8xf32>
    %cst_115 = arith.constant dense<0.000000e+00> : vector<8x16xf32>
    %435 = tpu.matmul %434, %421, %cst_115 {dimension_numbers = #tpu.dot_dimension_numbers<[1], [0], [0], [1], [0, 0, 1, 1], [], []>} : vector<8x8xf32>, vector<8x16xf32>, vector<8x16xf32> -> vector<8x16xf32>
    %436 = vector.extract_strided_slice %5 {offsets = [16, 0], sizes = [16, 32], strides = [1, 1]} : vector<32x32xf32> to vector<16x32xf32>
    %cst_116 = arith.constant dense<0.000000e+00> : vector<8x32xf32>
    %437 = tpu.matmul %435, %436, %cst_116 {dimension_numbers = #tpu.dot_dimension_numbers<[1], [0], [0], [1], [0, 0, 1, 1], [], []>} : vector<8x16xf32>, vector<16x32xf32>, vector<8x32xf32> -> vector<8x32xf32>
    %438 = arith.addf %418, %437 : vector<8x32xf32>
    %439 = vector.extract_strided_slice %1 {offsets = [10, 0], sizes = [1, 8], strides = [1, 1]} : vector<16x8xf32> to vector<1x8xf32>
    %cst_117 = arith.constant 0.000000e+00 : f32
    %440 = vector.broadcast %cst_117 : f32 to vector<8x32xf32>
    %441 = vector.extract_strided_slice %18 {offsets = [80, 0], sizes = [8, 16], strides = [1, 1]} : vector<128x96xf32> to vector<8x16xf32>
    %442 = vector.extract_strided_slice %18 {offsets = [80, 32], sizes = [8, 16], strides = [1, 1]} : vector<128x96xf32> to vector<8x16xf32>
    %443 = vector.extract_strided_slice %18 {offsets = [80, 64], sizes = [8, 16], strides = [1, 1]} : vector<128x96xf32> to vector<8x16xf32>
    %cst_118 = arith.constant dense<0.000000e+00> : vector<8x8xf32>
    %444 = tpu.matmul %441, %442, %cst_118 {dimension_numbers = #tpu.dot_dimension_numbers<[1], [1], [0], [0], [0, 0, 1, 0], [], []>} : vector<8x16xf32>, vector<8x16xf32>, vector<8x8xf32> -> vector<8x8xf32>
    %445 = vector.broadcast %439 : vector<1x8xf32> to vector<8x8xf32>
    %446 = arith.addf %444, %445 : vector<8x8xf32>
    %cst_119 = arith.constant dense<0xFF800000> : vector<8xf32>
    %447 = vector.multi_reduction <maximumf>, %446, %cst_119 [1] : vector<8x8xf32> to vector<8xf32>
    %448 = vector.shape_cast %447 : vector<8xf32> to vector<8x1xf32>
    %449 = vector.broadcast %448 : vector<8x1xf32> to vector<8x8xf32>
    %450 = arith.subf %446, %449 : vector<8x8xf32>
    %451 = math.exp %450 : vector<8x8xf32>
    %cst_120 = arith.constant dense<0.000000e+00> : vector<8xf32>
    %452 = vector.multi_reduction <add>, %451, %cst_120 [1] : vector<8x8xf32> to vector<8xf32>
    %453 = vector.shape_cast %452 : vector<8xf32> to vector<8x1xf32>
    %454 = tpu.reciprocal %453 {approx = true} : vector<8x1xf32> -> vector<8x1xf32>
    %455 = vector.broadcast %454 : vector<8x1xf32> to vector<8x8xf32>
    %456 = arith.mulf %451, %455 : vector<8x8xf32>
    %cst_121 = arith.constant dense<0.000000e+00> : vector<8x16xf32>
    %457 = tpu.matmul %456, %443, %cst_121 {dimension_numbers = #tpu.dot_dimension_numbers<[1], [0], [0], [1], [0, 0, 1, 1], [], []>} : vector<8x8xf32>, vector<8x16xf32>, vector<8x16xf32> -> vector<8x16xf32>
    %458 = vector.extract_strided_slice %5 {offsets = [0, 0], sizes = [16, 32], strides = [1, 1]} : vector<32x32xf32> to vector<16x32xf32>
    %cst_122 = arith.constant dense<0.000000e+00> : vector<8x32xf32>
    %459 = tpu.matmul %457, %458, %cst_122 {dimension_numbers = #tpu.dot_dimension_numbers<[1], [0], [0], [1], [0, 0, 1, 1], [], []>} : vector<8x16xf32>, vector<16x32xf32>, vector<8x32xf32> -> vector<8x32xf32>
    %460 = arith.addf %440, %459 : vector<8x32xf32>
    %461 = vector.extract_strided_slice %18 {offsets = [80, 16], sizes = [8, 16], strides = [1, 1]} : vector<128x96xf32> to vector<8x16xf32>
    %462 = vector.extract_strided_slice %18 {offsets = [80, 48], sizes = [8, 16], strides = [1, 1]} : vector<128x96xf32> to vector<8x16xf32>
    %463 = vector.extract_strided_slice %18 {offsets = [80, 80], sizes = [8, 16], strides = [1, 1]} : vector<128x96xf32> to vector<8x16xf32>
    %cst_123 = arith.constant dense<0.000000e+00> : vector<8x8xf32>
    %464 = tpu.matmul %461, %462, %cst_123 {dimension_numbers = #tpu.dot_dimension_numbers<[1], [1], [0], [0], [0, 0, 1, 0], [], []>} : vector<8x16xf32>, vector<8x16xf32>, vector<8x8xf32> -> vector<8x8xf32>
    %465 = vector.broadcast %439 : vector<1x8xf32> to vector<8x8xf32>
    %466 = arith.addf %464, %465 : vector<8x8xf32>
    %cst_124 = arith.constant dense<0xFF800000> : vector<8xf32>
    %467 = vector.multi_reduction <maximumf>, %466, %cst_124 [1] : vector<8x8xf32> to vector<8xf32>
    %468 = vector.shape_cast %467 : vector<8xf32> to vector<8x1xf32>
    %469 = vector.broadcast %468 : vector<8x1xf32> to vector<8x8xf32>
    %470 = arith.subf %466, %469 : vector<8x8xf32>
    %471 = math.exp %470 : vector<8x8xf32>
    %cst_125 = arith.constant dense<0.000000e+00> : vector<8xf32>
    %472 = vector.multi_reduction <add>, %471, %cst_125 [1] : vector<8x8xf32> to vector<8xf32>
    %473 = vector.shape_cast %472 : vector<8xf32> to vector<8x1xf32>
    %474 = tpu.reciprocal %473 {approx = true} : vector<8x1xf32> -> vector<8x1xf32>
    %475 = vector.broadcast %474 : vector<8x1xf32> to vector<8x8xf32>
    %476 = arith.mulf %471, %475 : vector<8x8xf32>
    %cst_126 = arith.constant dense<0.000000e+00> : vector<8x16xf32>
    %477 = tpu.matmul %476, %463, %cst_126 {dimension_numbers = #tpu.dot_dimension_numbers<[1], [0], [0], [1], [0, 0, 1, 1], [], []>} : vector<8x8xf32>, vector<8x16xf32>, vector<8x16xf32> -> vector<8x16xf32>
    %478 = vector.extract_strided_slice %5 {offsets = [16, 0], sizes = [16, 32], strides = [1, 1]} : vector<32x32xf32> to vector<16x32xf32>
    %cst_127 = arith.constant dense<0.000000e+00> : vector<8x32xf32>
    %479 = tpu.matmul %477, %478, %cst_127 {dimension_numbers = #tpu.dot_dimension_numbers<[1], [0], [0], [1], [0, 0, 1, 1], [], []>} : vector<8x16xf32>, vector<16x32xf32>, vector<8x32xf32> -> vector<8x32xf32>
    %480 = arith.addf %460, %479 : vector<8x32xf32>
    %481 = vector.extract_strided_slice %1 {offsets = [11, 0], sizes = [1, 8], strides = [1, 1]} : vector<16x8xf32> to vector<1x8xf32>
    %cst_128 = arith.constant 0.000000e+00 : f32
    %482 = vector.broadcast %cst_128 : f32 to vector<8x32xf32>
    %483 = vector.extract_strided_slice %18 {offsets = [88, 0], sizes = [8, 16], strides = [1, 1]} : vector<128x96xf32> to vector<8x16xf32>
    %484 = vector.extract_strided_slice %18 {offsets = [88, 32], sizes = [8, 16], strides = [1, 1]} : vector<128x96xf32> to vector<8x16xf32>
    %485 = vector.extract_strided_slice %18 {offsets = [88, 64], sizes = [8, 16], strides = [1, 1]} : vector<128x96xf32> to vector<8x16xf32>
    %cst_129 = arith.constant dense<0.000000e+00> : vector<8x8xf32>
    %486 = tpu.matmul %483, %484, %cst_129 {dimension_numbers = #tpu.dot_dimension_numbers<[1], [1], [0], [0], [0, 0, 1, 0], [], []>} : vector<8x16xf32>, vector<8x16xf32>, vector<8x8xf32> -> vector<8x8xf32>
    %487 = vector.broadcast %481 : vector<1x8xf32> to vector<8x8xf32>
    %488 = arith.addf %486, %487 : vector<8x8xf32>
    %cst_130 = arith.constant dense<0xFF800000> : vector<8xf32>
    %489 = vector.multi_reduction <maximumf>, %488, %cst_130 [1] : vector<8x8xf32> to vector<8xf32>
    %490 = vector.shape_cast %489 : vector<8xf32> to vector<8x1xf32>
    %491 = vector.broadcast %490 : vector<8x1xf32> to vector<8x8xf32>
    %492 = arith.subf %488, %491 : vector<8x8xf32>
    %493 = math.exp %492 : vector<8x8xf32>
    %cst_131 = arith.constant dense<0.000000e+00> : vector<8xf32>
    %494 = vector.multi_reduction <add>, %493, %cst_131 [1] : vector<8x8xf32> to vector<8xf32>
    %495 = vector.shape_cast %494 : vector<8xf32> to vector<8x1xf32>
    %496 = tpu.reciprocal %495 {approx = true} : vector<8x1xf32> -> vector<8x1xf32>
    %497 = vector.broadcast %496 : vector<8x1xf32> to vector<8x8xf32>
    %498 = arith.mulf %493, %497 : vector<8x8xf32>
    %cst_132 = arith.constant dense<0.000000e+00> : vector<8x16xf32>
    %499 = tpu.matmul %498, %485, %cst_132 {dimension_numbers = #tpu.dot_dimension_numbers<[1], [0], [0], [1], [0, 0, 1, 1], [], []>} : vector<8x8xf32>, vector<8x16xf32>, vector<8x16xf32> -> vector<8x16xf32>
    %500 = vector.extract_strided_slice %5 {offsets = [0, 0], sizes = [16, 32], strides = [1, 1]} : vector<32x32xf32> to vector<16x32xf32>
    %cst_133 = arith.constant dense<0.000000e+00> : vector<8x32xf32>
    %501 = tpu.matmul %499, %500, %cst_133 {dimension_numbers = #tpu.dot_dimension_numbers<[1], [0], [0], [1], [0, 0, 1, 1], [], []>} : vector<8x16xf32>, vector<16x32xf32>, vector<8x32xf32> -> vector<8x32xf32>
    %502 = arith.addf %482, %501 : vector<8x32xf32>
    %503 = vector.extract_strided_slice %18 {offsets = [88, 16], sizes = [8, 16], strides = [1, 1]} : vector<128x96xf32> to vector<8x16xf32>
    %504 = vector.extract_strided_slice %18 {offsets = [88, 48], sizes = [8, 16], strides = [1, 1]} : vector<128x96xf32> to vector<8x16xf32>
    %505 = vector.extract_strided_slice %18 {offsets = [88, 80], sizes = [8, 16], strides = [1, 1]} : vector<128x96xf32> to vector<8x16xf32>
    %cst_134 = arith.constant dense<0.000000e+00> : vector<8x8xf32>
    %506 = tpu.matmul %503, %504, %cst_134 {dimension_numbers = #tpu.dot_dimension_numbers<[1], [1], [0], [0], [0, 0, 1, 0], [], []>} : vector<8x16xf32>, vector<8x16xf32>, vector<8x8xf32> -> vector<8x8xf32>
    %507 = vector.broadcast %481 : vector<1x8xf32> to vector<8x8xf32>
    %508 = arith.addf %506, %507 : vector<8x8xf32>
    %cst_135 = arith.constant dense<0xFF800000> : vector<8xf32>
    %509 = vector.multi_reduction <maximumf>, %508, %cst_135 [1] : vector<8x8xf32> to vector<8xf32>
    %510 = vector.shape_cast %509 : vector<8xf32> to vector<8x1xf32>
    %511 = vector.broadcast %510 : vector<8x1xf32> to vector<8x8xf32>
    %512 = arith.subf %508, %511 : vector<8x8xf32>
    %513 = math.exp %512 : vector<8x8xf32>
    %cst_136 = arith.constant dense<0.000000e+00> : vector<8xf32>
    %514 = vector.multi_reduction <add>, %513, %cst_136 [1] : vector<8x8xf32> to vector<8xf32>
    %515 = vector.shape_cast %514 : vector<8xf32> to vector<8x1xf32>
    %516 = tpu.reciprocal %515 {approx = true} : vector<8x1xf32> -> vector<8x1xf32>
    %517 = vector.broadcast %516 : vector<8x1xf32> to vector<8x8xf32>
    %518 = arith.mulf %513, %517 : vector<8x8xf32>
    %cst_137 = arith.constant dense<0.000000e+00> : vector<8x16xf32>
    %519 = tpu.matmul %518, %505, %cst_137 {dimension_numbers = #tpu.dot_dimension_numbers<[1], [0], [0], [1], [0, 0, 1, 1], [], []>} : vector<8x8xf32>, vector<8x16xf32>, vector<8x16xf32> -> vector<8x16xf32>
    %520 = vector.extract_strided_slice %5 {offsets = [16, 0], sizes = [16, 32], strides = [1, 1]} : vector<32x32xf32> to vector<16x32xf32>
    %cst_138 = arith.constant dense<0.000000e+00> : vector<8x32xf32>
    %521 = tpu.matmul %519, %520, %cst_138 {dimension_numbers = #tpu.dot_dimension_numbers<[1], [0], [0], [1], [0, 0, 1, 1], [], []>} : vector<8x16xf32>, vector<16x32xf32>, vector<8x32xf32> -> vector<8x32xf32>
    %522 = arith.addf %502, %521 : vector<8x32xf32>
    %523 = vector.extract_strided_slice %1 {offsets = [12, 0], sizes = [1, 8], strides = [1, 1]} : vector<16x8xf32> to vector<1x8xf32>
    %cst_139 = arith.constant 0.000000e+00 : f32
    %524 = vector.broadcast %cst_139 : f32 to vector<8x32xf32>
    %525 = vector.extract_strided_slice %18 {offsets = [96, 0], sizes = [8, 16], strides = [1, 1]} : vector<128x96xf32> to vector<8x16xf32>
    %526 = vector.extract_strided_slice %18 {offsets = [96, 32], sizes = [8, 16], strides = [1, 1]} : vector<128x96xf32> to vector<8x16xf32>
    %527 = vector.extract_strided_slice %18 {offsets = [96, 64], sizes = [8, 16], strides = [1, 1]} : vector<128x96xf32> to vector<8x16xf32>
    %cst_140 = arith.constant dense<0.000000e+00> : vector<8x8xf32>
    %528 = tpu.matmul %525, %526, %cst_140 {dimension_numbers = #tpu.dot_dimension_numbers<[1], [1], [0], [0], [0, 0, 1, 0], [], []>} : vector<8x16xf32>, vector<8x16xf32>, vector<8x8xf32> -> vector<8x8xf32>
    %529 = vector.broadcast %523 : vector<1x8xf32> to vector<8x8xf32>
    %530 = arith.addf %528, %529 : vector<8x8xf32>
    %cst_141 = arith.constant dense<0xFF800000> : vector<8xf32>
    %531 = vector.multi_reduction <maximumf>, %530, %cst_141 [1] : vector<8x8xf32> to vector<8xf32>
    %532 = vector.shape_cast %531 : vector<8xf32> to vector<8x1xf32>
    %533 = vector.broadcast %532 : vector<8x1xf32> to vector<8x8xf32>
    %534 = arith.subf %530, %533 : vector<8x8xf32>
    %535 = math.exp %534 : vector<8x8xf32>
    %cst_142 = arith.constant dense<0.000000e+00> : vector<8xf32>
    %536 = vector.multi_reduction <add>, %535, %cst_142 [1] : vector<8x8xf32> to vector<8xf32>
    %537 = vector.shape_cast %536 : vector<8xf32> to vector<8x1xf32>
    %538 = tpu.reciprocal %537 {approx = true} : vector<8x1xf32> -> vector<8x1xf32>
    %539 = vector.broadcast %538 : vector<8x1xf32> to vector<8x8xf32>
    %540 = arith.mulf %535, %539 : vector<8x8xf32>
    %cst_143 = arith.constant dense<0.000000e+00> : vector<8x16xf32>
    %541 = tpu.matmul %540, %527, %cst_143 {dimension_numbers = #tpu.dot_dimension_numbers<[1], [0], [0], [1], [0, 0, 1, 1], [], []>} : vector<8x8xf32>, vector<8x16xf32>, vector<8x16xf32> -> vector<8x16xf32>
    %542 = vector.extract_strided_slice %5 {offsets = [0, 0], sizes = [16, 32], strides = [1, 1]} : vector<32x32xf32> to vector<16x32xf32>
    %cst_144 = arith.constant dense<0.000000e+00> : vector<8x32xf32>
    %543 = tpu.matmul %541, %542, %cst_144 {dimension_numbers = #tpu.dot_dimension_numbers<[1], [0], [0], [1], [0, 0, 1, 1], [], []>} : vector<8x16xf32>, vector<16x32xf32>, vector<8x32xf32> -> vector<8x32xf32>
    %544 = arith.addf %524, %543 : vector<8x32xf32>
    %545 = vector.extract_strided_slice %18 {offsets = [96, 16], sizes = [8, 16], strides = [1, 1]} : vector<128x96xf32> to vector<8x16xf32>
    %546 = vector.extract_strided_slice %18 {offsets = [96, 48], sizes = [8, 16], strides = [1, 1]} : vector<128x96xf32> to vector<8x16xf32>
    %547 = vector.extract_strided_slice %18 {offsets = [96, 80], sizes = [8, 16], strides = [1, 1]} : vector<128x96xf32> to vector<8x16xf32>
    %cst_145 = arith.constant dense<0.000000e+00> : vector<8x8xf32>
    %548 = tpu.matmul %545, %546, %cst_145 {dimension_numbers = #tpu.dot_dimension_numbers<[1], [1], [0], [0], [0, 0, 1, 0], [], []>} : vector<8x16xf32>, vector<8x16xf32>, vector<8x8xf32> -> vector<8x8xf32>
    %549 = vector.broadcast %523 : vector<1x8xf32> to vector<8x8xf32>
    %550 = arith.addf %548, %549 : vector<8x8xf32>
    %cst_146 = arith.constant dense<0xFF800000> : vector<8xf32>
    %551 = vector.multi_reduction <maximumf>, %550, %cst_146 [1] : vector<8x8xf32> to vector<8xf32>
    %552 = vector.shape_cast %551 : vector<8xf32> to vector<8x1xf32>
    %553 = vector.broadcast %552 : vector<8x1xf32> to vector<8x8xf32>
    %554 = arith.subf %550, %553 : vector<8x8xf32>
    %555 = math.exp %554 : vector<8x8xf32>
    %cst_147 = arith.constant dense<0.000000e+00> : vector<8xf32>
    %556 = vector.multi_reduction <add>, %555, %cst_147 [1] : vector<8x8xf32> to vector<8xf32>
    %557 = vector.shape_cast %556 : vector<8xf32> to vector<8x1xf32>
    %558 = tpu.reciprocal %557 {approx = true} : vector<8x1xf32> -> vector<8x1xf32>
    %559 = vector.broadcast %558 : vector<8x1xf32> to vector<8x8xf32>
    %560 = arith.mulf %555, %559 : vector<8x8xf32>
    %cst_148 = arith.constant dense<0.000000e+00> : vector<8x16xf32>
    %561 = tpu.matmul %560, %547, %cst_148 {dimension_numbers = #tpu.dot_dimension_numbers<[1], [0], [0], [1], [0, 0, 1, 1], [], []>} : vector<8x8xf32>, vector<8x16xf32>, vector<8x16xf32> -> vector<8x16xf32>
    %562 = vector.extract_strided_slice %5 {offsets = [16, 0], sizes = [16, 32], strides = [1, 1]} : vector<32x32xf32> to vector<16x32xf32>
    %cst_149 = arith.constant dense<0.000000e+00> : vector<8x32xf32>
    %563 = tpu.matmul %561, %562, %cst_149 {dimension_numbers = #tpu.dot_dimension_numbers<[1], [0], [0], [1], [0, 0, 1, 1], [], []>} : vector<8x16xf32>, vector<16x32xf32>, vector<8x32xf32> -> vector<8x32xf32>
    %564 = arith.addf %544, %563 : vector<8x32xf32>
    %565 = vector.extract_strided_slice %1 {offsets = [13, 0], sizes = [1, 8], strides = [1, 1]} : vector<16x8xf32> to vector<1x8xf32>
    %cst_150 = arith.constant 0.000000e+00 : f32
    %566 = vector.broadcast %cst_150 : f32 to vector<8x32xf32>
    %567 = vector.extract_strided_slice %18 {offsets = [104, 0], sizes = [8, 16], strides = [1, 1]} : vector<128x96xf32> to vector<8x16xf32>
    %568 = vector.extract_strided_slice %18 {offsets = [104, 32], sizes = [8, 16], strides = [1, 1]} : vector<128x96xf32> to vector<8x16xf32>
    %569 = vector.extract_strided_slice %18 {offsets = [104, 64], sizes = [8, 16], strides = [1, 1]} : vector<128x96xf32> to vector<8x16xf32>
    %cst_151 = arith.constant dense<0.000000e+00> : vector<8x8xf32>
    %570 = tpu.matmul %567, %568, %cst_151 {dimension_numbers = #tpu.dot_dimension_numbers<[1], [1], [0], [0], [0, 0, 1, 0], [], []>} : vector<8x16xf32>, vector<8x16xf32>, vector<8x8xf32> -> vector<8x8xf32>
    %571 = vector.broadcast %565 : vector<1x8xf32> to vector<8x8xf32>
    %572 = arith.addf %570, %571 : vector<8x8xf32>
    %cst_152 = arith.constant dense<0xFF800000> : vector<8xf32>
    %573 = vector.multi_reduction <maximumf>, %572, %cst_152 [1] : vector<8x8xf32> to vector<8xf32>
    %574 = vector.shape_cast %573 : vector<8xf32> to vector<8x1xf32>
    %575 = vector.broadcast %574 : vector<8x1xf32> to vector<8x8xf32>
    %576 = arith.subf %572, %575 : vector<8x8xf32>
    %577 = math.exp %576 : vector<8x8xf32>
    %cst_153 = arith.constant dense<0.000000e+00> : vector<8xf32>
    %578 = vector.multi_reduction <add>, %577, %cst_153 [1] : vector<8x8xf32> to vector<8xf32>
    %579 = vector.shape_cast %578 : vector<8xf32> to vector<8x1xf32>
    %580 = tpu.reciprocal %579 {approx = true} : vector<8x1xf32> -> vector<8x1xf32>
    %581 = vector.broadcast %580 : vector<8x1xf32> to vector<8x8xf32>
    %582 = arith.mulf %577, %581 : vector<8x8xf32>
    %cst_154 = arith.constant dense<0.000000e+00> : vector<8x16xf32>
    %583 = tpu.matmul %582, %569, %cst_154 {dimension_numbers = #tpu.dot_dimension_numbers<[1], [0], [0], [1], [0, 0, 1, 1], [], []>} : vector<8x8xf32>, vector<8x16xf32>, vector<8x16xf32> -> vector<8x16xf32>
    %584 = vector.extract_strided_slice %5 {offsets = [0, 0], sizes = [16, 32], strides = [1, 1]} : vector<32x32xf32> to vector<16x32xf32>
    %cst_155 = arith.constant dense<0.000000e+00> : vector<8x32xf32>
    %585 = tpu.matmul %583, %584, %cst_155 {dimension_numbers = #tpu.dot_dimension_numbers<[1], [0], [0], [1], [0, 0, 1, 1], [], []>} : vector<8x16xf32>, vector<16x32xf32>, vector<8x32xf32> -> vector<8x32xf32>
    %586 = arith.addf %566, %585 : vector<8x32xf32>
    %587 = vector.extract_strided_slice %18 {offsets = [104, 16], sizes = [8, 16], strides = [1, 1]} : vector<128x96xf32> to vector<8x16xf32>
    %588 = vector.extract_strided_slice %18 {offsets = [104, 48], sizes = [8, 16], strides = [1, 1]} : vector<128x96xf32> to vector<8x16xf32>
    %589 = vector.extract_strided_slice %18 {offsets = [104, 80], sizes = [8, 16], strides = [1, 1]} : vector<128x96xf32> to vector<8x16xf32>
    %cst_156 = arith.constant dense<0.000000e+00> : vector<8x8xf32>
    %590 = tpu.matmul %587, %588, %cst_156 {dimension_numbers = #tpu.dot_dimension_numbers<[1], [1], [0], [0], [0, 0, 1, 0], [], []>} : vector<8x16xf32>, vector<8x16xf32>, vector<8x8xf32> -> vector<8x8xf32>
    %591 = vector.broadcast %565 : vector<1x8xf32> to vector<8x8xf32>
    %592 = arith.addf %590, %591 : vector<8x8xf32>
    %cst_157 = arith.constant dense<0xFF800000> : vector<8xf32>
    %593 = vector.multi_reduction <maximumf>, %592, %cst_157 [1] : vector<8x8xf32> to vector<8xf32>
    %594 = vector.shape_cast %593 : vector<8xf32> to vector<8x1xf32>
    %595 = vector.broadcast %594 : vector<8x1xf32> to vector<8x8xf32>
    %596 = arith.subf %592, %595 : vector<8x8xf32>
    %597 = math.exp %596 : vector<8x8xf32>
    %cst_158 = arith.constant dense<0.000000e+00> : vector<8xf32>
    %598 = vector.multi_reduction <add>, %597, %cst_158 [1] : vector<8x8xf32> to vector<8xf32>
    %599 = vector.shape_cast %598 : vector<8xf32> to vector<8x1xf32>
    %600 = tpu.reciprocal %599 {approx = true} : vector<8x1xf32> -> vector<8x1xf32>
    %601 = vector.broadcast %600 : vector<8x1xf32> to vector<8x8xf32>
    %602 = arith.mulf %597, %601 : vector<8x8xf32>
    %cst_159 = arith.constant dense<0.000000e+00> : vector<8x16xf32>
    %603 = tpu.matmul %602, %589, %cst_159 {dimension_numbers = #tpu.dot_dimension_numbers<[1], [0], [0], [1], [0, 0, 1, 1], [], []>} : vector<8x8xf32>, vector<8x16xf32>, vector<8x16xf32> -> vector<8x16xf32>
    %604 = vector.extract_strided_slice %5 {offsets = [16, 0], sizes = [16, 32], strides = [1, 1]} : vector<32x32xf32> to vector<16x32xf32>
    %cst_160 = arith.constant dense<0.000000e+00> : vector<8x32xf32>
    %605 = tpu.matmul %603, %604, %cst_160 {dimension_numbers = #tpu.dot_dimension_numbers<[1], [0], [0], [1], [0, 0, 1, 1], [], []>} : vector<8x16xf32>, vector<16x32xf32>, vector<8x32xf32> -> vector<8x32xf32>
    %606 = arith.addf %586, %605 : vector<8x32xf32>
    %607 = vector.extract_strided_slice %1 {offsets = [14, 0], sizes = [1, 8], strides = [1, 1]} : vector<16x8xf32> to vector<1x8xf32>
    %cst_161 = arith.constant 0.000000e+00 : f32
    %608 = vector.broadcast %cst_161 : f32 to vector<8x32xf32>
    %609 = vector.extract_strided_slice %18 {offsets = [112, 0], sizes = [8, 16], strides = [1, 1]} : vector<128x96xf32> to vector<8x16xf32>
    %610 = vector.extract_strided_slice %18 {offsets = [112, 32], sizes = [8, 16], strides = [1, 1]} : vector<128x96xf32> to vector<8x16xf32>
    %611 = vector.extract_strided_slice %18 {offsets = [112, 64], sizes = [8, 16], strides = [1, 1]} : vector<128x96xf32> to vector<8x16xf32>
    %cst_162 = arith.constant dense<0.000000e+00> : vector<8x8xf32>
    %612 = tpu.matmul %609, %610, %cst_162 {dimension_numbers = #tpu.dot_dimension_numbers<[1], [1], [0], [0], [0, 0, 1, 0], [], []>} : vector<8x16xf32>, vector<8x16xf32>, vector<8x8xf32> -> vector<8x8xf32>
    %613 = vector.broadcast %607 : vector<1x8xf32> to vector<8x8xf32>
    %614 = arith.addf %612, %613 : vector<8x8xf32>
    %cst_163 = arith.constant dense<0xFF800000> : vector<8xf32>
    %615 = vector.multi_reduction <maximumf>, %614, %cst_163 [1] : vector<8x8xf32> to vector<8xf32>
    %616 = vector.shape_cast %615 : vector<8xf32> to vector<8x1xf32>
    %617 = vector.broadcast %616 : vector<8x1xf32> to vector<8x8xf32>
    %618 = arith.subf %614, %617 : vector<8x8xf32>
    %619 = math.exp %618 : vector<8x8xf32>
    %cst_164 = arith.constant dense<0.000000e+00> : vector<8xf32>
    %620 = vector.multi_reduction <add>, %619, %cst_164 [1] : vector<8x8xf32> to vector<8xf32>
    %621 = vector.shape_cast %620 : vector<8xf32> to vector<8x1xf32>
    %622 = tpu.reciprocal %621 {approx = true} : vector<8x1xf32> -> vector<8x1xf32>
    %623 = vector.broadcast %622 : vector<8x1xf32> to vector<8x8xf32>
    %624 = arith.mulf %619, %623 : vector<8x8xf32>
    %cst_165 = arith.constant dense<0.000000e+00> : vector<8x16xf32>
    %625 = tpu.matmul %624, %611, %cst_165 {dimension_numbers = #tpu.dot_dimension_numbers<[1], [0], [0], [1], [0, 0, 1, 1], [], []>} : vector<8x8xf32>, vector<8x16xf32>, vector<8x16xf32> -> vector<8x16xf32>
    %626 = vector.extract_strided_slice %5 {offsets = [0, 0], sizes = [16, 32], strides = [1, 1]} : vector<32x32xf32> to vector<16x32xf32>
    %cst_166 = arith.constant dense<0.000000e+00> : vector<8x32xf32>
    %627 = tpu.matmul %625, %626, %cst_166 {dimension_numbers = #tpu.dot_dimension_numbers<[1], [0], [0], [1], [0, 0, 1, 1], [], []>} : vector<8x16xf32>, vector<16x32xf32>, vector<8x32xf32> -> vector<8x32xf32>
    %628 = arith.addf %608, %627 : vector<8x32xf32>
    %629 = vector.extract_strided_slice %18 {offsets = [112, 16], sizes = [8, 16], strides = [1, 1]} : vector<128x96xf32> to vector<8x16xf32>
    %630 = vector.extract_strided_slice %18 {offsets = [112, 48], sizes = [8, 16], strides = [1, 1]} : vector<128x96xf32> to vector<8x16xf32>
    %631 = vector.extract_strided_slice %18 {offsets = [112, 80], sizes = [8, 16], strides = [1, 1]} : vector<128x96xf32> to vector<8x16xf32>
    %cst_167 = arith.constant dense<0.000000e+00> : vector<8x8xf32>
    %632 = tpu.matmul %629, %630, %cst_167 {dimension_numbers = #tpu.dot_dimension_numbers<[1], [1], [0], [0], [0, 0, 1, 0], [], []>} : vector<8x16xf32>, vector<8x16xf32>, vector<8x8xf32> -> vector<8x8xf32>
    %633 = vector.broadcast %607 : vector<1x8xf32> to vector<8x8xf32>
    %634 = arith.addf %632, %633 : vector<8x8xf32>
    %cst_168 = arith.constant dense<0xFF800000> : vector<8xf32>
    %635 = vector.multi_reduction <maximumf>, %634, %cst_168 [1] : vector<8x8xf32> to vector<8xf32>
    %636 = vector.shape_cast %635 : vector<8xf32> to vector<8x1xf32>
    %637 = vector.broadcast %636 : vector<8x1xf32> to vector<8x8xf32>
    %638 = arith.subf %634, %637 : vector<8x8xf32>
    %639 = math.exp %638 : vector<8x8xf32>
    %cst_169 = arith.constant dense<0.000000e+00> : vector<8xf32>
    %640 = vector.multi_reduction <add>, %639, %cst_169 [1] : vector<8x8xf32> to vector<8xf32>
    %641 = vector.shape_cast %640 : vector<8xf32> to vector<8x1xf32>
    %642 = tpu.reciprocal %641 {approx = true} : vector<8x1xf32> -> vector<8x1xf32>
    %643 = vector.broadcast %642 : vector<8x1xf32> to vector<8x8xf32>
    %644 = arith.mulf %639, %643 : vector<8x8xf32>
    %cst_170 = arith.constant dense<0.000000e+00> : vector<8x16xf32>
    %645 = tpu.matmul %644, %631, %cst_170 {dimension_numbers = #tpu.dot_dimension_numbers<[1], [0], [0], [1], [0, 0, 1, 1], [], []>} : vector<8x8xf32>, vector<8x16xf32>, vector<8x16xf32> -> vector<8x16xf32>
    %646 = vector.extract_strided_slice %5 {offsets = [16, 0], sizes = [16, 32], strides = [1, 1]} : vector<32x32xf32> to vector<16x32xf32>
    %cst_171 = arith.constant dense<0.000000e+00> : vector<8x32xf32>
    %647 = tpu.matmul %645, %646, %cst_171 {dimension_numbers = #tpu.dot_dimension_numbers<[1], [0], [0], [1], [0, 0, 1, 1], [], []>} : vector<8x16xf32>, vector<16x32xf32>, vector<8x32xf32> -> vector<8x32xf32>
    %648 = arith.addf %628, %647 : vector<8x32xf32>
    %649 = vector.extract_strided_slice %1 {offsets = [15, 0], sizes = [1, 8], strides = [1, 1]} : vector<16x8xf32> to vector<1x8xf32>
    %cst_172 = arith.constant 0.000000e+00 : f32
    %650 = vector.broadcast %cst_172 : f32 to vector<8x32xf32>
    %651 = vector.extract_strided_slice %18 {offsets = [120, 0], sizes = [8, 16], strides = [1, 1]} : vector<128x96xf32> to vector<8x16xf32>
    %652 = vector.extract_strided_slice %18 {offsets = [120, 32], sizes = [8, 16], strides = [1, 1]} : vector<128x96xf32> to vector<8x16xf32>
    %653 = vector.extract_strided_slice %18 {offsets = [120, 64], sizes = [8, 16], strides = [1, 1]} : vector<128x96xf32> to vector<8x16xf32>
    %cst_173 = arith.constant dense<0.000000e+00> : vector<8x8xf32>
    %654 = tpu.matmul %651, %652, %cst_173 {dimension_numbers = #tpu.dot_dimension_numbers<[1], [1], [0], [0], [0, 0, 1, 0], [], []>} : vector<8x16xf32>, vector<8x16xf32>, vector<8x8xf32> -> vector<8x8xf32>
    %655 = vector.broadcast %649 : vector<1x8xf32> to vector<8x8xf32>
    %656 = arith.addf %654, %655 : vector<8x8xf32>
    %cst_174 = arith.constant dense<0xFF800000> : vector<8xf32>
    %657 = vector.multi_reduction <maximumf>, %656, %cst_174 [1] : vector<8x8xf32> to vector<8xf32>
    %658 = vector.shape_cast %657 : vector<8xf32> to vector<8x1xf32>
    %659 = vector.broadcast %658 : vector<8x1xf32> to vector<8x8xf32>
    %660 = arith.subf %656, %659 : vector<8x8xf32>
    %661 = math.exp %660 : vector<8x8xf32>
    %cst_175 = arith.constant dense<0.000000e+00> : vector<8xf32>
    %662 = vector.multi_reduction <add>, %661, %cst_175 [1] : vector<8x8xf32> to vector<8xf32>
    %663 = vector.shape_cast %662 : vector<8xf32> to vector<8x1xf32>
    %664 = tpu.reciprocal %663 {approx = true} : vector<8x1xf32> -> vector<8x1xf32>
    %665 = vector.broadcast %664 : vector<8x1xf32> to vector<8x8xf32>
    %666 = arith.mulf %661, %665 : vector<8x8xf32>
    %cst_176 = arith.constant dense<0.000000e+00> : vector<8x16xf32>
    %667 = tpu.matmul %666, %653, %cst_176 {dimension_numbers = #tpu.dot_dimension_numbers<[1], [0], [0], [1], [0, 0, 1, 1], [], []>} : vector<8x8xf32>, vector<8x16xf32>, vector<8x16xf32> -> vector<8x16xf32>
    %668 = vector.extract_strided_slice %5 {offsets = [0, 0], sizes = [16, 32], strides = [1, 1]} : vector<32x32xf32> to vector<16x32xf32>
    %cst_177 = arith.constant dense<0.000000e+00> : vector<8x32xf32>
    %669 = tpu.matmul %667, %668, %cst_177 {dimension_numbers = #tpu.dot_dimension_numbers<[1], [0], [0], [1], [0, 0, 1, 1], [], []>} : vector<8x16xf32>, vector<16x32xf32>, vector<8x32xf32> -> vector<8x32xf32>
    %670 = arith.addf %650, %669 : vector<8x32xf32>
    %671 = vector.extract_strided_slice %18 {offsets = [120, 16], sizes = [8, 16], strides = [1, 1]} : vector<128x96xf32> to vector<8x16xf32>
    %672 = vector.extract_strided_slice %18 {offsets = [120, 48], sizes = [8, 16], strides = [1, 1]} : vector<128x96xf32> to vector<8x16xf32>
    %673 = vector.extract_strided_slice %18 {offsets = [120, 80], sizes = [8, 16], strides = [1, 1]} : vector<128x96xf32> to vector<8x16xf32>
    %cst_178 = arith.constant dense<0.000000e+00> : vector<8x8xf32>
    %674 = tpu.matmul %671, %672, %cst_178 {dimension_numbers = #tpu.dot_dimension_numbers<[1], [1], [0], [0], [0, 0, 1, 0], [], []>} : vector<8x16xf32>, vector<8x16xf32>, vector<8x8xf32> -> vector<8x8xf32>
    %675 = vector.broadcast %649 : vector<1x8xf32> to vector<8x8xf32>
    %676 = arith.addf %674, %675 : vector<8x8xf32>
    %cst_179 = arith.constant dense<0xFF800000> : vector<8xf32>
    %677 = vector.multi_reduction <maximumf>, %676, %cst_179 [1] : vector<8x8xf32> to vector<8xf32>
    %678 = vector.shape_cast %677 : vector<8xf32> to vector<8x1xf32>
    %679 = vector.broadcast %678 : vector<8x1xf32> to vector<8x8xf32>
    %680 = arith.subf %676, %679 : vector<8x8xf32>
    %681 = math.exp %680 : vector<8x8xf32>
    %cst_180 = arith.constant dense<0.000000e+00> : vector<8xf32>
    %682 = vector.multi_reduction <add>, %681, %cst_180 [1] : vector<8x8xf32> to vector<8xf32>
    %683 = vector.shape_cast %682 : vector<8xf32> to vector<8x1xf32>
    %684 = tpu.reciprocal %683 {approx = true} : vector<8x1xf32> -> vector<8x1xf32>
    %685 = vector.broadcast %684 : vector<8x1xf32> to vector<8x8xf32>
    %686 = arith.mulf %681, %685 : vector<8x8xf32>
    %cst_181 = arith.constant dense<0.000000e+00> : vector<8x16xf32>
    %687 = tpu.matmul %686, %673, %cst_181 {dimension_numbers = #tpu.dot_dimension_numbers<[1], [0], [0], [1], [0, 0, 1, 1], [], []>} : vector<8x8xf32>, vector<8x16xf32>, vector<8x16xf32> -> vector<8x16xf32>
    %688 = vector.extract_strided_slice %5 {offsets = [16, 0], sizes = [16, 32], strides = [1, 1]} : vector<32x32xf32> to vector<16x32xf32>
    %cst_182 = arith.constant dense<0.000000e+00> : vector<8x32xf32>
    %689 = tpu.matmul %687, %688, %cst_182 {dimension_numbers = #tpu.dot_dimension_numbers<[1], [0], [0], [1], [0, 0, 1, 1], [], []>} : vector<8x16xf32>, vector<16x32xf32>, vector<8x32xf32> -> vector<8x32xf32>
    %690 = arith.addf %670, %689 : vector<8x32xf32>
    %691 = tpu.concatenate %60, %102, %144, %186, %228, %270, %312, %354, %396, %438, %480, %522, %564, %606, %648, %690 in 0 : vector<8x32xf32>, vector<8x32xf32>, vector<8x32xf32>, vector<8x32xf32>, vector<8x32xf32>, vector<8x32xf32>, vector<8x32xf32>, vector<8x32xf32>, vector<8x32xf32>, vector<8x32xf32>, vector<8x32xf32>, vector<8x32xf32>, vector<8x32xf32>, vector<8x32xf32>, vector<8x32xf32>, vector<8x32xf32> -> vector<128x32xf32>
    %692 = vector.broadcast %9 : vector<1x32xf32> to vector<128x32xf32>
    %693 = arith.addf %691, %692 : vector<128x32xf32>
    %694 = arith.addf %693, %0 : vector<128x32xf32>
    %cst_183 = arith.constant dense<0.000000e+00> : vector<128xf32>
    %695 = vector.multi_reduction <add>, %694, %cst_183 [1] : vector<128x32xf32> to vector<128xf32>
    %696 = vector.shape_cast %695 : vector<128xf32> to vector<128x1xf32>
    %cst_184 = arith.constant 3.200000e+01 : f32
    %697 = vector.broadcast %cst_184 : f32 to vector<128x1xf32>
    %698 = arith.divf %696, %697 : vector<128x1xf32>
    %699 = vector.broadcast %698 : vector<128x1xf32> to vector<128x32xf32>
    %700 = arith.subf %694, %699 : vector<128x32xf32>
    %701 = arith.mulf %700, %700 : vector<128x32xf32>
    %cst_185 = arith.constant dense<0.000000e+00> : vector<128xf32>
    %702 = vector.multi_reduction <add>, %701, %cst_185 [1] : vector<128x32xf32> to vector<128xf32>
    %703 = vector.shape_cast %702 : vector<128xf32> to vector<128x1xf32>
    %cst_186 = arith.constant 3.200000e+01 : f32
    %704 = vector.broadcast %cst_186 : f32 to vector<128x1xf32>
    %705 = arith.divf %703, %704 : vector<128x1xf32>
    %706 = vector.broadcast %698 : vector<128x1xf32> to vector<128x32xf32>
    %707 = arith.subf %694, %706 : vector<128x32xf32>
    %cst_187 = arith.constant 9.99999996E-13 : f32
    %708 = vector.broadcast %cst_187 : f32 to vector<128x1xf32>
    %709 = arith.addf %705, %708 : vector<128x1xf32>
    %710 = math.rsqrt %709 : vector<128x1xf32>
    %711 = vector.broadcast %710 : vector<128x1xf32> to vector<128x32xf32>
    %712 = arith.mulf %707, %711 : vector<128x32xf32>
    %713 = vector.broadcast %11 : vector<1x32xf32> to vector<128x32xf32>
    %714 = arith.mulf %712, %713 : vector<128x32xf32>
    %715 = vector.broadcast %12 : vector<1x32xf32> to vector<128x32xf32>
    %716 = arith.addf %714, %715 : vector<128x32xf32>
    %cst_188 = arith.constant dense<0.000000e+00> : vector<128x64xf32>
    %717 = tpu.matmul %716, %6, %cst_188 {dimension_numbers = #tpu.dot_dimension_numbers<[1], [0], [0], [1], [0, 0, 1, 1], [], []>} : vector<128x32xf32>, vector<32x64xf32>, vector<128x64xf32> -> vector<128x64xf32>
    %718 = vector.broadcast %10 : vector<1x64xf32> to vector<128x64xf32>
    %719 = arith.addf %717, %718 : vector<128x64xf32>
    %cst_189 = arith.constant 5.000000e-01 : f32
    %720 = vector.broadcast %cst_189 : f32 to vector<128x64xf32>
    %721 = arith.mulf %720, %719 : vector<128x64xf32>
    %cst_190 = arith.constant 0.707106769 : f32
    %722 = vector.broadcast %cst_190 : f32 to vector<128x64xf32>
    %723 = arith.mulf %719, %722 : vector<128x64xf32>
    %724 = math.absf %723 : vector<128x64xf32>
    %cst_191 = arith.constant 0.327591091 : f32
    %725 = vector.broadcast %cst_191 : f32 to vector<128x64xf32>
    %726 = arith.mulf %725, %724 : vector<128x64xf32>
    %cst_192 = arith.constant 1.000000e+00 : f32
    %727 = vector.broadcast %cst_192 : f32 to vector<128x64xf32>
    %728 = arith.addf %727, %726 : vector<128x64xf32>
    %cst_193 = arith.constant 1.000000e+00 : f32
    %729 = vector.broadcast %cst_193 : f32 to vector<128x64xf32>
    %730 = arith.divf %729, %728 : vector<128x64xf32>
    %cst_194 = arith.constant 1.06140542 : f32
    %731 = vector.broadcast %cst_194 : f32 to vector<128x64xf32>
    %732 = arith.mulf %731, %730 : vector<128x64xf32>
    %cst_195 = arith.constant -1.45315206 : f32
    %733 = vector.broadcast %cst_195 : f32 to vector<128x64xf32>
    %734 = arith.addf %732, %733 : vector<128x64xf32>
    %735 = arith.mulf %734, %730 : vector<128x64xf32>
    %cst_196 = arith.constant 1.42141378 : f32
    %736 = vector.broadcast %cst_196 : f32 to vector<128x64xf32>
    %737 = arith.addf %735, %736 : vector<128x64xf32>
    %738 = arith.mulf %737, %730 : vector<128x64xf32>
    %cst_197 = arith.constant -0.284496725 : f32
    %739 = vector.broadcast %cst_197 : f32 to vector<128x64xf32>
    %740 = arith.addf %738, %739 : vector<128x64xf32>
    %741 = arith.mulf %740, %730 : vector<128x64xf32>
    %cst_198 = arith.constant 0.254829586 : f32
    %742 = vector.broadcast %cst_198 : f32 to vector<128x64xf32>
    %743 = arith.addf %741, %742 : vector<128x64xf32>
    %744 = arith.mulf %743, %730 : vector<128x64xf32>
    %cst_199 = arith.constant 0.000000e+00 : f32
    %745 = vector.broadcast %cst_199 : f32 to vector<128x64xf32>
    %746 = arith.subf %745, %724 : vector<128x64xf32>
    %747 = arith.mulf %746, %724 : vector<128x64xf32>
    %748 = math.exp %747 : vector<128x64xf32>
    %749 = arith.mulf %744, %748 : vector<128x64xf32>
    %cst_200 = arith.constant 1.000000e+00 : f32
    %750 = vector.broadcast %cst_200 : f32 to vector<128x64xf32>
    %751 = arith.subf %750, %749 : vector<128x64xf32>
    %cst_201 = arith.constant 0.000000e+00 : f32
    %752 = vector.broadcast %cst_201 : f32 to vector<128x64xf32>
    %753 = arith.cmpf oge, %723, %752 : vector<128x64xf32>
    %cst_202 = arith.constant 0.000000e+00 : f32
    %754 = vector.broadcast %cst_202 : f32 to vector<128x64xf32>
    %755 = arith.subf %754, %751 : vector<128x64xf32>
    %756 = arith.select %753, %751, %755 : vector<128x64xi1>, vector<128x64xf32>
    %cst_203 = arith.constant 1.000000e+00 : f32
    %757 = vector.broadcast %cst_203 : f32 to vector<128x64xf32>
    %758 = arith.addf %757, %756 : vector<128x64xf32>
    %759 = arith.mulf %721, %758 : vector<128x64xf32>
    %cst_204 = arith.constant dense<0.000000e+00> : vector<128x32xf32>
    %760 = tpu.matmul %759, %7, %cst_204 {dimension_numbers = #tpu.dot_dimension_numbers<[1], [0], [0], [1], [0, 0, 1, 1], [], []>} : vector<128x64xf32>, vector<64x32xf32>, vector<128x32xf32> -> vector<128x32xf32>
    %761 = vector.broadcast %13 : vector<1x32xf32> to vector<128x32xf32>
    %762 = arith.addf %760, %761 : vector<128x32xf32>
    %763 = arith.addf %762, %716 : vector<128x32xf32>
    %cst_205 = arith.constant dense<0.000000e+00> : vector<128xf32>
    %764 = vector.multi_reduction <add>, %763, %cst_205 [1] : vector<128x32xf32> to vector<128xf32>
    %765 = vector.shape_cast %764 : vector<128xf32> to vector<128x1xf32>
    %cst_206 = arith.constant 3.200000e+01 : f32
    %766 = vector.broadcast %cst_206 : f32 to vector<128x1xf32>
    %767 = arith.divf %765, %766 : vector<128x1xf32>
    %768 = vector.broadcast %767 : vector<128x1xf32> to vector<128x32xf32>
    %769 = arith.subf %763, %768 : vector<128x32xf32>
    %770 = arith.mulf %769, %769 : vector<128x32xf32>
    %cst_207 = arith.constant dense<0.000000e+00> : vector<128xf32>
    %771 = vector.multi_reduction <add>, %770, %cst_207 [1] : vector<128x32xf32> to vector<128xf32>
    %772 = vector.shape_cast %771 : vector<128xf32> to vector<128x1xf32>
    %cst_208 = arith.constant 3.200000e+01 : f32
    %773 = vector.broadcast %cst_208 : f32 to vector<128x1xf32>
    %774 = arith.divf %772, %773 : vector<128x1xf32>
    %775 = vector.broadcast %767 : vector<128x1xf32> to vector<128x32xf32>
    %776 = arith.subf %763, %775 : vector<128x32xf32>
    %cst_209 = arith.constant 9.99999996E-13 : f32
    %777 = vector.broadcast %cst_209 : f32 to vector<128x1xf32>
    %778 = arith.addf %774, %777 : vector<128x1xf32>
    %779 = math.rsqrt %778 : vector<128x1xf32>
    %780 = vector.broadcast %779 : vector<128x1xf32> to vector<128x32xf32>
    %781 = arith.mulf %776, %780 : vector<128x32xf32>
    %782 = vector.broadcast %14 : vector<1x32xf32> to vector<128x32xf32>
    %783 = arith.mulf %781, %782 : vector<128x32xf32>
    %784 = vector.broadcast %15 : vector<1x32xf32> to vector<128x32xf32>
    %785 = arith.addf %783, %784 : vector<128x32xf32>
    %c0_210 = arith.constant 0 : index
    %c0_211 = arith.constant 0 : index
    %786 = vector.load %arg4[%c0_210, %c0_211] : memref<128x32xf32, #tpu.memory_space<vmem>>, vector<128x32xf32>
    tpu.vector_store %arg4[%c0_210, %c0_211], %785 {strides = array<i32>} : memref<128x32xf32, #tpu.memory_space<vmem>>, vector<128x32xf32>,
    return
  }
}

</mosaic_0001>

<llo_original>
// kernel: tpu_custom_call.1
$region0: #{tpu_custom_call.1}
  #allocation0 [shape = 'u32[]', space=smem, size = 0x4, offset = 0x4, fixed_abs, tag = 'smem constant byte address 0x4 - core index']
  #allocation1 [shape = 'u32[72,128]{1,0:T(1,128)}', space=vmem, size = 0x9000, scoped, tag = 'internal scratch']
  %s0 = inlined_call_operand.vmem [shape: f32[128,32], index: 0, kind: input, shape index: {}]
  %s1 = inlined_call_operand.vmem [shape: f32[16,8], index: 1, kind: input, shape index: {}]
  %s2 = inlined_call_operand.vmem [shape: f32[128,96], index: 2, kind: input, shape index: {}]
  %s3 = inlined_call_operand.vmem [shape: f32[8,96], index: 3, kind: input, shape index: {}]
  %s4 = inlined_call_operand.vmem [shape: f32[128,32], index: 4, kind: output, shape index: {}]
  %s5 = sld [smem:[#allocation0]]
  $region26: #{tpu_custom_call.1} parent=0
    _
  %s7 = ssub.s32 1, %s5
  %s8 = scalar_select 0, %s7, %s5
  // Predicated region
  $region2: #{tpu_custom_call.1} parent=0 // pred_check
    _
  $region3: #{tpu_custom_call.1} parent=0 // pred_check_branch
    %10 = sbr.rel (0) target = $region5
  $region4: #{tpu_custom_call.1} parent=0 // pred_region
    _
  $region5: #{tpu_custom_call.1} parent=0 // pred_fallthru
    _
  // Predicated region
  $region6: #{tpu_custom_call.1} parent=0 // pred_check
    _
  $region7: #{tpu_custom_call.1} parent=0 // pred_check_branch
    %12 = sbr.rel (0) target = $region9
  $region8: #{tpu_custom_call.1} parent=0 // pred_region
    _
  $region9: #{tpu_custom_call.1} parent=0 // pred_fallthru
    _
  // Predicated region
  $region10: #{tpu_custom_call.1} parent=0 // pred_check
    _
  $region11: #{tpu_custom_call.1} parent=0 // pred_check_branch
    %14 = sbr.rel (0) target = $region13
  $region12: #{tpu_custom_call.1} parent=0 // pred_region
    _
  $region13: #{tpu_custom_call.1} parent=0 // pred_fallthru
    _
  // Predicated region
  $region14: #{tpu_custom_call.1} parent=0 // pred_check
    _
  $region15: #{tpu_custom_call.1} parent=0 // pred_check_branch
    %16 = sbr.rel (0) target = $region17
  $region16: #{tpu_custom_call.1} parent=0 // pred_region
    _
  $region17: #{tpu_custom_call.1} parent=0 // pred_fallthru
    _
  %v17 = vld [vmem:[%s0] sm:$0xff]
  %v18 = vld [vmem:[%s0 + $0x8] sm:$0xff]
  %v19 = vld [vmem:[%s0 + $0x10] sm:$0xff]
  %v20 = vld [vmem:[%s0 + $0x18] sm:$0xff]
  %v21 = vld [vmem:[%s0 + $0x20] sm:$0xff]
  %v22 = vld [vmem:[%s0 + $0x28] sm:$0xff]
  %v23 = vld [vmem:[%s0 + $0x30] sm:$0xff]
  %v24 = vld [vmem:[%s0 + $0x38] sm:$0xff]
  %v25 = vld [vmem:[%s0 + $0x40] sm:$0xff]
  %v26 = vld [vmem:[%s0 + $0x48] sm:$0xff]
  %v27 = vld [vmem:[%s0 + $0x50] sm:$0xff]
  %v28 = vld [vmem:[%s0 + $0x58] sm:$0xff]
  %v29 = vld [vmem:[%s0 + $0x60] sm:$0xff]
  %v30 = vld [vmem:[%s0 + $0x68] sm:$0xff]
  %v31 = vld [vmem:[%s0 + $0x70] sm:$0xff]
  %v32 = vld [vmem:[%s0 + $0x78] sm:$0xff]
  %v33 = vld [vmem:[%s1] sm:$0xff]
  %v34 = vld [vmem:[%s1 + $0x8] sm:$0xff]
  %v35 = vld [vmem:[%s2] sm:$0xff]
  %v36 = vld [vmem:[%s2 + $0x8] sm:$0xff]
  %v37 = vld [vmem:[%s2 + $0x10] sm:$0xff]
  %v38 = vld [vmem:[%s2 + $0x18] sm:$0xff]
  %v39 = vld [vmem:[%s2 + $0x20] sm:$0xff]
  %v40 = vld [vmem:[%s2 + $0x28] sm:$0xff]
  %v41 = vld [vmem:[%s2 + $0x30] sm:$0xff]
  %v42 = vld [vmem:[%s2 + $0x38] sm:$0xff]
  %v43 = vld [vmem:[%s2 + $0x40] sm:$0xff]
  %v44 = vld [vmem:[%s2 + $0x48] sm:$0xff]
  %v45 = vld [vmem:[%s2 + $0x50] sm:$0xff]
  %v46 = vld [vmem:[%s2 + $0x58] sm:$0xff]
  %v47 = vld [vmem:[%s2 + $0x60] sm:$0xff]
  %v48 = vld [vmem:[%s2 + $0x68] sm:$0xff]
  %v49 = vld [vmem:[%s2 + $0x70] sm:$0xff]
  %v50 = vld [vmem:[%s2 + $0x78] sm:$0xff]
  %v51 = vld [vmem:[%s3] sm:$0xff]
  %v52 = vperm.slane %v51, 0
  %vm53 = vcmask 261120
  %v55 = vsel %vm53, %v17, 0
  %v58 = vsel %vm53, %v18, 0
  %v61 = vsel %vm53, %v19, 0
  %v64 = vsel %vm53, %v20, 0
  %v67 = vsel %vm53, %v21, 0
  %v70 = vsel %vm53, %v22, 0
  %v73 = vsel %vm53, %v23, 0
  %v76 = vsel %vm53, %v24, 0
  %v79 = vsel %vm53, %v25, 0
  %v82 = vsel %vm53, %v26, 0
  %v85 = vsel %vm53, %v27, 0
  %v88 = vsel %vm53, %v28, 0
  %v91 = vsel %vm53, %v29, 0
  %v94 = vsel %vm53, %v30, 0
  %v97 = vsel %vm53, %v31, 0
  %v100 = vsel %vm53, %v32, 0
  %102 = vmatpush.msra.mxu0 0.0
  %103 = vmatpush.msra.mxu0 0.0
  %104 = vmatpush.msra.mxu0 0.0
  %105 = vmatpush.msra.mxu0 0.0
  %106 = vmatpush.msra.mxu0 0.0
  %107 = vmatpush.msra.mxu0 0.0
  %108 = vmatpush.msra.mxu0 0.0
  %109 = vmatpush.msra.mxu0 0.0
  %110 = vmatpush.msra.mxu0 0.0
  %111 = vmatpush.msra.mxu0 0.0
  %112 = vmatpush.msra.mxu0 0.0
  %113 = vmatpush.msra.mxu0 0.0
  %114 = vmatpush.msra.mxu0 %v38
  %115 = vmatpush.msra.mxu0 %v37
  %116 = vmatpush.msra.mxu0 %v36
  %117 = vmatpush.msra.mxu0 %v35
  %118 = vmatmul.f32.gmra.mxu0 %v55
  %v119 = vpop.f32.mrf.mxu0
  %v120 = vadd.f32 %v52, %v119
  %121 = vmatmul.f32.gmra.mxu0 %v58
  %v122 = vpop.f32.mrf.mxu0
  %v123 = vadd.f32 %v52, %v122
  %124 = vmatmul.f32.gmra.mxu0 %v61
  %v125 = vpop.f32.mrf.mxu0
  %v126 = vadd.f32 %v52, %v125
  %127 = vmatmul.f32.gmra.mxu0 %v64
  %v128 = vpop.f32.mrf.mxu0
  %v129 = vadd.f32 %v52, %v128
  %130 = vmatmul.f32.gmra.mxu0 %v67
  %v131 = vpop.f32.mrf.mxu0
  %v132 = vadd.f32 %v52, %v131
  %133 = vmatmul.f32.gmra.mxu0 %v70
  %v134 = vpop.f32.mrf.mxu0
  %v135 = vadd.f32 %v52, %v134
  %136 = vmatmul.f32.gmra.mxu0 %v73
  %v137 = vpop.f32.mrf.mxu0
  %v138 = vadd.f32 %v52, %v137
  %139 = vmatmul.f32.gmra.mxu0 %v76
  %v140 = vpop.f32.mrf.mxu0
  %v141 = vadd.f32 %v52, %v140
  %142 = vmatmul.f32.gmra.mxu0 %v79
  %v143 = vpop.f32.mrf.mxu0
  %v144 = vadd.f32 %v52, %v143
  %145 = vmatmul.f32.gmra.mxu0 %v82
  %v146 = vpop.f32.mrf.mxu0
  %v147 = vadd.f32 %v52, %v146
  %148 = vmatmul.f32.gmra.mxu0 %v85
  %v149 = vpop.f32.mrf.mxu0
  %v150 = vadd.f32 %v52, %v149
  %151 = vmatmul.f32.gmra.mxu0 %v88
  %v152 = vpop.f32.mrf.mxu0
  %v153 = vadd.f32 %v52, %v152
  %154 = vmatmul.f32.gmra.mxu0 %v91
  %v155 = vpop.f32.mrf.mxu0
  %v156 = vadd.f32 %v52, %v155
  %157 = vmatmul.f32.gmra.mxu0 %v94
  %v158 = vpop.f32.mrf.mxu0
  %v159 = vadd.f32 %v52, %v158
  %160 = vmatmul.f32.gmra.mxu0 %v97
  %v161 = vpop.f32.mrf.mxu0
  %v162 = vadd.f32 %v52, %v161
  %163 = vmatmul.f32.gmra.mxu0 %v100
  %v164 = vpop.f32.mrf.mxu0
  %v165 = vadd.f32 %v52, %v164
  %166 = vdwg.mxu0
  %v167 = vperm.slane %v33, 0
  %169 = vrot.lane.b32.xlu0 %v120, 96
  %v170 = vpop.permute.xlu0 %169
  %vm171 = vcmask 130048
  %v172 = vsel %vm171, %v120, 0
  %v174 = vsel %vm171, %v170, 0
  %176 = vmatpush.xpose.msra.mxu0 0.0
  %177 = vmatpush.xpose.msra.mxu0 0.0
  %178 = vmatpush.xpose.msra.mxu0 0.0
  %179 = vmatpush.xpose.msra.mxu0 0.0
  %180 = vmatpush.xpose.msra.mxu0 0.0
  %181 = vmatpush.xpose.msra.mxu0 0.0
  %182 = vmatpush.xpose.msra.mxu0 0.0
  %183 = vmatpush.xpose.msra.mxu0 0.0
  %184 = vmatpush.xpose.msra.mxu0 0.0
  %185 = vmatpush.xpose.msra.mxu0 0.0
  %186 = vmatpush.xpose.msra.mxu0 0.0
  %187 = vmatpush.xpose.msra.mxu0 0.0
  %188 = vmatpush.xpose.msra.mxu0 0.0
  %189 = vmatpush.xpose.msra.mxu0 0.0
  %190 = vmatpush.xpose.msra.mxu0 0.0
  %191 = vmatpush.xpose.msra.mxu0 %v174
  %192 = vmatmul.f32.gmra.mxu0 %v172
  %v193 = vpop.f32.mrf.mxu0
  %v194 = vadd.f32 %v167, %v193
  %195 = vdwg.mxu0
  %vm196 = vcmask 64512
  %v197 = vsel %vm196, %v194, -inf
  %198 = vmax.xlane.f32.xlu0 %v197
  %v199 = vpop.xlane.xlu0 %198
  %v200 = vsub.f32 %v194, %v199
  %v201 = vmul.f32 %v200, 1.442695
  %v202 = vpow.pop %v201
  %v203 = vsel %vm196, %v202, 0.0
  %204 = vadd.xlane.f32.xlu0 %v203
  %v205 = vpop.xlane.xlu0 %204
  %v206 = vrcp.pop %v205
  %v207 = vmul.f32 %v202, %v206
  %208 = vrot.lane.b32.xlu0 %v120, 64
  %v209 = vpop.permute.xlu0 %208
  %v212 = vsel %vm196, %v207, 0
  %214 = vmatpush.msra.mxu0 0.0
  %215 = vmatpush.msra.mxu0 0.0
  %216 = vmatpush.msra.mxu0 0.0
  %217 = vmatpush.msra.mxu0 0.0
  %218 = vmatpush.msra.mxu0 0.0
  %219 = vmatpush.msra.mxu0 0.0
  %220 = vmatpush.msra.mxu0 0.0
  %221 = vmatpush.msra.mxu0 0.0
  %222 = vmatpush.msra.mxu0 0.0
  %223 = vmatpush.msra.mxu0 0.0
  %224 = vmatpush.msra.mxu0 0.0
  %225 = vmatpush.msra.mxu0 0.0
  %226 = vmatpush.msra.mxu0 0.0
  %227 = vmatpush.msra.mxu0 0.0
  %228 = vmatpush.msra.mxu0 0.0
  %229 = vmatpush.msra.mxu0 %v209
  %230 = vmatmul.f32.gmra.mxu0 %v212
  %v231 = vpop.f32.mrf.mxu0
  %v232 = vadd.f32 0.0, %v231
  %233 = vdwg.mxu0
  %234 = vrot.lane.b32.xlu0 %v120, 112
  %v235 = vpop.permute.xlu0 %234
  %236 = vrot.lane.b32.xlu0 %v120, 80
  %v237 = vpop.permute.xlu0 %236
  %v238 = vsel %vm171, %v235, 0
  %v240 = vsel %vm171, %v237, 0
  %242 = vmatpush.xpose.msra.mxu0 0.0
  %243 = vmatpush.xpose.msra.mxu0 0.0
  %244 = vmatpush.xpose.msra.mxu0 0.0
  %245 = vmatpush.xpose.msra.mxu0 0.0
  %246 = vmatpush.xpose.msra.mxu0 0.0
  %247 = vmatpush.xpose.msra.mxu0 0.0
  %248 = vmatpush.xpose.msra.mxu0 0.0
  %249 = vmatpush.xpose.msra.mxu0 0.0
  %250 = vmatpush.xpose.msra.mxu0 0.0
  %251 = vmatpush.xpose.msra.mxu0 0.0
  %252 = vmatpush.xpose.msra.mxu0 0.0
  %253 = vmatpush.xpose.msra.mxu0 0.0
  %254 = vmatpush.xpose.msra.mxu0 0.0
  %255 = vmatpush.xpose.msra.mxu0 0.0
  %256 = vmatpush.xpose.msra.mxu0 0.0
  %257 = vmatpush.xpose.msra.mxu0 %v240
  %258 = vmatmul.f32.gmra.mxu0 %v238
  %v259 = vpop.f32.mrf.mxu0
  %v260 = vadd.f32 %v167, %v259
  %261 = vdwg.mxu0
  %v262 = vsel %vm196, %v260, -inf
  %263 = vmax.xlane.f32.xlu0 %v262
  %v264 = vpop.xlane.xlu0 %263
  %v265 = vsub.f32 %v260, %v264
  %v266 = vmul.f32 %v265, 1.442695
  %v267 = vpow.pop %v266
  %v268 = vsel %vm196, %v267, 0.0
  %269 = vadd.xlane.f32.xlu0 %v268
  %v270 = vpop.xlane.xlu0 %269
  %v271 = vrcp.pop %v270
  %v272 = vmul.f32 %v267, %v271
  %273 = vrot.lane.b32.xlu0 %v120, 48
  %v274 = vpop.permute.xlu0 %273
  %v277 = vsel %vm196, %v272, 0
  %279 = vmatpush.msra.mxu0 0.0
  %280 = vmatpush.msra.mxu0 0.0
  %281 = vmatpush.msra.mxu0 0.0
  %282 = vmatpush.msra.mxu0 0.0
  %283 = vmatpush.msra.mxu0 0.0
  %284 = vmatpush.msra.mxu0 0.0
  %285 = vmatpush.msra.mxu0 0.0
  %286 = vmatpush.msra.mxu0 0.0
  %287 = vmatpush.msra.mxu0 0.0
  %288 = vmatpush.msra.mxu0 0.0
  %289 = vmatpush.msra.mxu0 0.0
  %290 = vmatpush.msra.mxu0 0.0
  %291 = vmatpush.msra.mxu0 0.0
  %292 = vmatpush.msra.mxu0 0.0
  %293 = vmatpush.msra.mxu0 0.0
  %294 = vmatpush.msra.mxu0 %v274
  %295 = vmatmul.f32.gmra.mxu0 %v277
  %v296 = vpop.f32.mrf.mxu0
  %v297 = vadd.f32 0.0, %v296
  %298 = vdwg.mxu0
  %v300 = vsel %vm171, %v297, 0
  %302 = vmatpush.msra.mxu0 0.0
  %303 = vmatpush.msra.mxu0 0.0
  %304 = vmatpush.msra.mxu0 0.0
  %305 = vmatpush.msra.mxu0 0.0
  %306 = vmatpush.msra.mxu0 0.0
  %307 = vmatpush.msra.mxu0 0.0
  %308 = vmatpush.msra.mxu0 0.0
  %309 = vmatpush.msra.mxu0 0.0
  %310 = vmatpush.msra.mxu0 0.0
  %311 = vmatpush.msra.mxu0 0.0
  %312 = vmatpush.msra.mxu0 0.0
  %313 = vmatpush.msra.mxu0 0.0
  %314 = vmatpush.msra.mxu0 0.0
  %315 = vmatpush.msra.mxu0 0.0
  %316 = vmatpush.msra.mxu0 %v42
  %317 = vmatpush.msra.mxu0 %v41
  %318 = vmatmul.f32.gmra.mxu0 %v300
  %v319 = vpop.f32.mrf.mxu0
  %v320 = vadd.f32 0.0, %v319
  %321 = vdwg.mxu0
  %v323 = vsel %vm171, %v232, 0
  %325 = vmatpush.msra.mxu0 0.0
  %326 = vmatpush.msra.mxu0 0.0
  %327 = vmatpush.msra.mxu0 0.0
  %328 = vmatpush.msra.mxu0 0.0
  %329 = vmatpush.msra.mxu0 0.0
  %330 = vmatpush.msra.mxu0 0.0
  %331 = vmatpush.msra.mxu0 0.0
  %332 = vmatpush.msra.mxu0 0.0
  %333 = vmatpush.msra.mxu0 0.0
  %334 = vmatpush.msra.mxu0 0.0
  %335 = vmatpush.msra.mxu0 0.0
  %336 = vmatpush.msra.mxu0 0.0
  %337 = vmatpush.msra.mxu0 0.0
  %338 = vmatpush.msra.mxu0 0.0
  %339 = vmatpush.msra.mxu0 %v40
  %340 = vmatpush.msra.mxu0 %v39
  %341 = vmatmul.f32.gmra.mxu0 %v323
  %v342 = vpop.f32.mrf.mxu0
  %v343 = vadd.f32 %v320, %v342
  %344 = vdwg.mxu0
  %v345 = vperm.slane %v33, 1
  %347 = vrot.lane.b32.xlu0 %v123, 96
  %v348 = vpop.permute.xlu0 %347
  %v349 = vsel %vm171, %v123, 0
  %v351 = vsel %vm171, %v348, 0
  %353 = vmatpush.xpose.msra.mxu0 0.0
  %354 = vmatpush.xpose.msra.mxu0 0.0
  %355 = vmatpush.xpose.msra.mxu0 0.0
  %356 = vmatpush.xpose.msra.mxu0 0.0
  %357 = vmatpush.xpose.msra.mxu0 0.0
  %358 = vmatpush.xpose.msra.mxu0 0.0
  %359 = vmatpush.xpose.msra.mxu0 0.0
  %360 = vmatpush.xpose.msra.mxu0 0.0
  %361 = vmatpush.xpose.msra.mxu0 0.0
  %362 = vmatpush.xpose.msra.mxu0 0.0
  %363 = vmatpush.xpose.msra.mxu0 0.0
  %364 = vmatpush.xpose.msra.mxu0 0.0
  %365 = vmatpush.xpose.msra.mxu0 0.0
  %366 = vmatpush.xpose.msra.mxu0 0.0
  %367 = vmatpush.xpose.msra.mxu0 0.0
  %368 = vmatpush.xpose.msra.mxu0 %v351
  %369 = vmatmul.f32.gmra.mxu0 %v349
  %v370 = vpop.f32.mrf.mxu0
  %v371 = vadd.f32 %v345, %v370
  %372 = vdwg.mxu0
  %v373 = vsel %vm196, %v371, -inf
  %374 = vmax.xlane.f32.xlu0 %v373
  %v375 = vpop.xlane.xlu0 %374
  %v376 = vsub.f32 %v371, %v375
  %v377 = vmul.f32 %v376, 1.442695
  %v378 = vpow.pop %v377
  %v379 = vsel %vm196, %v378, 0.0
  %380 = vadd.xlane.f32.xlu0 %v379
  %v381 = vpop.xlane.xlu0 %380
  %v382 = vrcp.pop %v381
  %v383 = vmul.f32 %v378, %v382
  %384 = vrot.lane.b32.xlu0 %v123, 64
  %v385 = vpop.permute.xlu0 %384
  %v388 = vsel %vm196, %v383, 0
  %390 = vmatpush.msra.mxu0 0.0
  %391 = vmatpush.msra.mxu0 0.0
  %392 = vmatpush.msra.mxu0 0.0
  %393 = vmatpush.msra.mxu0 0.0
  %394 = vmatpush.msra.mxu0 0.0
  %395 = vmatpush.msra.mxu0 0.0
  %396 = vmatpush.msra.mxu0 0.0
  %397 = vmatpush.msra.mxu0 0.0
  %398 = vmatpush.msra.mxu0 0.0
  %399 = vmatpush.msra.mxu0 0.0
  %400 = vmatpush.msra.mxu0 0.0
  %401 = vmatpush.msra.mxu0 0.0
  %402 = vmatpush.msra.mxu0 0.0
  %403 = vmatpush.msra.mxu0 0.0
  %404 = vmatpush.msra.mxu0 0.0
  %405 = vmatpush.msra.mxu0 %v385
  %406 = vmatmul.f32.gmra.mxu0 %v388
  %v407 = vpop.f32.mrf.mxu0
  %v408 = vadd.f32 0.0, %v407
  %409 = vdwg.mxu0
  %410 = vrot.lane.b32.xlu0 %v123, 112
  %v411 = vpop.permute.xlu0 %410
  %412 = vrot.lane.b32.xlu0 %v123, 80
  %v413 = vpop.permute.xlu0 %412
  %v414 = vsel %vm171, %v411, 0
  %v416 = vsel %vm171, %v413, 0
  %418 = vmatpush.xpose.msra.mxu0 0.0
  %419 = vmatpush.xpose.msra.mxu0 0.0
  %420 = vmatpush.xpose.msra.mxu0 0.0
  %421 = vmatpush.xpose.msra.mxu0 0.0
  %422 = vmatpush.xpose.msra.mxu0 0.0
  %423 = vmatpush.xpose.msra.mxu0 0.0
  %424 = vmatpush.xpose.msra.mxu0 0.0
  %425 = vmatpush.xpose.msra.mxu0 0.0
  %426 = vmatpush.xpose.msra.mxu0 0.0
  %427 = vmatpush.xpose.msra.mxu0 0.0
  %428 = vmatpush.xpose.msra.mxu0 0.0
  %429 = vmatpush.xpose.msra.mxu0 0.0
  %430 = vmatpush.xpose.msra.mxu0 0.0
  %431 = vmatpush.xpose.msra.mxu0 0.0
  %432 = vmatpush.xpose.msra.mxu0 0.0
  %433 = vmatpush.xpose.msra.mxu0 %v416
  %434 = vmatmul.f32.gmra.mxu0 %v414
  %v435 = vpop.f32.mrf.mxu0
  %v436 = vadd.f32 %v345, %v435
  %437 = vdwg.mxu0
  %v438 = vsel %vm196, %v436, -inf
  %439 = vmax.xlane.f32.xlu0 %v438
  %v440 = vpop.xlane.xlu0 %439
  %v441 = vsub.f32 %v436, %v440
  %v442 = vmul.f32 %v441, 1.442695
  %v443 = vpow.pop %v442
  %v444 = vsel %vm196, %v443, 0.0
  %445 = vadd.xlane.f32.xlu0 %v444
  %v446 = vpop.xlane.xlu0 %445
  %v447 = vrcp.pop %v446
  %v448 = vmul.f32 %v443, %v447
  %449 = vrot.lane.b32.xlu0 %v123, 48
  %v450 = vpop.permute.xlu0 %449
  %v453 = vsel %vm196, %v448, 0
  %455 = vmatpush.msra.mxu0 0.0
  %456 = vmatpush.msra.mxu0 0.0
  %457 = vmatpush.msra.mxu0 0.0
  %458 = vmatpush.msra.mxu0 0.0
  %459 = vmatpush.msra.mxu0 0.0
  %460 = vmatpush.msra.mxu0 0.0
  %461 = vmatpush.msra.mxu0 0.0
  %462 = vmatpush.msra.mxu0 0.0
  %463 = vmatpush.msra.mxu0 0.0
  %464 = vmatpush.msra.mxu0 0.0
  %465 = vmatpush.msra.mxu0 0.0
  %466 = vmatpush.msra.mxu0 0.0
  %467 = vmatpush.msra.mxu0 0.0
  %468 = vmatpush.msra.mxu0 0.0
  %469 = vmatpush.msra.mxu0 0.0
  %470 = vmatpush.msra.mxu0 %v450
  %471 = vmatmul.f32.gmra.mxu0 %v453
  %v472 = vpop.f32.mrf.mxu0
  %v473 = vadd.f32 0.0, %v472
  %474 = vdwg.mxu0
  %v476 = vsel %vm171, %v473, 0
  %478 = vmatpush.msra.mxu0 0.0
  %479 = vmatpush.msra.mxu0 0.0
  %480 = vmatpush.msra.mxu0 0.0
  %481 = vmatpush.msra.mxu0 0.0
  %482 = vmatpush.msra.mxu0 0.0
  %483 = vmatpush.msra.mxu0 0.0
  %484 = vmatpush.msra.mxu0 0.0
  %485 = vmatpush.msra.mxu0 0.0
  %486 = vmatpush.msra.mxu0 0.0
  %487 = vmatpush.msra.mxu0 0.0
  %488 = vmatpush.msra.mxu0 0.0
  %489 = vmatpush.msra.mxu0 0.0
  %490 = vmatpush.msra.mxu0 0.0
  %491 = vmatpush.msra.mxu0 0.0
  %492 = vmatpush.msra.mxu0 %v42
  %493 = vmatpush.msra.mxu0 %v41
  %494 = vmatmul.f32.gmra.mxu0 %v476
  %v495 = vpop.f32.mrf.mxu0
  %v496 = vadd.f32 0.0, %v495
  %497 = vdwg.mxu0
  %v499 = vsel %vm171, %v408, 0
  %501 = vmatpush.msra.mxu0 0.0
  %502 = vmatpush.msra.mxu0 0.0
  %503 = vmatpush.msra.mxu0 0.0
  %504 = vmatpush.msra.mxu0 0.0
  %505 = vmatpush.msra.mxu0 0.0
  %506 = vmatpush.msra.mxu0 0.0
  %507 = vmatpush.msra.mxu0 0.0
  %508 = vmatpush.msra.mxu0 0.0
  %509 = vmatpush.msra.mxu0 0.0
  %510 = vmatpush.msra.mxu0 0.0
  %511 = vmatpush.msra.mxu0 0.0
  %512 = vmatpush.msra.mxu0 0.0
  %513 = vmatpush.msra.mxu0 0.0
  %514 = vmatpush.msra.mxu0 0.0
  %515 = vmatpush.msra.mxu0 %v40
  %516 = vmatpush.msra.mxu0 %v39
  %517 = vmatmul.f32.gmra.mxu0 %v499
  %v518 = vpop.f32.mrf.mxu0
  %v519 = vadd.f32 %v496, %v518
  %520 = vdwg.mxu0
  %v521 = vperm.slane %v33, 2
  %523 = vrot.lane.b32.xlu0 %v126, 96
  %v524 = vpop.permute.xlu0 %523
  %v525 = vsel %vm171, %v126, 0
  %v527 = vsel %vm171, %v524, 0
  %529 = vmatpush.xpose.msra.mxu0 0.0
  %530 = vmatpush.xpose.msra.mxu0 0.0
  %531 = vmatpush.xpose.msra.mxu0 0.0
  %532 = vmatpush.xpose.msra.mxu0 0.0
  %533 = vmatpush.xpose.msra.mxu0 0.0
  %534 = vmatpush.xpose.msra.mxu0 0.0
  %535 = vmatpush.xpose.msra.mxu0 0.0
  %536 = vmatpush.xpose.msra.mxu0 0.0
  %537 = vmatpush.xpose.msra.mxu0 0.0
  %538 = vmatpush.xpose.msra.mxu0 0.0
  %539 = vmatpush.xpose.msra.mxu0 0.0
  %540 = vmatpush.xpose.msra.mxu0 0.0
  %541 = vmatpush.xpose.msra.mxu0 0.0
  %542 = vmatpush.xpose.msra.mxu0 0.0
  %543 = vmatpush.xpose.msra.mxu0 0.0
  %544 = vmatpush.xpose.msra.mxu0 %v527
  %545 = vmatmul.f32.gmra.mxu0 %v525
  %v546 = vpop.f32.mrf.mxu0
  %v547 = vadd.f32 %v521, %v546
  %548 = vdwg.mxu0
  %v549 = vsel %vm196, %v547, -inf
  %550 = vmax.xlane.f32.xlu0 %v549
  %v551 = vpop.xlane.xlu0 %550
  %v552 = vsub.f32 %v547, %v551
  %v553 = vmul.f32 %v552, 1.442695
  %v554 = vpow.pop %v553
  %v555 = vsel %vm196, %v554, 0.0
  %556 = vadd.xlane.f32.xlu0 %v555
  %v557 = vpop.xlane.xlu0 %556
  %v558 = vrcp.pop %v557
  %v559 = vmul.f32 %v554, %v558
  %560 = vrot.lane.b32.xlu0 %v126, 64
  %v561 = vpop.permute.xlu0 %560
  %v564 = vsel %vm196, %v559, 0
  %566 = vmatpush.msra.mxu0 0.0
  %567 = vmatpush.msra.mxu0 0.0
  %568 = vmatpush.msra.mxu0 0.0
  %569 = vmatpush.msra.mxu0 0.0
  %570 = vmatpush.msra.mxu0 0.0
  %571 = vmatpush.msra.mxu0 0.0
  %572 = vmatpush.msra.mxu0 0.0
  %573 = vmatpush.msra.mxu0 0.0
  %574 = vmatpush.msra.mxu0 0.0
  %575 = vmatpush.msra.mxu0 0.0
  %576 = vmatpush.msra.mxu0 0.0
  %577 = vmatpush.msra.mxu0 0.0
  %578 = vmatpush.msra.mxu0 0.0
  %579 = vmatpush.msra.mxu0 0.0
  %580 = vmatpush.msra.mxu0 0.0
  %581 = vmatpush.msra.mxu0 %v561
  %582 = vmatmul.f32.gmra.mxu0 %v564
  %v583 = vpop.f32.mrf.mxu0
  %v584 = vadd.f32 0.0, %v583
  %585 = vdwg.mxu0
  %586 = vrot.lane.b32.xlu0 %v126, 112
  %v587 = vpop.permute.xlu0 %586
  %588 = vrot.lane.b32.xlu0 %v126, 80
  %v589 = vpop.permute.xlu0 %588
  %v590 = vsel %vm171, %v587, 0
  %v592 = vsel %vm171, %v589, 0
  %594 = vmatpush.xpose.msra.mxu0 0.0
  %595 = vmatpush.xpose.msra.mxu0 0.0
  %596 = vmatpush.xpose.msra.mxu0 0.0
  %597 = vmatpush.xpose.msra.mxu0 0.0
  %598 = vmatpush.xpose.msra.mxu0 0.0
  %599 = vmatpush.xpose.msra.mxu0 0.0
  %600 = vmatpush.xpose.msra.mxu0 0.0
  %601 = vmatpush.xpose.msra.mxu0 0.0
  %602 = vmatpush.xpose.msra.mxu0 0.0
  %603 = vmatpush.xpose.msra.mxu0 0.0
  %604 = vmatpush.xpose.msra.mxu0 0.0
  %605 = vmatpush.xpose.msra.mxu0 0.0
  %606 = vmatpush.xpose.msra.mxu0 0.0
  %607 = vmatpush.xpose.msra.mxu0 0.0
  %608 = vmatpush.xpose.msra.mxu0 0.0
  %609 = vmatpush.xpose.msra.mxu0 %v592
  %610 = vmatmul.f32.gmra.mxu0 %v590
  %v611 = vpop.f32.mrf.mxu0
  %v612 = vadd.f32 %v521, %v611
  %613 = vdwg.mxu0
  %v614 = vsel %vm196, %v612, -inf
  %615 = vmax.xlane.f32.xlu0 %v614
  %v616 = vpop.xlane.xlu0 %615
  %v617 = vsub.f32 %v612, %v616
  %v618 = vmul.f32 %v617, 1.442695
  %v619 = vpow.pop %v618
  %v620 = vsel %vm196, %v619, 0.0
  %621 = vadd.xlane.f32.xlu0 %v620
  %v622 = vpop.xlane.xlu0 %621
  %v623 = vrcp.pop %v622
  %v624 = vmul.f32 %v619, %v623
  %625 = vrot.lane.b32.xlu0 %v126, 48
  %v626 = vpop.permute.xlu0 %625
  %v629 = vsel %vm196, %v624, 0
  %631 = vmatpush.msra.mxu0 0.0
  %632 = vmatpush.msra.mxu0 0.0
  %633 = vmatpush.msra.mxu0 0.0
  %634 = vmatpush.msra.mxu0 0.0
  %635 = vmatpush.msra.mxu0 0.0
  %636 = vmatpush.msra.mxu0 0.0
  %637 = vmatpush.msra.mxu0 0.0
  %638 = vmatpush.msra.mxu0 0.0
  %639 = vmatpush.msra.mxu0 0.0
  %640 = vmatpush.msra.mxu0 0.0
  %641 = vmatpush.msra.mxu0 0.0
  %642 = vmatpush.msra.mxu0 0.0
  %643 = vmatpush.msra.mxu0 0.0
  %644 = vmatpush.msra.mxu0 0.0
  %645 = vmatpush.msra.mxu0 0.0
  %646 = vmatpush.msra.mxu0 %v626
  %647 = vmatmul.f32.gmra.mxu0 %v629
  %v648 = vpop.f32.mrf.mxu0
  %v649 = vadd.f32 0.0, %v648
  %650 = vdwg.mxu0
  %v652 = vsel %vm171, %v649, 0
  %654 = vmatpush.msra.mxu0 0.0
  %655 = vmatpush.msra.mxu0 0.0
  %656 = vmatpush.msra.mxu0 0.0
  %657 = vmatpush.msra.mxu0 0.0
  %658 = vmatpush.msra.mxu0 0.0
  %659 = vmatpush.msra.mxu0 0.0
  %660 = vmatpush.msra.mxu0 0.0
  %661 = vmatpush.msra.mxu0 0.0
  %662 = vmatpush.msra.mxu0 0.0
  %663 = vmatpush.msra.mxu0 0.0
  %664 = vmatpush.msra.mxu0 0.0
  %665 = vmatpush.msra.mxu0 0.0
  %666 = vmatpush.msra.mxu0 0.0
  %667 = vmatpush.msra.mxu0 0.0
  %668 = vmatpush.msra.mxu0 %v42
  %669 = vmatpush.msra.mxu0 %v41
  %670 = vmatmul.f32.gmra.mxu0 %v652
  %v671 = vpop.f32.mrf.mxu0
  %v672 = vadd.f32 0.0, %v671
  %673 = vdwg.mxu0
  %v675 = vsel %vm171, %v584, 0
  %677 = vmatpush.msra.mxu0 0.0
  %678 = vmatpush.msra.mxu0 0.0
  %679 = vmatpush.msra.mxu0 0.0
  %680 = vmatpush.msra.mxu0 0.0
  %681 = vmatpush.msra.mxu0 0.0
  %682 = vmatpush.msra.mxu0 0.0
  %683 = vmatpush.msra.mxu0 0.0
  %684 = vmatpush.msra.mxu0 0.0
  %685 = vmatpush.msra.mxu0 0.0
  %686 = vmatpush.msra.mxu0 0.0
  %687 = vmatpush.msra.mxu0 0.0
  %688 = vmatpush.msra.mxu0 0.0
  %689 = vmatpush.msra.mxu0 0.0
  %690 = vmatpush.msra.mxu0 0.0
  %691 = vmatpush.msra.mxu0 %v40
  %692 = vmatpush.msra.mxu0 %v39
  %693 = vmatmul.f32.gmra.mxu0 %v675
  %v694 = vpop.f32.mrf.mxu0
  %v695 = vadd.f32 %v672, %v694
  %696 = vdwg.mxu0
  %v697 = vperm.slane %v33, 3
  %699 = vrot.lane.b32.xlu0 %v129, 96
  %v700 = vpop.permute.xlu0 %699
  %v701 = vsel %vm171, %v129, 0
  %v703 = vsel %vm171, %v700, 0
  %705 = vmatpush.xpose.msra.mxu0 0.0
  %706 = vmatpush.xpose.msra.mxu0 0.0
  %707 = vmatpush.xpose.msra.mxu0 0.0
  %708 = vmatpush.xpose.msra.mxu0 0.0
  %709 = vmatpush.xpose.msra.mxu0 0.0
  %710 = vmatpush.xpose.msra.mxu0 0.0
  %711 = vmatpush.xpose.msra.mxu0 0.0
  %712 = vmatpush.xpose.msra.mxu0 0.0
  %713 = vmatpush.xpose.msra.mxu0 0.0
  %714 = vmatpush.xpose.msra.mxu0 0.0
  %715 = vmatpush.xpose.msra.mxu0 0.0
  %716 = vmatpush.xpose.msra.mxu0 0.0
  %717 = vmatpush.xpose.msra.mxu0 0.0
  %718 = vmatpush.xpose.msra.mxu0 0.0
  %719 = vmatpush.xpose.msra.mxu0 0.0
  %720 = vmatpush.xpose.msra.mxu0 %v703
  %721 = vmatmul.f32.gmra.mxu0 %v701
  %v722 = vpop.f32.mrf.mxu0
  %v723 = vadd.f32 %v697, %v722
  %724 = vdwg.mxu0
  %v725 = vsel %vm196, %v723, -inf
  %726 = vmax.xlane.f32.xlu0 %v725
  %v727 = vpop.xlane.xlu0 %726
  %v728 = vsub.f32 %v723, %v727
  %v729 = vmul.f32 %v728, 1.442695
  %v730 = vpow.pop %v729
  %v731 = vsel %vm196, %v730, 0.0
  %732 = vadd.xlane.f32.xlu0 %v731
  %v733 = vpop.xlane.xlu0 %732
  %v734 = vrcp.pop %v733
  %v735 = vmul.f32 %v730, %v734
  %736 = vrot.lane.b32.xlu0 %v129, 64
  %v737 = vpop.permute.xlu0 %736
  %v740 = vsel %vm196, %v735, 0
  %742 = vmatpush.msra.mxu0 0.0
  %743 = vmatpush.msra.mxu0 0.0
  %744 = vmatpush.msra.mxu0 0.0
  %745 = vmatpush.msra.mxu0 0.0
  %746 = vmatpush.msra.mxu0 0.0
  %747 = vmatpush.msra.mxu0 0.0
  %748 = vmatpush.msra.mxu0 0.0
  %749 = vmatpush.msra.mxu0 0.0
  %750 = vmatpush.msra.mxu0 0.0
  %751 = vmatpush.msra.mxu0 0.0
  %752 = vmatpush.msra.mxu0 0.0
  %753 = vmatpush.msra.mxu0 0.0
  %754 = vmatpush.msra.mxu0 0.0
  %755 = vmatpush.msra.mxu0 0.0
  %756 = vmatpush.msra.mxu0 0.0
  %757 = vmatpush.msra.mxu0 %v737
  %758 = vmatmul.f32.gmra.mxu0 %v740
  %v759 = vpop.f32.mrf.mxu0
  %v760 = vadd.f32 0.0, %v759
  %761 = vdwg.mxu0
  %762 = vrot.lane.b32.xlu0 %v129, 112
  %v763 = vpop.permute.xlu0 %762
  %764 = vrot.lane.b32.xlu0 %v129, 80
  %v765 = vpop.permute.xlu0 %764
  %v766 = vsel %vm171, %v763, 0
  %v768 = vsel %vm171, %v765, 0
  %770 = vmatpush.xpose.msra.mxu0 0.0
  %771 = vmatpush.xpose.msra.mxu0 0.0
  %772 = vmatpush.xpose.msra.mxu0 0.0
  %773 = vmatpush.xpose.msra.mxu0 0.0
  %774 = vmatpush.xpose.msra.mxu0 0.0
  %775 = vmatpush.xpose.msra.mxu0 0.0
  %776 = vmatpush.xpose.msra.mxu0 0.0
  %777 = vmatpush.xpose.msra.mxu0 0.0
  %778 = vmatpush.xpose.msra.mxu0 0.0
  %779 = vmatpush.xpose.msra.mxu0 0.0
  %780 = vmatpush.xpose.msra.mxu0 0.0
  %781 = vmatpush.xpose.msra.mxu0 0.0
  %782 = vmatpush.xpose.msra.mxu0 0.0
  %783 = vmatpush.xpose.msra.mxu0 0.0
  %784 = vmatpush.xpose.msra.mxu0 0.0
  %785 = vmatpush.xpose.msra.mxu0 %v768
  %786 = vmatmul.f32.gmra.mxu0 %v766
  %v787 = vpop.f32.mrf.mxu0
  %v788 = vadd.f32 %v697, %v787
  %789 = vdwg.mxu0
  %v790 = vsel %vm196, %v788, -inf
  %791 = vmax.xlane.f32.xlu0 %v790
  %v792 = vpop.xlane.xlu0 %791
  %v793 = vsub.f32 %v788, %v792
  %v794 = vmul.f32 %v793, 1.442695
  %v795 = vpow.pop %v794
  %v796 = vsel %vm196, %v795, 0.0
  %797 = vadd.xlane.f32.xlu0 %v796
  %v798 = vpop.xlane.xlu0 %797
  %v799 = vrcp.pop %v798
  %v800 = vmul.f32 %v795, %v799
  %801 = vrot.lane.b32.xlu0 %v129, 48
  %v802 = vpop.permute.xlu0 %801
  %v805 = vsel %vm196, %v800, 0
  %807 = vmatpush.msra.mxu0 0.0
  %808 = vmatpush.msra.mxu0 0.0
  %809 = vmatpush.msra.mxu0 0.0
  %810 = vmatpush.msra.mxu0 0.0
  %811 = vmatpush.msra.mxu0 0.0
  %812 = vmatpush.msra.mxu0 0.0
  %813 = vmatpush.msra.mxu0 0.0
  %814 = vmatpush.msra.mxu0 0.0
  %815 = vmatpush.msra.mxu0 0.0
  %816 = vmatpush.msra.mxu0 0.0
  %817 = vmatpush.msra.mxu0 0.0
  %818 = vmatpush.msra.mxu0 0.0
  %819 = vmatpush.msra.mxu0 0.0
  %820 = vmatpush.msra.mxu0 0.0
  %821 = vmatpush.msra.mxu0 0.0
  %822 = vmatpush.msra.mxu0 %v802
  %823 = vmatmul.f32.gmra.mxu0 %v805
  %v824 = vpop.f32.mrf.mxu0
  %v825 = vadd.f32 0.0, %v824
  %826 = vdwg.mxu0
  %v828 = vsel %vm171, %v825, 0
  %830 = vmatpush.msra.mxu0 0.0
  %831 = vmatpush.msra.mxu0 0.0
  %832 = vmatpush.msra.mxu0 0.0
  %833 = vmatpush.msra.mxu0 0.0
  %834 = vmatpush.msra.mxu0 0.0
  %835 = vmatpush.msra.mxu0 0.0
  %836 = vmatpush.msra.mxu0 0.0
  %837 = vmatpush.msra.mxu0 0.0
  %838 = vmatpush.msra.mxu0 0.0
  %839 = vmatpush.msra.mxu0 0.0
  %840 = vmatpush.msra.mxu0 0.0
  %841 = vmatpush.msra.mxu0 0.0
  %842 = vmatpush.msra.mxu0 0.0
  %843 = vmatpush.msra.mxu0 0.0
  %844 = vmatpush.msra.mxu0 %v42
  %845 = vmatpush.msra.mxu0 %v41
  %846 = vmatmul.f32.gmra.mxu0 %v828
  %v847 = vpop.f32.mrf.mxu0
  %v848 = vadd.f32 0.0, %v847
  %849 = vdwg.mxu0
  %v851 = vsel %vm171, %v760, 0
  %853 = vmatpush.msra.mxu0 0.0
  %854 = vmatpush.msra.mxu0 0.0
  %855 = vmatpush.msra.mxu0 0.0
  %856 = vmatpush.msra.mxu0 0.0
  %857 = vmatpush.msra.mxu0 0.0
  %858 = vmatpush.msra.mxu0 0.0
  %859 = vmatpush.msra.mxu0 0.0
  %860 = vmatpush.msra.mxu0 0.0
  %861 = vmatpush.msra.mxu0 0.0
  %862 = vmatpush.msra.mxu0 0.0
  %863 = vmatpush.msra.mxu0 0.0
  %864 = vmatpush.msra.mxu0 0.0
  %865 = vmatpush.msra.mxu0 0.0
  %866 = vmatpush.msra.mxu0 0.0
  %867 = vmatpush.msra.mxu0 %v40
  %868 = vmatpush.msra.mxu0 %v39
  %869 = vmatmul.f32.gmra.mxu0 %v851
  %v870 = vpop.f32.mrf.mxu0
  %v871 = vadd.f32 %v848, %v870
  %872 = vdwg.mxu0
  %v873 = vperm.slane %v33, 4
  %875 = vrot.lane.b32.xlu0 %v132, 96
  %v876 = vpop.permute.xlu0 %875
  %v877 = vsel %vm171, %v132, 0
  %v879 = vsel %vm171, %v876, 0
  %881 = vmatpush.xpose.msra.mxu0 0.0
  %882 = vmatpush.xpose.msra.mxu0 0.0
  %883 = vmatpush.xpose.msra.mxu0 0.0
  %884 = vmatpush.xpose.msra.mxu0 0.0
  %885 = vmatpush.xpose.msra.mxu0 0.0
  %886 = vmatpush.xpose.msra.mxu0 0.0
  %887 = vmatpush.xpose.msra.mxu0 0.0
  %888 = vmatpush.xpose.msra.mxu0 0.0
  %889 = vmatpush.xpose.msra.mxu0 0.0
  %890 = vmatpush.xpose.msra.mxu0 0.0
  %891 = vmatpush.xpose.msra.mxu0 0.0
  %892 = vmatpush.xpose.msra.mxu0 0.0
  %893 = vmatpush.xpose.msra.mxu0 0.0
  %894 = vmatpush.xpose.msra.mxu0 0.0
  %895 = vmatpush.xpose.msra.mxu0 0.0
  %896 = vmatpush.xpose.msra.mxu0 %v879
  %897 = vmatmul.f32.gmra.mxu0 %v877
  %v898 = vpop.f32.mrf.mxu0
  %v899 = vadd.f32 %v873, %v898
  %900 = vdwg.mxu0
  %v901 = vsel %vm196, %v899, -inf
  %902 = vmax.xlane.f32.xlu0 %v901
  %v903 = vpop.xlane.xlu0 %902
  %v904 = vsub.f32 %v899, %v903
  %v905 = vmul.f32 %v904, 1.442695
  %v906 = vpow.pop %v905
  %v907 = vsel %vm196, %v906, 0.0
  %908 = vadd.xlane.f32.xlu0 %v907
  %v909 = vpop.xlane.xlu0 %908
  %v910 = vrcp.pop %v909
  %v911 = vmul.f32 %v906, %v910
  %912 = vrot.lane.b32.xlu0 %v132, 64
  %v913 = vpop.permute.xlu0 %912
  %v916 = vsel %vm196, %v911, 0
  %918 = vmatpush.msra.mxu0 0.0
  %919 = vmatpush.msra.mxu0 0.0
  %920 = vmatpush.msra.mxu0 0.0
  %921 = vmatpush.msra.mxu0 0.0
  %922 = vmatpush.msra.mxu0 0.0
  %923 = vmatpush.msra.mxu0 0.0
  %924 = vmatpush.msra.mxu0 0.0
  %925 = vmatpush.msra.mxu0 0.0
  %926 = vmatpush.msra.mxu0 0.0
  %927 = vmatpush.msra.mxu0 0.0
  %928 = vmatpush.msra.mxu0 0.0
  %929 = vmatpush.msra.mxu0 0.0
  %930 = vmatpush.msra.mxu0 0.0
  %931 = vmatpush.msra.mxu0 0.0
  %932 = vmatpush.msra.mxu0 0.0
  %933 = vmatpush.msra.mxu0 %v913
  %934 = vmatmul.f32.gmra.mxu0 %v916
  %v935 = vpop.f32.mrf.mxu0
  %v936 = vadd.f32 0.0, %v935
  %937 = vdwg.mxu0
  %938 = vrot.lane.b32.xlu0 %v132, 112
  %v939 = vpop.permute.xlu0 %938
  %940 = vrot.lane.b32.xlu0 %v132, 80
  %v941 = vpop.permute.xlu0 %940
  %v942 = vsel %vm171, %v939, 0
  %v944 = vsel %vm171, %v941, 0
  %946 = vmatpush.xpose.msra.mxu0 0.0
  %947 = vmatpush.xpose.msra.mxu0 0.0
  %948 = vmatpush.xpose.msra.mxu0 0.0
  %949 = vmatpush.xpose.msra.mxu0 0.0
  %950 = vmatpush.xpose.msra.mxu0 0.0
  %951 = vmatpush.xpose.msra.mxu0 0.0
  %952 = vmatpush.xpose.msra.mxu0 0.0
  %953 = vmatpush.xpose.msra.mxu0 0.0
  %954 = vmatpush.xpose.msra.mxu0 0.0
  %955 = vmatpush.xpose.msra.mxu0 0.0
  %956 = vmatpush.xpose.msra.mxu0 0.0
  %957 = vmatpush.xpose.msra.mxu0 0.0
  %958 = vmatpush.xpose.msra.mxu0 0.0
  %959 = vmatpush.xpose.msra.mxu0 0.0
  %960 = vmatpush.xpose.msra.mxu0 0.0
  %961 = vmatpush.xpose.msra.mxu0 %v944
  %962 = vmatmul.f32.gmra.mxu0 %v942
  %v963 = vpop.f32.mrf.mxu0
  %v964 = vadd.f32 %v873, %v963
  %965 = vdwg.mxu0
  %v966 = vsel %vm196, %v964, -inf
  %967 = vmax.xlane.f32.xlu0 %v966
  %v968 = vpop.xlane.xlu0 %967
  %v969 = vsub.f32 %v964, %v968
  %v970 = vmul.f32 %v969, 1.442695
  %v971 = vpow.pop %v970
  %v972 = vsel %vm196, %v971, 0.0
  %973 = vadd.xlane.f32.xlu0 %v972
  %v974 = vpop.xlane.xlu0 %973
  %v975 = vrcp.pop %v974
  %v976 = vmul.f32 %v971, %v975
  %977 = vrot.lane.b32.xlu0 %v132, 48
  %v978 = vpop.permute.xlu0 %977
  %v981 = vsel %vm196, %v976, 0
  %983 = vmatpush.msra.mxu0 0.0
  %984 = vmatpush.msra.mxu0 0.0
  %985 = vmatpush.msra.mxu0 0.0
  %986 = vmatpush.msra.mxu0 0.0
  %987 = vmatpush.msra.mxu0 0.0
  %988 = vmatpush.msra.mxu0 0.0
  %989 = vmatpush.msra.mxu0 0.0
  %990 = vmatpush.msra.mxu0 0.0
  %991 = vmatpush.msra.mxu0 0.0
  %992 = vmatpush.msra.mxu0 0.0
  %993 = vmatpush.msra.mxu0 0.0
  %994 = vmatpush.msra.mxu0 0.0
  %995 = vmatpush.msra.mxu0 0.0
  %996 = vmatpush.msra.mxu0 0.0
  %997 = vmatpush.msra.mxu0 0.0
  %998 = vmatpush.msra.mxu0 %v978
  %999 = vmatmul.f32.gmra.mxu0 %v981
  %v1000 = vpop.f32.mrf.mxu0
  %v1001 = vadd.f32 0.0, %v1000
  %1002 = vdwg.mxu0
  %v1004 = vsel %vm171, %v1001, 0
  %1006 = vmatpush.msra.mxu0 0.0
  %1007 = vmatpush.msra.mxu0 0.0
  %1008 = vmatpush.msra.mxu0 0.0
  %1009 = vmatpush.msra.mxu0 0.0
  %1010 = vmatpush.msra.mxu0 0.0
  %1011 = vmatpush.msra.mxu0 0.0
  %1012 = vmatpush.msra.mxu0 0.0
  %1013 = vmatpush.msra.mxu0 0.0
  %1014 = vmatpush.msra.mxu0 0.0
  %1015 = vmatpush.msra.mxu0 0.0
  %1016 = vmatpush.msra.mxu0 0.0
  %1017 = vmatpush.msra.mxu0 0.0
  %1018 = vmatpush.msra.mxu0 0.0
  %1019 = vmatpush.msra.mxu0 0.0
  %1020 = vmatpush.msra.mxu0 %v42
  %1021 = vmatpush.msra.mxu0 %v41
  %1022 = vmatmul.f32.gmra.mxu0 %v1004
  %v1023 = vpop.f32.mrf.mxu0
  %v1024 = vadd.f32 0.0, %v1023
  %1025 = vdwg.mxu0
  %v1027 = vsel %vm171, %v936, 0
  %1029 = vmatpush.msra.mxu0 0.0
  %1030 = vmatpush.msra.mxu0 0.0
  %1031 = vmatpush.msra.mxu0 0.0
  %1032 = vmatpush.msra.mxu0 0.0
  %1033 = vmatpush.msra.mxu0 0.0
  %1034 = vmatpush.msra.mxu0 0.0
  %1035 = vmatpush.msra.mxu0 0.0
  %1036 = vmatpush.msra.mxu0 0.0
  %1037 = vmatpush.msra.mxu0 0.0
  %1038 = vmatpush.msra.mxu0 0.0
  %1039 = vmatpush.msra.mxu0 0.0
  %1040 = vmatpush.msra.mxu0 0.0
  %1041 = vmatpush.msra.mxu0 0.0
  %1042 = vmatpush.msra.mxu0 0.0
  %1043 = vmatpush.msra.mxu0 %v40
  %1044 = vmatpush.msra.mxu0 %v39
  %1045 = vmatmul.f32.gmra.mxu0 %v1027
  %v1046 = vpop.f32.mrf.mxu0
  %v1047 = vadd.f32 %v1024, %v1046
  %1048 = vdwg.mxu0
  %v1049 = vperm.slane %v33, 5
  %1051 = vrot.lane.b32.xlu0 %v135, 96
  %v1052 = vpop.permute.xlu0 %1051
  %v1053 = vsel %vm171, %v135, 0
  %v1055 = vsel %vm171, %v1052, 0
  %1057 = vmatpush.xpose.msra.mxu0 0.0
  %1058 = vmatpush.xpose.msra.mxu0 0.0
  %1059 = vmatpush.xpose.msra.mxu0 0.0
  %1060 = vmatpush.xpose.msra.mxu0 0.0
  %1061 = vmatpush.xpose.msra.mxu0 0.0
  %1062 = vmatpush.xpose.msra.mxu0 0.0
  %1063 = vmatpush.xpose.msra.mxu0 0.0
  %1064 = vmatpush.xpose.msra.mxu0 0.0
  %1065 = vmatpush.xpose.msra.mxu0 0.0
  %1066 = vmatpush.xpose.msra.mxu0 0.0
  %1067 = vmatpush.xpose.msra.mxu0 0.0
  %1068 = vmatpush.xpose.msra.mxu0 0.0
  %1069 = vmatpush.xpose.msra.mxu0 0.0
  %1070 = vmatpush.xpose.msra.mxu0 0.0
  %1071 = vmatpush.xpose.msra.mxu0 0.0
  %1072 = vmatpush.xpose.msra.mxu0 %v1055
  %1073 = vmatmul.f32.gmra.mxu0 %v1053
  %v1074 = vpop.f32.mrf.mxu0
  %v1075 = vadd.f32 %v1049, %v1074
  %1076 = vdwg.mxu0
  %v1077 = vsel %vm196, %v1075, -inf
  %1078 = vmax.xlane.f32.xlu0 %v1077
  %v1079 = vpop.xlane.xlu0 %1078
  %v1080 = vsub.f32 %v1075, %v1079
  %v1081 = vmul.f32 %v1080, 1.442695
  %v1082 = vpow.pop %v1081
  %v1083 = vsel %vm196, %v1082, 0.0
  %1084 = vadd.xlane.f32.xlu0 %v1083
  %v1085 = vpop.xlane.xlu0 %1084
  %v1086 = vrcp.pop %v1085
  %v1087 = vmul.f32 %v1082, %v1086
  %1088 = vrot.lane.b32.xlu0 %v135, 64
  %v1089 = vpop.permute.xlu0 %1088
  %v1092 = vsel %vm196, %v1087, 0
  %1094 = vmatpush.msra.mxu0 0.0
  %1095 = vmatpush.msra.mxu0 0.0
  %1096 = vmatpush.msra.mxu0 0.0
  %1097 = vmatpush.msra.mxu0 0.0
  %1098 = vmatpush.msra.mxu0 0.0
  %1099 = vmatpush.msra.mxu0 0.0
  %1100 = vmatpush.msra.mxu0 0.0
  %1101 = vmatpush.msra.mxu0 0.0
  %1102 = vmatpush.msra.mxu0 0.0
  %1103 = vmatpush.msra.mxu0 0.0
  %1104 = vmatpush.msra.mxu0 0.0
  %1105 = vmatpush.msra.mxu0 0.0
  %1106 = vmatpush.msra.mxu0 0.0
  %1107 = vmatpush.msra.mxu0 0.0
  %1108 = vmatpush.msra.mxu0 0.0
  %1109 = vmatpush.msra.mxu0 %v1089
  %1110 = vmatmul.f32.gmra.mxu0 %v1092
  %v1111 = vpop.f32.mrf.mxu0
  %v1112 = vadd.f32 0.0, %v1111
  %1113 = vdwg.mxu0
  %1114 = vrot.lane.b32.xlu0 %v135, 112
  %v1115 = vpop.permute.xlu0 %1114
  %1116 = vrot.lane.b32.xlu0 %v135, 80
  %v1117 = vpop.permute.xlu0 %1116
  %v1118 = vsel %vm171, %v1115, 0
  %v1120 = vsel %vm171, %v1117, 0
  %1122 = vmatpush.xpose.msra.mxu0 0.0
  %1123 = vmatpush.xpose.msra.mxu0 0.0
  %1124 = vmatpush.xpose.msra.mxu0 0.0
  %1125 = vmatpush.xpose.msra.mxu0 0.0
  %1126 = vmatpush.xpose.msra.mxu0 0.0
  %1127 = vmatpush.xpose.msra.mxu0 0.0
  %1128 = vmatpush.xpose.msra.mxu0 0.0
  %1129 = vmatpush.xpose.msra.mxu0 0.0
  %1130 = vmatpush.xpose.msra.mxu0 0.0
  %1131 = vmatpush.xpose.msra.mxu0 0.0
  %1132 = vmatpush.xpose.msra.mxu0 0.0
  %1133 = vmatpush.xpose.msra.mxu0 0.0
  %1134 = vmatpush.xpose.msra.mxu0 0.0
  %1135 = vmatpush.xpose.msra.mxu0 0.0
  %1136 = vmatpush.xpose.msra.mxu0 0.0
  %1137 = vmatpush.xpose.msra.mxu0 %v1120
  %1138 = vmatmul.f32.gmra.mxu0 %v1118
  %v1139 = vpop.f32.mrf.mxu0
  %v1140 = vadd.f32 %v1049, %v1139
  %1141 = vdwg.mxu0
  %v1142 = vsel %vm196, %v1140, -inf
  %1143 = vmax.xlane.f32.xlu0 %v1142
  %v1144 = vpop.xlane.xlu0 %1143
  %v1145 = vsub.f32 %v1140, %v1144
  %v1146 = vmul.f32 %v1145, 1.442695
  %v1147 = vpow.pop %v1146
  %v1148 = vsel %vm196, %v1147, 0.0
  %1149 = vadd.xlane.f32.xlu0 %v1148
  %v1150 = vpop.xlane.xlu0 %1149
  %v1151 = vrcp.pop %v1150
  %v1152 = vmul.f32 %v1147, %v1151
  %1153 = vrot.lane.b32.xlu0 %v135, 48
  %v1154 = vpop.permute.xlu0 %1153
  %v1157 = vsel %vm196, %v1152, 0
  %1159 = vmatpush.msra.mxu0 0.0
  %1160 = vmatpush.msra.mxu0 0.0
  %1161 = vmatpush.msra.mxu0 0.0
  %1162 = vmatpush.msra.mxu0 0.0
  %1163 = vmatpush.msra.mxu0 0.0
  %1164 = vmatpush.msra.mxu0 0.0
  %1165 = vmatpush.msra.mxu0 0.0
  %1166 = vmatpush.msra.mxu0 0.0
  %1167 = vmatpush.msra.mxu0 0.0
  %1168 = vmatpush.msra.mxu0 0.0
  %1169 = vmatpush.msra.mxu0 0.0
  %1170 = vmatpush.msra.mxu0 0.0
  %1171 = vmatpush.msra.mxu0 0.0
  %1172 = vmatpush.msra.mxu0 0.0
  %1173 = vmatpush.msra.mxu0 0.0
  %1174 = vmatpush.msra.mxu0 %v1154
  %1175 = vmatmul.f32.gmra.mxu0 %v1157
  %v1176 = vpop.f32.mrf.mxu0
  %v1177 = vadd.f32 0.0, %v1176
  %1178 = vdwg.mxu0
  %v1180 = vsel %vm171, %v1177, 0
  %1182 = vmatpush.msra.mxu0 0.0
  %1183 = vmatpush.msra.mxu0 0.0
  %1184 = vmatpush.msra.mxu0 0.0
  %1185 = vmatpush.msra.mxu0 0.0
  %1186 = vmatpush.msra.mxu0 0.0
  %1187 = vmatpush.msra.mxu0 0.0
  %1188 = vmatpush.msra.mxu0 0.0
  %1189 = vmatpush.msra.mxu0 0.0
  %1190 = vmatpush.msra.mxu0 0.0
  %1191 = vmatpush.msra.mxu0 0.0
  %1192 = vmatpush.msra.mxu0 0.0
  %1193 = vmatpush.msra.mxu0 0.0
  %1194 = vmatpush.msra.mxu0 0.0
  %1195 = vmatpush.msra.mxu0 0.0
  %1196 = vmatpush.msra.mxu0 %v42
  %1197 = vmatpush.msra.mxu0 %v41
  %1198 = vmatmul.f32.gmra.mxu0 %v1180
  %v1199 = vpop.f32.mrf.mxu0
  %v1200 = vadd.f32 0.0, %v1199
  %1201 = vdwg.mxu0
  %v1203 = vsel %vm171, %v1112, 0
  %1205 = vmatpush.msra.mxu0 0.0
  %1206 = vmatpush.msra.mxu0 0.0
  %1207 = vmatpush.msra.mxu0 0.0
  %1208 = vmatpush.msra.mxu0 0.0
  %1209 = vmatpush.msra.mxu0 0.0
  %1210 = vmatpush.msra.mxu0 0.0
  %1211 = vmatpush.msra.mxu0 0.0
  %1212 = vmatpush.msra.mxu0 0.0
  %1213 = vmatpush.msra.mxu0 0.0
  %1214 = vmatpush.msra.mxu0 0.0
  %1215 = vmatpush.msra.mxu0 0.0
  %1216 = vmatpush.msra.mxu0 0.0
  %1217 = vmatpush.msra.mxu0 0.0
  %1218 = vmatpush.msra.mxu0 0.0
  %1219 = vmatpush.msra.mxu0 %v40
  %1220 = vmatpush.msra.mxu0 %v39
  %1221 = vmatmul.f32.gmra.mxu0 %v1203
  %v1222 = vpop.f32.mrf.mxu0
  %v1223 = vadd.f32 %v1200, %v1222
  %1224 = vdwg.mxu0
  %v1225 = vperm.slane %v33, 6
  %1227 = vrot.lane.b32.xlu0 %v138, 96
  %v1228 = vpop.permute.xlu0 %1227
  %v1229 = vsel %vm171, %v138, 0
  %v1231 = vsel %vm171, %v1228, 0
  %1233 = vmatpush.xpose.msra.mxu0 0.0
  %1234 = vmatpush.xpose.msra.mxu0 0.0
  %1235 = vmatpush.xpose.msra.mxu0 0.0
  %1236 = vmatpush.xpose.msra.mxu0 0.0
  %1237 = vmatpush.xpose.msra.mxu0 0.0
  %1238 = vmatpush.xpose.msra.mxu0 0.0
  %1239 = vmatpush.xpose.msra.mxu0 0.0
  %1240 = vmatpush.xpose.msra.mxu0 0.0
  %1241 = vmatpush.xpose.msra.mxu0 0.0
  %1242 = vmatpush.xpose.msra.mxu0 0.0
  %1243 = vmatpush.xpose.msra.mxu0 0.0
  %1244 = vmatpush.xpose.msra.mxu0 0.0
  %1245 = vmatpush.xpose.msra.mxu0 0.0
  %1246 = vmatpush.xpose.msra.mxu0 0.0
  %1247 = vmatpush.xpose.msra.mxu0 0.0
  %1248 = vmatpush.xpose.msra.mxu0 %v1231
  %1249 = vmatmul.f32.gmra.mxu0 %v1229
  %v1250 = vpop.f32.mrf.mxu0
  %v1251 = vadd.f32 %v1225, %v1250
  %1252 = vdwg.mxu0
  %v1253 = vsel %vm196, %v1251, -inf
  %1254 = vmax.xlane.f32.xlu0 %v1253
  %v1255 = vpop.xlane.xlu0 %1254
  %v1256 = vsub.f32 %v1251, %v1255
  %v1257 = vmul.f32 %v1256, 1.442695
  %v1258 = vpow.pop %v1257
  %v1259 = vsel %vm196, %v1258, 0.0
  %1260 = vadd.xlane.f32.xlu0 %v1259
  %v1261 = vpop.xlane.xlu0 %1260
  %v1262 = vrcp.pop %v1261
  %v1263 = vmul.f32 %v1258, %v1262
  %1264 = vrot.lane.b32.xlu0 %v138, 64
  %v1265 = vpop.permute.xlu0 %1264
  %v1268 = vsel %vm196, %v1263, 0
  %1270 = vmatpush.msra.mxu0 0.0
  %1271 = vmatpush.msra.mxu0 0.0
  %1272 = vmatpush.msra.mxu0 0.0
  %1273 = vmatpush.msra.mxu0 0.0
  %1274 = vmatpush.msra.mxu0 0.0
  %1275 = vmatpush.msra.mxu0 0.0
  %1276 = vmatpush.msra.mxu0 0.0
  %1277 = vmatpush.msra.mxu0 0.0
  %1278 = vmatpush.msra.mxu0 0.0
  %1279 = vmatpush.msra.mxu0 0.0
  %1280 = vmatpush.msra.mxu0 0.0
  %1281 = vmatpush.msra.mxu0 0.0
  %1282 = vmatpush.msra.mxu0 0.0
  %1283 = vmatpush.msra.mxu0 0.0
  %1284 = vmatpush.msra.mxu0 0.0
  %1285 = vmatpush.msra.mxu0 %v1265
  %1286 = vmatmul.f32.gmra.mxu0 %v1268
  %v1287 = vpop.f32.mrf.mxu0
  %v1288 = vadd.f32 0.0, %v1287
  %1289 = vdwg.mxu0
  %1290 = vrot.lane.b32.xlu0 %v138, 112
  %v1291 = vpop.permute.xlu0 %1290
  %1292 = vrot.lane.b32.xlu0 %v138, 80
  %v1293 = vpop.permute.xlu0 %1292
  %v1294 = vsel %vm171, %v1291, 0
  %v1296 = vsel %vm171, %v1293, 0
  %1298 = vmatpush.xpose.msra.mxu0 0.0
  %1299 = vmatpush.xpose.msra.mxu0 0.0
  %1300 = vmatpush.xpose.msra.mxu0 0.0
  %1301 = vmatpush.xpose.msra.mxu0 0.0
  %1302 = vmatpush.xpose.msra.mxu0 0.0
  %1303 = vmatpush.xpose.msra.mxu0 0.0
  %1304 = vmatpush.xpose.msra.mxu0 0.0
  %1305 = vmatpush.xpose.msra.mxu0 0.0
  %1306 = vmatpush.xpose.msra.mxu0 0.0
  %1307 = vmatpush.xpose.msra.mxu0 0.0
  %1308 = vmatpush.xpose.msra.mxu0 0.0
  %1309 = vmatpush.xpose.msra.mxu0 0.0
  %1310 = vmatpush.xpose.msra.mxu0 0.0
  %1311 = vmatpush.xpose.msra.mxu0 0.0
  %1312 = vmatpush.xpose.msra.mxu0 0.0
  %1313 = vmatpush.xpose.msra.mxu0 %v1296
  %1314 = vmatmul.f32.gmra.mxu0 %v1294
  %v1315 = vpop.f32.mrf.mxu0
  %v1316 = vadd.f32 %v1225, %v1315
  %1317 = vdwg.mxu0
  %v1318 = vsel %vm196, %v1316, -inf
  %1319 = vmax.xlane.f32.xlu0 %v1318
  %v1320 = vpop.xlane.xlu0 %1319
  %v1321 = vsub.f32 %v1316, %v1320
  %v1322 = vmul.f32 %v1321, 1.442695
  %v1323 = vpow.pop %v1322
  %v1324 = vsel %vm196, %v1323, 0.0
  %1325 = vadd.xlane.f32.xlu0 %v1324
  %v1326 = vpop.xlane.xlu0 %1325
  %v1327 = vrcp.pop %v1326
  %v1328 = vmul.f32 %v1323, %v1327
  %1329 = vrot.lane.b32.xlu0 %v138, 48
  %v1330 = vpop.permute.xlu0 %1329
  %v1333 = vsel %vm196, %v1328, 0
  %1335 = vmatpush.msra.mxu0 0.0
  %1336 = vmatpush.msra.mxu0 0.0
  %1337 = vmatpush.msra.mxu0 0.0
  %1338 = vmatpush.msra.mxu0 0.0
  %1339 = vmatpush.msra.mxu0 0.0
  %1340 = vmatpush.msra.mxu0 0.0
  %1341 = vmatpush.msra.mxu0 0.0
  %1342 = vmatpush.msra.mxu0 0.0
  %1343 = vmatpush.msra.mxu0 0.0
  %1344 = vmatpush.msra.mxu0 0.0
  %1345 = vmatpush.msra.mxu0 0.0
  %1346 = vmatpush.msra.mxu0 0.0
  %1347 = vmatpush.msra.mxu0 0.0
  %1348 = vmatpush.msra.mxu0 0.0
  %1349 = vmatpush.msra.mxu0 0.0
  %1350 = vmatpush.msra.mxu0 %v1330
  %1351 = vmatmul.f32.gmra.mxu0 %v1333
  %v1352 = vpop.f32.mrf.mxu0
  %v1353 = vadd.f32 0.0, %v1352
  %1354 = vdwg.mxu0
  %v1356 = vsel %vm171, %v1353, 0
  %1358 = vmatpush.msra.mxu0 0.0
  %1359 = vmatpush.msra.mxu0 0.0
  %1360 = vmatpush.msra.mxu0 0.0
  %1361 = vmatpush.msra.mxu0 0.0
  %1362 = vmatpush.msra.mxu0 0.0
  %1363 = vmatpush.msra.mxu0 0.0
  %1364 = vmatpush.msra.mxu0 0.0
  %1365 = vmatpush.msra.mxu0 0.0
  %1366 = vmatpush.msra.mxu0 0.0
  %1367 = vmatpush.msra.mxu0 0.0
  %1368 = vmatpush.msra.mxu0 0.0
  %1369 = vmatpush.msra.mxu0 0.0
  %1370 = vmatpush.msra.mxu0 0.0
  %1371 = vmatpush.msra.mxu0 0.0
  %1372 = vmatpush.msra.mxu0 %v42
  %1373 = vmatpush.msra.mxu0 %v41
  %1374 = vmatmul.f32.gmra.mxu0 %v1356
  %v1375 = vpop.f32.mrf.mxu0
  %v1376 = vadd.f32 0.0, %v1375
  %1377 = vdwg.mxu0
  %v1379 = vsel %vm171, %v1288, 0
  %1381 = vmatpush.msra.mxu0 0.0
  %1382 = vmatpush.msra.mxu0 0.0
  %1383 = vmatpush.msra.mxu0 0.0
  %1384 = vmatpush.msra.mxu0 0.0
  %1385 = vmatpush.msra.mxu0 0.0
  %1386 = vmatpush.msra.mxu0 0.0
  %1387 = vmatpush.msra.mxu0 0.0
  %1388 = vmatpush.msra.mxu0 0.0
  %1389 = vmatpush.msra.mxu0 0.0
  %1390 = vmatpush.msra.mxu0 0.0
  %1391 = vmatpush.msra.mxu0 0.0
  %1392 = vmatpush.msra.mxu0 0.0
  %1393 = vmatpush.msra.mxu0 0.0
  %1394 = vmatpush.msra.mxu0 0.0
  %1395 = vmatpush.msra.mxu0 %v40
  %1396 = vmatpush.msra.mxu0 %v39
  %1397 = vmatmul.f32.gmra.mxu0 %v1379
  %v1398 = vpop.f32.mrf.mxu0
  %v1399 = vadd.f32 %v1376, %v1398
  %1400 = vdwg.mxu0
  %v1401 = vperm.slane %v33, 7
  %1403 = vrot.lane.b32.xlu0 %v141, 96
  %v1404 = vpop.permute.xlu0 %1403
  %v1405 = vsel %vm171, %v141, 0
  %v1407 = vsel %vm171, %v1404, 0
  %1409 = vmatpush.xpose.msra.mxu0 0.0
  %1410 = vmatpush.xpose.msra.mxu0 0.0
  %1411 = vmatpush.xpose.msra.mxu0 0.0
  %1412 = vmatpush.xpose.msra.mxu0 0.0
  %1413 = vmatpush.xpose.msra.mxu0 0.0
  %1414 = vmatpush.xpose.msra.mxu0 0.0
  %1415 = vmatpush.xpose.msra.mxu0 0.0
  %1416 = vmatpush.xpose.msra.mxu0 0.0
  %1417 = vmatpush.xpose.msra.mxu0 0.0
  %1418 = vmatpush.xpose.msra.mxu0 0.0
  %1419 = vmatpush.xpose.msra.mxu0 0.0
  %1420 = vmatpush.xpose.msra.mxu0 0.0
  %1421 = vmatpush.xpose.msra.mxu0 0.0
  %1422 = vmatpush.xpose.msra.mxu0 0.0
  %1423 = vmatpush.xpose.msra.mxu0 0.0
  %1424 = vmatpush.xpose.msra.mxu0 %v1407
  %1425 = vmatmul.f32.gmra.mxu0 %v1405
  %v1426 = vpop.f32.mrf.mxu0
  %v1427 = vadd.f32 %v1401, %v1426
  %1428 = vdwg.mxu0
  %v1429 = vsel %vm196, %v1427, -inf
  %1430 = vmax.xlane.f32.xlu0 %v1429
  %v1431 = vpop.xlane.xlu0 %1430
  %v1432 = vsub.f32 %v1427, %v1431
  %v1433 = vmul.f32 %v1432, 1.442695
  %v1434 = vpow.pop %v1433
  %v1435 = vsel %vm196, %v1434, 0.0
  %1436 = vadd.xlane.f32.xlu0 %v1435
  %v1437 = vpop.xlane.xlu0 %1436
  %v1438 = vrcp.pop %v1437
  %v1439 = vmul.f32 %v1434, %v1438
  %1440 = vrot.lane.b32.xlu0 %v141, 64
  %v1441 = vpop.permute.xlu0 %1440
  %v1444 = vsel %vm196, %v1439, 0
  %1446 = vmatpush.msra.mxu0 0.0
  %1447 = vmatpush.msra.mxu0 0.0
  %1448 = vmatpush.msra.mxu0 0.0
  %1449 = vmatpush.msra.mxu0 0.0
  %1450 = vmatpush.msra.mxu0 0.0
  %1451 = vmatpush.msra.mxu0 0.0
  %1452 = vmatpush.msra.mxu0 0.0
  %1453 = vmatpush.msra.mxu0 0.0
  %1454 = vmatpush.msra.mxu0 0.0
  %1455 = vmatpush.msra.mxu0 0.0
  %1456 = vmatpush.msra.mxu0 0.0
  %1457 = vmatpush.msra.mxu0 0.0
  %1458 = vmatpush.msra.mxu0 0.0
  %1459 = vmatpush.msra.mxu0 0.0
  %1460 = vmatpush.msra.mxu0 0.0
  %1461 = vmatpush.msra.mxu0 %v1441
  %1462 = vmatmul.f32.gmra.mxu0 %v1444
  %v1463 = vpop.f32.mrf.mxu0
  %v1464 = vadd.f32 0.0, %v1463
  %1465 = vdwg.mxu0
  %1466 = vrot.lane.b32.xlu0 %v141, 112
  %v1467 = vpop.permute.xlu0 %1466
  %1468 = vrot.lane.b32.xlu0 %v141, 80
  %v1469 = vpop.permute.xlu0 %1468
  %v1470 = vsel %vm171, %v1467, 0
  %v1472 = vsel %vm171, %v1469, 0
  %1474 = vmatpush.xpose.msra.mxu0 0.0
  %1475 = vmatpush.xpose.msra.mxu0 0.0
  %1476 = vmatpush.xpose.msra.mxu0 0.0
  %1477 = vmatpush.xpose.msra.mxu0 0.0
  %1478 = vmatpush.xpose.msra.mxu0 0.0
  %1479 = vmatpush.xpose.msra.mxu0 0.0
  %1480 = vmatpush.xpose.msra.mxu0 0.0
  %1481 = vmatpush.xpose.msra.mxu0 0.0
  %1482 = vmatpush.xpose.msra.mxu0 0.0
  %1483 = vmatpush.xpose.msra.mxu0 0.0
  %1484 = vmatpush.xpose.msra.mxu0 0.0
  %1485 = vmatpush.xpose.msra.mxu0 0.0
  %1486 = vmatpush.xpose.msra.mxu0 0.0
  %1487 = vmatpush.xpose.msra.mxu0 0.0
  %1488 = vmatpush.xpose.msra.mxu0 0.0
  %1489 = vmatpush.xpose.msra.mxu0 %v1472
  %1490 = vmatmul.f32.gmra.mxu0 %v1470
  %v1491 = vpop.f32.mrf.mxu0
  %v1492 = vadd.f32 %v1401, %v1491
  %1493 = vdwg.mxu0
  %v1494 = vsel %vm196, %v1492, -inf
  %1495 = vmax.xlane.f32.xlu0 %v1494
  %v1496 = vpop.xlane.xlu0 %1495
  %v1497 = vsub.f32 %v1492, %v1496
  %v1498 = vmul.f32 %v1497, 1.442695
  %v1499 = vpow.pop %v1498
  %v1500 = vsel %vm196, %v1499, 0.0
  %1501 = vadd.xlane.f32.xlu0 %v1500
  %v1502 = vpop.xlane.xlu0 %1501
  %v1503 = vrcp.pop %v1502
  %v1504 = vmul.f32 %v1499, %v1503
  %1505 = vrot.lane.b32.xlu0 %v141, 48
  %v1506 = vpop.permute.xlu0 %1505
  %v1509 = vsel %vm196, %v1504, 0
  %1511 = vmatpush.msra.mxu0 0.0
  %1512 = vmatpush.msra.mxu0 0.0
  %1513 = vmatpush.msra.mxu0 0.0
  %1514 = vmatpush.msra.mxu0 0.0
  %1515 = vmatpush.msra.mxu0 0.0
  %1516 = vmatpush.msra.mxu0 0.0
  %1517 = vmatpush.msra.mxu0 0.0
  %1518 = vmatpush.msra.mxu0 0.0
  %1519 = vmatpush.msra.mxu0 0.0
  %1520 = vmatpush.msra.mxu0 0.0
  %1521 = vmatpush.msra.mxu0 0.0
  %1522 = vmatpush.msra.mxu0 0.0
  %1523 = vmatpush.msra.mxu0 0.0
  %1524 = vmatpush.msra.mxu0 0.0
  %1525 = vmatpush.msra.mxu0 0.0
  %1526 = vmatpush.msra.mxu0 %v1506
  %1527 = vmatmul.f32.gmra.mxu0 %v1509
  %v1528 = vpop.f32.mrf.mxu0
  %v1529 = vadd.f32 0.0, %v1528
  %1530 = vdwg.mxu0
  %v1532 = vsel %vm171, %v1529, 0
  %1534 = vmatpush.msra.mxu0 0.0
  %1535 = vmatpush.msra.mxu0 0.0
  %1536 = vmatpush.msra.mxu0 0.0
  %1537 = vmatpush.msra.mxu0 0.0
  %1538 = vmatpush.msra.mxu0 0.0
  %1539 = vmatpush.msra.mxu0 0.0
  %1540 = vmatpush.msra.mxu0 0.0
  %1541 = vmatpush.msra.mxu0 0.0
  %1542 = vmatpush.msra.mxu0 0.0
  %1543 = vmatpush.msra.mxu0 0.0
  %1544 = vmatpush.msra.mxu0 0.0
  %1545 = vmatpush.msra.mxu0 0.0
  %1546 = vmatpush.msra.mxu0 0.0
  %1547 = vmatpush.msra.mxu0 0.0
  %1548 = vmatpush.msra.mxu0 %v42
  %1549 = vmatpush.msra.mxu0 %v41
  %1550 = vmatmul.f32.gmra.mxu0 %v1532
  %v1551 = vpop.f32.mrf.mxu0
  %v1552 = vadd.f32 0.0, %v1551
  %1553 = vdwg.mxu0
  %v1555 = vsel %vm171, %v1464, 0
  %1557 = vmatpush.msra.mxu0 0.0
  %1558 = vmatpush.msra.mxu0 0.0
  %1559 = vmatpush.msra.mxu0 0.0
  %1560 = vmatpush.msra.mxu0 0.0
  %1561 = vmatpush.msra.mxu0 0.0
  %1562 = vmatpush.msra.mxu0 0.0
  %1563 = vmatpush.msra.mxu0 0.0
  %1564 = vmatpush.msra.mxu0 0.0
  %1565 = vmatpush.msra.mxu0 0.0
  %1566 = vmatpush.msra.mxu0 0.0
  %1567 = vmatpush.msra.mxu0 0.0
  %1568 = vmatpush.msra.mxu0 0.0
  %1569 = vmatpush.msra.mxu0 0.0
  %1570 = vmatpush.msra.mxu0 0.0
  %1571 = vmatpush.msra.mxu0 %v40
  %1572 = vmatpush.msra.mxu0 %v39
  %1573 = vmatmul.f32.gmra.mxu0 %v1555
  %v1574 = vpop.f32.mrf.mxu0
  %v1575 = vadd.f32 %v1552, %v1574
  %1576 = vdwg.mxu0
  %v1577 = vperm.slane %v34, 0
  %1579 = vrot.lane.b32.xlu0 %v144, 96
  %v1580 = vpop.permute.xlu0 %1579
  %v1581 = vsel %vm171, %v144, 0
  %v1583 = vsel %vm171, %v1580, 0
  %1585 = vmatpush.xpose.msra.mxu0 0.0
  %1586 = vmatpush.xpose.msra.mxu0 0.0
  %1587 = vmatpush.xpose.msra.mxu0 0.0
  %1588 = vmatpush.xpose.msra.mxu0 0.0
  %1589 = vmatpush.xpose.msra.mxu0 0.0
  %1590 = vmatpush.xpose.msra.mxu0 0.0
  %1591 = vmatpush.xpose.msra.mxu0 0.0
  %1592 = vmatpush.xpose.msra.mxu0 0.0
  %1593 = vmatpush.xpose.msra.mxu0 0.0
  %1594 = vmatpush.xpose.msra.mxu0 0.0
  %1595 = vmatpush.xpose.msra.mxu0 0.0
  %1596 = vmatpush.xpose.msra.mxu0 0.0
  %1597 = vmatpush.xpose.msra.mxu0 0.0
  %1598 = vmatpush.xpose.msra.mxu0 0.0
  %1599 = vmatpush.xpose.msra.mxu0 0.0
  %1600 = vmatpush.xpose.msra.mxu0 %v1583
  %1601 = vmatmul.f32.gmra.mxu0 %v1581
  %v1602 = vpop.f32.mrf.mxu0
  %v1603 = vadd.f32 %v1577, %v1602
  %1604 = vdwg.mxu0
  %v1605 = vsel %vm196, %v1603, -inf
  %1606 = vmax.xlane.f32.xlu0 %v1605
  %v1607 = vpop.xlane.xlu0 %1606
  %v1608 = vsub.f32 %v1603, %v1607
  %v1609 = vmul.f32 %v1608, 1.442695
  %v1610 = vpow.pop %v1609
  %v1611 = vsel %vm196, %v1610, 0.0
  %1612 = vadd.xlane.f32.xlu0 %v1611
  %v1613 = vpop.xlane.xlu0 %1612
  %v1614 = vrcp.pop %v1613
  %v1615 = vmul.f32 %v1610, %v1614
  %1616 = vrot.lane.b32.xlu0 %v144, 64
  %v1617 = vpop.permute.xlu0 %1616
  %v1620 = vsel %vm196, %v1615, 0
  %1622 = vmatpush.msra.mxu0 0.0
  %1623 = vmatpush.msra.mxu0 0.0
  %1624 = vmatpush.msra.mxu0 0.0
  %1625 = vmatpush.msra.mxu0 0.0
  %1626 = vmatpush.msra.mxu0 0.0
  %1627 = vmatpush.msra.mxu0 0.0
  %1628 = vmatpush.msra.mxu0 0.0
  %1629 = vmatpush.msra.mxu0 0.0
  %1630 = vmatpush.msra.mxu0 0.0
  %1631 = vmatpush.msra.mxu0 0.0
  %1632 = vmatpush.msra.mxu0 0.0
  %1633 = vmatpush.msra.mxu0 0.0
  %1634 = vmatpush.msra.mxu0 0.0
  %1635 = vmatpush.msra.mxu0 0.0
  %1636 = vmatpush.msra.mxu0 0.0
  %1637 = vmatpush.msra.mxu0 %v1617
  %1638 = vmatmul.f32.gmra.mxu0 %v1620
  %v1639 = vpop.f32.mrf.mxu0
  %v1640 = vadd.f32 0.0, %v1639
  %1641 = vdwg.mxu0
  %1642 = vrot.lane.b32.xlu0 %v144, 112
  %v1643 = vpop.permute.xlu0 %1642
  %1644 = vrot.lane.b32.xlu0 %v144, 80
  %v1645 = vpop.permute.xlu0 %1644
  %v1646 = vsel %vm171, %v1643, 0
  %v1648 = vsel %vm171, %v1645, 0
  %1650 = vmatpush.xpose.msra.mxu0 0.0
  %1651 = vmatpush.xpose.msra.mxu0 0.0
  %1652 = vmatpush.xpose.msra.mxu0 0.0
  %1653 = vmatpush.xpose.msra.mxu0 0.0
  %1654 = vmatpush.xpose.msra.mxu0 0.0
  %1655 = vmatpush.xpose.msra.mxu0 0.0
  %1656 = vmatpush.xpose.msra.mxu0 0.0
  %1657 = vmatpush.xpose.msra.mxu0 0.0
  %1658 = vmatpush.xpose.msra.mxu0 0.0
  %1659 = vmatpush.xpose.msra.mxu0 0.0
  %1660 = vmatpush.xpose.msra.mxu0 0.0
  %1661 = vmatpush.xpose.msra.mxu0 0.0
  %1662 = vmatpush.xpose.msra.mxu0 0.0
  %1663 = vmatpush.xpose.msra.mxu0 0.0
  %1664 = vmatpush.xpose.msra.mxu0 0.0
  %1665 = vmatpush.xpose.msra.mxu0 %v1648
  %1666 = vmatmul.f32.gmra.mxu0 %v1646
  %v1667 = vpop.f32.mrf.mxu0
  %v1668 = vadd.f32 %v1577, %v1667
  %1669 = vdwg.mxu0
  %v1670 = vsel %vm196, %v1668, -inf
  %1671 = vmax.xlane.f32.xlu0 %v1670
  %v1672 = vpop.xlane.xlu0 %1671
  %v1673 = vsub.f32 %v1668, %v1672
  %v1674 = vmul.f32 %v1673, 1.442695
  %v1675 = vpow.pop %v1674
  %v1676 = vsel %vm196, %v1675, 0.0
  %1677 = vadd.xlane.f32.xlu0 %v1676
  %v1678 = vpop.xlane.xlu0 %1677
  %v1679 = vrcp.pop %v1678
  %v1680 = vmul.f32 %v1675, %v1679
  %1681 = vrot.lane.b32.xlu0 %v144, 48
  %v1682 = vpop.permute.xlu0 %1681
  %v1685 = vsel %vm196, %v1680, 0
  %1687 = vmatpush.msra.mxu0 0.0
  %1688 = vmatpush.msra.mxu0 0.0
  %1689 = vmatpush.msra.mxu0 0.0
  %1690 = vmatpush.msra.mxu0 0.0
  %1691 = vmatpush.msra.mxu0 0.0
  %1692 = vmatpush.msra.mxu0 0.0
  %1693 = vmatpush.msra.mxu0 0.0
  %1694 = vmatpush.msra.mxu0 0.0
  %1695 = vmatpush.msra.mxu0 0.0
  %1696 = vmatpush.msra.mxu0 0.0
  %1697 = vmatpush.msra.mxu0 0.0
  %1698 = vmatpush.msra.mxu0 0.0
  %1699 = vmatpush.msra.mxu0 0.0
  %1700 = vmatpush.msra.mxu0 0.0
  %1701 = vmatpush.msra.mxu0 0.0
  %1702 = vmatpush.msra.mxu0 %v1682
  %1703 = vmatmul.f32.gmra.mxu0 %v1685
  %v1704 = vpop.f32.mrf.mxu0
  %v1705 = vadd.f32 0.0, %v1704
  %1706 = vdwg.mxu0
  %v1708 = vsel %vm171, %v1705, 0
  %1710 = vmatpush.msra.mxu0 0.0
  %1711 = vmatpush.msra.mxu0 0.0
  %1712 = vmatpush.msra.mxu0 0.0
  %1713 = vmatpush.msra.mxu0 0.0
  %1714 = vmatpush.msra.mxu0 0.0
  %1715 = vmatpush.msra.mxu0 0.0
  %1716 = vmatpush.msra.mxu0 0.0
  %1717 = vmatpush.msra.mxu0 0.0
  %1718 = vmatpush.msra.mxu0 0.0
  %1719 = vmatpush.msra.mxu0 0.0
  %1720 = vmatpush.msra.mxu0 0.0
  %1721 = vmatpush.msra.mxu0 0.0
  %1722 = vmatpush.msra.mxu0 0.0
  %1723 = vmatpush.msra.mxu0 0.0
  %1724 = vmatpush.msra.mxu0 %v42
  %1725 = vmatpush.msra.mxu0 %v41
  %1726 = vmatmul.f32.gmra.mxu0 %v1708
  %v1727 = vpop.f32.mrf.mxu0
  %v1728 = vadd.f32 0.0, %v1727
  %1729 = vdwg.mxu0
  %v1731 = vsel %vm171, %v1640, 0
  %1733 = vmatpush.msra.mxu0 0.0
  %1734 = vmatpush.msra.mxu0 0.0
  %1735 = vmatpush.msra.mxu0 0.0
  %1736 = vmatpush.msra.mxu0 0.0
  %1737 = vmatpush.msra.mxu0 0.0
  %1738 = vmatpush.msra.mxu0 0.0
  %1739 = vmatpush.msra.mxu0 0.0
  %1740 = vmatpush.msra.mxu0 0.0
  %1741 = vmatpush.msra.mxu0 0.0
  %1742 = vmatpush.msra.mxu0 0.0
  %1743 = vmatpush.msra.mxu0 0.0
  %1744 = vmatpush.msra.mxu0 0.0
  %1745 = vmatpush.msra.mxu0 0.0
  %1746 = vmatpush.msra.mxu0 0.0
  %1747 = vmatpush.msra.mxu0 %v40
  %1748 = vmatpush.msra.mxu0 %v39
  %1749 = vmatmul.f32.gmra.mxu0 %v1731
  %v1750 = vpop.f32.mrf.mxu0
  %v1751 = vadd.f32 %v1728, %v1750
  %1752 = vdwg.mxu0
  %v1753 = vperm.slane %v34, 1
  %1755 = vrot.lane.b32.xlu0 %v147, 96
  %v1756 = vpop.permute.xlu0 %1755
  %v1757 = vsel %vm171, %v147, 0
  %v1759 = vsel %vm171, %v1756, 0
  %1761 = vmatpush.xpose.msra.mxu0 0.0
  %1762 = vmatpush.xpose.msra.mxu0 0.0
  %1763 = vmatpush.xpose.msra.mxu0 0.0
  %1764 = vmatpush.xpose.msra.mxu0 0.0
  %1765 = vmatpush.xpose.msra.mxu0 0.0
  %1766 = vmatpush.xpose.msra.mxu0 0.0
  %1767 = vmatpush.xpose.msra.mxu0 0.0
  %1768 = vmatpush.xpose.msra.mxu0 0.0
  %1769 = vmatpush.xpose.msra.mxu0 0.0
  %1770 = vmatpush.xpose.msra.mxu0 0.0
  %1771 = vmatpush.xpose.msra.mxu0 0.0
  %1772 = vmatpush.xpose.msra.mxu0 0.0
  %1773 = vmatpush.xpose.msra.mxu0 0.0
  %1774 = vmatpush.xpose.msra.mxu0 0.0
  %1775 = vmatpush.xpose.msra.mxu0 0.0
  %1776 = vmatpush.xpose.msra.mxu0 %v1759
  %1777 = vmatmul.f32.gmra.mxu0 %v1757
  %v1778 = vpop.f32.mrf.mxu0
  %v1779 = vadd.f32 %v1753, %v1778
  %1780 = vdwg.mxu0
  %v1781 = vsel %vm196, %v1779, -inf
  %1782 = vmax.xlane.f32.xlu0 %v1781
  %v1783 = vpop.xlane.xlu0 %1782
  %v1784 = vsub.f32 %v1779, %v1783
  %v1785 = vmul.f32 %v1784, 1.442695
  %v1786 = vpow.pop %v1785
  %v1787 = vsel %vm196, %v1786, 0.0
  %1788 = vadd.xlane.f32.xlu0 %v1787
  %v1789 = vpop.xlane.xlu0 %1788
  %v1790 = vrcp.pop %v1789
  %v1791 = vmul.f32 %v1786, %v1790
  %1792 = vrot.lane.b32.xlu0 %v147, 64
  %v1793 = vpop.permute.xlu0 %1792
  %v1796 = vsel %vm196, %v1791, 0
  %1798 = vmatpush.msra.mxu0 0.0
  %1799 = vmatpush.msra.mxu0 0.0
  %1800 = vmatpush.msra.mxu0 0.0
  %1801 = vmatpush.msra.mxu0 0.0
  %1802 = vmatpush.msra.mxu0 0.0
  %1803 = vmatpush.msra.mxu0 0.0
  %1804 = vmatpush.msra.mxu0 0.0
  %1805 = vmatpush.msra.mxu0 0.0
  %1806 = vmatpush.msra.mxu0 0.0
  %1807 = vmatpush.msra.mxu0 0.0
  %1808 = vmatpush.msra.mxu0 0.0
  %1809 = vmatpush.msra.mxu0 0.0
  %1810 = vmatpush.msra.mxu0 0.0
  %1811 = vmatpush.msra.mxu0 0.0
  %1812 = vmatpush.msra.mxu0 0.0
  %1813 = vmatpush.msra.mxu0 %v1793
  %1814 = vmatmul.f32.gmra.mxu0 %v1796
  %v1815 = vpop.f32.mrf.mxu0
  %v1816 = vadd.f32 0.0, %v1815
  %1817 = vdwg.mxu0
  %1818 = vrot.lane.b32.xlu0 %v147, 112
  %v1819 = vpop.permute.xlu0 %1818
  %1820 = vrot.lane.b32.xlu0 %v147, 80
  %v1821 = vpop.permute.xlu0 %1820
  %v1822 = vsel %vm171, %v1819, 0
  %v1824 = vsel %vm171, %v1821, 0
  %1826 = vmatpush.xpose.msra.mxu0 0.0
  %1827 = vmatpush.xpose.msra.mxu0 0.0
  %1828 = vmatpush.xpose.msra.mxu0 0.0
  %1829 = vmatpush.xpose.msra.mxu0 0.0
  %1830 = vmatpush.xpose.msra.mxu0 0.0
  %1831 = vmatpush.xpose.msra.mxu0 0.0
  %1832 = vmatpush.xpose.msra.mxu0 0.0
  %1833 = vmatpush.xpose.msra.mxu0 0.0
  %1834 = vmatpush.xpose.msra.mxu0 0.0
  %1835 = vmatpush.xpose.msra.mxu0 0.0
  %1836 = vmatpush.xpose.msra.mxu0 0.0
  %1837 = vmatpush.xpose.msra.mxu0 0.0
  %1838 = vmatpush.xpose.msra.mxu0 0.0
  %1839 = vmatpush.xpose.msra.mxu0 0.0
  %1840 = vmatpush.xpose.msra.mxu0 0.0
  %1841 = vmatpush.xpose.msra.mxu0 %v1824
  %1842 = vmatmul.f32.gmra.mxu0 %v1822
  %v1843 = vpop.f32.mrf.mxu0
  %v1844 = vadd.f32 %v1753, %v1843
  %1845 = vdwg.mxu0
  %v1846 = vsel %vm196, %v1844, -inf
  %1847 = vmax.xlane.f32.xlu0 %v1846
  %v1848 = vpop.xlane.xlu0 %1847
  %v1849 = vsub.f32 %v1844, %v1848
  %v1850 = vmul.f32 %v1849, 1.442695
  %v1851 = vpow.pop %v1850
  %v1852 = vsel %vm196, %v1851, 0.0
  %1853 = vadd.xlane.f32.xlu0 %v1852
  %v1854 = vpop.xlane.xlu0 %1853
  %v1855 = vrcp.pop %v1854
  %v1856 = vmul.f32 %v1851, %v1855
  %1857 = vrot.lane.b32.xlu0 %v147, 48
  %v1858 = vpop.permute.xlu0 %1857
  %v1861 = vsel %vm196, %v1856, 0
  %1863 = vmatpush.msra.mxu0 0.0
  %1864 = vmatpush.msra.mxu0 0.0
  %1865 = vmatpush.msra.mxu0 0.0
  %1866 = vmatpush.msra.mxu0 0.0
  %1867 = vmatpush.msra.mxu0 0.0
  %1868 = vmatpush.msra.mxu0 0.0
  %1869 = vmatpush.msra.mxu0 0.0
  %1870 = vmatpush.msra.mxu0 0.0
  %1871 = vmatpush.msra.mxu0 0.0
  %1872 = vmatpush.msra.mxu0 0.0
  %1873 = vmatpush.msra.mxu0 0.0
  %1874 = vmatpush.msra.mxu0 0.0
  %1875 = vmatpush.msra.mxu0 0.0
  %1876 = vmatpush.msra.mxu0 0.0
  %1877 = vmatpush.msra.mxu0 0.0
  %1878 = vmatpush.msra.mxu0 %v1858
  %1879 = vmatmul.f32.gmra.mxu0 %v1861
  %v1880 = vpop.f32.mrf.mxu0
  %v1881 = vadd.f32 0.0, %v1880
  %1882 = vdwg.mxu0
  %v1884 = vsel %vm171, %v1881, 0
  %1886 = vmatpush.msra.mxu0 0.0
  %1887 = vmatpush.msra.mxu0 0.0
  %1888 = vmatpush.msra.mxu0 0.0
  %1889 = vmatpush.msra.mxu0 0.0
  %1890 = vmatpush.msra.mxu0 0.0
  %1891 = vmatpush.msra.mxu0 0.0
  %1892 = vmatpush.msra.mxu0 0.0
  %1893 = vmatpush.msra.mxu0 0.0
  %1894 = vmatpush.msra.mxu0 0.0
  %1895 = vmatpush.msra.mxu0 0.0
  %1896 = vmatpush.msra.mxu0 0.0
  %1897 = vmatpush.msra.mxu0 0.0
  %1898 = vmatpush.msra.mxu0 0.0
  %1899 = vmatpush.msra.mxu0 0.0
  %1900 = vmatpush.msra.mxu0 %v42
  %1901 = vmatpush.msra.mxu0 %v41
  %1902 = vmatmul.f32.gmra.mxu0 %v1884
  %v1903 = vpop.f32.mrf.mxu0
  %v1904 = vadd.f32 0.0, %v1903
  %1905 = vdwg.mxu0
  %v1907 = vsel %vm171, %v1816, 0
  %1909 = vmatpush.msra.mxu0 0.0
  %1910 = vmatpush.msra.mxu0 0.0
  %1911 = vmatpush.msra.mxu0 0.0
  %1912 = vmatpush.msra.mxu0 0.0
  %1913 = vmatpush.msra.mxu0 0.0
  %1914 = vmatpush.msra.mxu0 0.0
  %1915 = vmatpush.msra.mxu0 0.0
  %1916 = vmatpush.msra.mxu0 0.0
  %1917 = vmatpush.msra.mxu0 0.0
  %1918 = vmatpush.msra.mxu0 0.0
  %1919 = vmatpush.msra.mxu0 0.0
  %1920 = vmatpush.msra.mxu0 0.0
  %1921 = vmatpush.msra.mxu0 0.0
  %1922 = vmatpush.msra.mxu0 0.0
  %1923 = vmatpush.msra.mxu0 %v40
  %1924 = vmatpush.msra.mxu0 %v39
  %1925 = vmatmul.f32.gmra.mxu0 %v1907
  %v1926 = vpop.f32.mrf.mxu0
  %v1927 = vadd.f32 %v1904, %v1926
  %1928 = vdwg.mxu0
  %v1929 = vperm.slane %v34, 2
  %1931 = vrot.lane.b32.xlu0 %v150, 96
  %v1932 = vpop.permute.xlu0 %1931
  %v1933 = vsel %vm171, %v150, 0
  %v1935 = vsel %vm171, %v1932, 0
  %1937 = vmatpush.xpose.msra.mxu0 0.0
  %1938 = vmatpush.xpose.msra.mxu0 0.0
  %1939 = vmatpush.xpose.msra.mxu0 0.0
  %1940 = vmatpush.xpose.msra.mxu0 0.0
  %1941 = vmatpush.xpose.msra.mxu0 0.0
  %1942 = vmatpush.xpose.msra.mxu0 0.0
  %1943 = vmatpush.xpose.msra.mxu0 0.0
  %1944 = vmatpush.xpose.msra.mxu0 0.0
  %1945 = vmatpush.xpose.msra.mxu0 0.0
  %1946 = vmatpush.xpose.msra.mxu0 0.0
  %1947 = vmatpush.xpose.msra.mxu0 0.0
  %1948 = vmatpush.xpose.msra.mxu0 0.0
  %1949 = vmatpush.xpose.msra.mxu0 0.0
  %1950 = vmatpush.xpose.msra.mxu0 0.0
  %1951 = vmatpush.xpose.msra.mxu0 0.0
  %1952 = vmatpush.xpose.msra.mxu0 %v1935
  %1953 = vmatmul.f32.gmra.mxu0 %v1933
  %v1954 = vpop.f32.mrf.mxu0
  %v1955 = vadd.f32 %v1929, %v1954
  %1956 = vdwg.mxu0
  %v1957 = vsel %vm196, %v1955, -inf
  %1958 = vmax.xlane.f32.xlu0 %v1957
  %v1959 = vpop.xlane.xlu0 %1958
  %v1960 = vsub.f32 %v1955, %v1959
  %v1961 = vmul.f32 %v1960, 1.442695
  %v1962 = vpow.pop %v1961
  %v1963 = vsel %vm196, %v1962, 0.0
  %1964 = vadd.xlane.f32.xlu0 %v1963
  %v1965 = vpop.xlane.xlu0 %1964
  %v1966 = vrcp.pop %v1965
  %v1967 = vmul.f32 %v1962, %v1966
  %1968 = vrot.lane.b32.xlu0 %v150, 64
  %v1969 = vpop.permute.xlu0 %1968
  %v1972 = vsel %vm196, %v1967, 0
  %1974 = vmatpush.msra.mxu0 0.0
  %1975 = vmatpush.msra.mxu0 0.0
  %1976 = vmatpush.msra.mxu0 0.0
  %1977 = vmatpush.msra.mxu0 0.0
  %1978 = vmatpush.msra.mxu0 0.0
  %1979 = vmatpush.msra.mxu0 0.0
  %1980 = vmatpush.msra.mxu0 0.0
  %1981 = vmatpush.msra.mxu0 0.0
  %1982 = vmatpush.msra.mxu0 0.0
  %1983 = vmatpush.msra.mxu0 0.0
  %1984 = vmatpush.msra.mxu0 0.0
  %1985 = vmatpush.msra.mxu0 0.0
  %1986 = vmatpush.msra.mxu0 0.0
  %1987 = vmatpush.msra.mxu0 0.0
  %1988 = vmatpush.msra.mxu0 0.0
  %1989 = vmatpush.msra.mxu0 %v1969
  %1990 = vmatmul.f32.gmra.mxu0 %v1972
  %v1991 = vpop.f32.mrf.mxu0
  %v1992 = vadd.f32 0.0, %v1991
  %1993 = vdwg.mxu0
  %1994 = vrot.lane.b32.xlu0 %v150, 112
  %v1995 = vpop.permute.xlu0 %1994
  %1996 = vrot.lane.b32.xlu0 %v150, 80
  %v1997 = vpop.permute.xlu0 %1996
  %v1998 = vsel %vm171, %v1995, 0
  %v2000 = vsel %vm171, %v1997, 0
  %2002 = vmatpush.xpose.msra.mxu0 0.0
  %2003 = vmatpush.xpose.msra.mxu0 0.0
  %2004 = vmatpush.xpose.msra.mxu0 0.0
  %2005 = vmatpush.xpose.msra.mxu0 0.0
  %2006 = vmatpush.xpose.msra.mxu0 0.0
  %2007 = vmatpush.xpose.msra.mxu0 0.0
  %2008 = vmatpush.xpose.msra.mxu0 0.0
  %2009 = vmatpush.xpose.msra.mxu0 0.0
  %2010 = vmatpush.xpose.msra.mxu0 0.0
  %2011 = vmatpush.xpose.msra.mxu0 0.0
  %2012 = vmatpush.xpose.msra.mxu0 0.0
  %2013 = vmatpush.xpose.msra.mxu0 0.0
  %2014 = vmatpush.xpose.msra.mxu0 0.0
  %2015 = vmatpush.xpose.msra.mxu0 0.0
  %2016 = vmatpush.xpose.msra.mxu0 0.0
  %2017 = vmatpush.xpose.msra.mxu0 %v2000
  %2018 = vmatmul.f32.gmra.mxu0 %v1998
  %v2019 = vpop.f32.mrf.mxu0
  %v2020 = vadd.f32 %v1929, %v2019
  %2021 = vdwg.mxu0
  %v2022 = vsel %vm196, %v2020, -inf
  %2023 = vmax.xlane.f32.xlu0 %v2022
  %v2024 = vpop.xlane.xlu0 %2023
  %v2025 = vsub.f32 %v2020, %v2024
  %v2026 = vmul.f32 %v2025, 1.442695
  %v2027 = vpow.pop %v2026
  %v2028 = vsel %vm196, %v2027, 0.0
  %2029 = vadd.xlane.f32.xlu0 %v2028
  %v2030 = vpop.xlane.xlu0 %2029
  %v2031 = vrcp.pop %v2030
  %v2032 = vmul.f32 %v2027, %v2031
  %2033 = vrot.lane.b32.xlu0 %v150, 48
  %v2034 = vpop.permute.xlu0 %2033
  %v2037 = vsel %vm196, %v2032, 0
  %2039 = vmatpush.msra.mxu0 0.0
  %2040 = vmatpush.msra.mxu0 0.0
  %2041 = vmatpush.msra.mxu0 0.0
  %2042 = vmatpush.msra.mxu0 0.0
  %2043 = vmatpush.msra.mxu0 0.0
  %2044 = vmatpush.msra.mxu0 0.0
  %2045 = vmatpush.msra.mxu0 0.0
  %2046 = vmatpush.msra.mxu0 0.0
  %2047 = vmatpush.msra.mxu0 0.0
  %2048 = vmatpush.msra.mxu0 0.0
  %2049 = vmatpush.msra.mxu0 0.0
  %2050 = vmatpush.msra.mxu0 0.0
  %2051 = vmatpush.msra.mxu0 0.0
  %2052 = vmatpush.msra.mxu0 0.0
  %2053 = vmatpush.msra.mxu0 0.0
  %2054 = vmatpush.msra.mxu0 %v2034
  %2055 = vmatmul.f32.gmra.mxu0 %v2037
  %v2056 = vpop.f32.mrf.mxu0
  %v2057 = vadd.f32 0.0, %v2056
  %2058 = vdwg.mxu0
  %v2060 = vsel %vm171, %v2057, 0
  %2062 = vmatpush.msra.mxu0 0.0
  %2063 = vmatpush.msra.mxu0 0.0
  %2064 = vmatpush.msra.mxu0 0.0
  %2065 = vmatpush.msra.mxu0 0.0
  %2066 = vmatpush.msra.mxu0 0.0
  %2067 = vmatpush.msra.mxu0 0.0
  %2068 = vmatpush.msra.mxu0 0.0
  %2069 = vmatpush.msra.mxu0 0.0
  %2070 = vmatpush.msra.mxu0 0.0
  %2071 = vmatpush.msra.mxu0 0.0
  %2072 = vmatpush.msra.mxu0 0.0
  %2073 = vmatpush.msra.mxu0 0.0
  %2074 = vmatpush.msra.mxu0 0.0
  %2075 = vmatpush.msra.mxu0 0.0
  %2076 = vmatpush.msra.mxu0 %v42
  %2077 = vmatpush.msra.mxu0 %v41
  %2078 = vmatmul.f32.gmra.mxu0 %v2060
  %v2079 = vpop.f32.mrf.mxu0
  %v2080 = vadd.f32 0.0, %v2079
  %2081 = vdwg.mxu0
  %v2083 = vsel %vm171, %v1992, 0
  %2085 = vmatpush.msra.mxu0 0.0
  %2086 = vmatpush.msra.mxu0 0.0
  %2087 = vmatpush.msra.mxu0 0.0
  %2088 = vmatpush.msra.mxu0 0.0
  %2089 = vmatpush.msra.mxu0 0.0
  %2090 = vmatpush.msra.mxu0 0.0
  %2091 = vmatpush.msra.mxu0 0.0
  %2092 = vmatpush.msra.mxu0 0.0
  %2093 = vmatpush.msra.mxu0 0.0
  %2094 = vmatpush.msra.mxu0 0.0
  %2095 = vmatpush.msra.mxu0 0.0
  %2096 = vmatpush.msra.mxu0 0.0
  %2097 = vmatpush.msra.mxu0 0.0
  %2098 = vmatpush.msra.mxu0 0.0
  %2099 = vmatpush.msra.mxu0 %v40
  %2100 = vmatpush.msra.mxu0 %v39
  %2101 = vmatmul.f32.gmra.mxu0 %v2083
  %v2102 = vpop.f32.mrf.mxu0
  %v2103 = vadd.f32 %v2080, %v2102
  %2104 = vdwg.mxu0
  %v2105 = vperm.slane %v34, 3
  %2107 = vrot.lane.b32.xlu0 %v153, 96
  %v2108 = vpop.permute.xlu0 %2107
  %v2109 = vsel %vm171, %v153, 0
  %v2111 = vsel %vm171, %v2108, 0
  %2113 = vmatpush.xpose.msra.mxu0 0.0
  %2114 = vmatpush.xpose.msra.mxu0 0.0
  %2115 = vmatpush.xpose.msra.mxu0 0.0
  %2116 = vmatpush.xpose.msra.mxu0 0.0
  %2117 = vmatpush.xpose.msra.mxu0 0.0
  %2118 = vmatpush.xpose.msra.mxu0 0.0
  %2119 = vmatpush.xpose.msra.mxu0 0.0
  %2120 = vmatpush.xpose.msra.mxu0 0.0
  %2121 = vmatpush.xpose.msra.mxu0 0.0
  %2122 = vmatpush.xpose.msra.mxu0 0.0
  %2123 = vmatpush.xpose.msra.mxu0 0.0
  %2124 = vmatpush.xpose.msra.mxu0 0.0
  %2125 = vmatpush.xpose.msra.mxu0 0.0
  %2126 = vmatpush.xpose.msra.mxu0 0.0
  %2127 = vmatpush.xpose.msra.mxu0 0.0
  %2128 = vmatpush.xpose.msra.mxu0 %v2111
  %2129 = vmatmul.f32.gmra.mxu0 %v2109
  %v2130 = vpop.f32.mrf.mxu0
  %v2131 = vadd.f32 %v2105, %v2130
  %2132 = vdwg.mxu0
  %v2133 = vsel %vm196, %v2131, -inf
  %2134 = vmax.xlane.f32.xlu0 %v2133
  %v2135 = vpop.xlane.xlu0 %2134
  %v2136 = vsub.f32 %v2131, %v2135
  %v2137 = vmul.f32 %v2136, 1.442695
  %v2138 = vpow.pop %v2137
  %v2139 = vsel %vm196, %v2138, 0.0
  %2140 = vadd.xlane.f32.xlu0 %v2139
  %v2141 = vpop.xlane.xlu0 %2140
  %v2142 = vrcp.pop %v2141
  %v2143 = vmul.f32 %v2138, %v2142
  %2144 = vrot.lane.b32.xlu0 %v153, 64
  %v2145 = vpop.permute.xlu0 %2144
  %v2148 = vsel %vm196, %v2143, 0
  %2150 = vmatpush.msra.mxu0 0.0
  %2151 = vmatpush.msra.mxu0 0.0
  %2152 = vmatpush.msra.mxu0 0.0
  %2153 = vmatpush.msra.mxu0 0.0
  %2154 = vmatpush.msra.mxu0 0.0
  %2155 = vmatpush.msra.mxu0 0.0
  %2156 = vmatpush.msra.mxu0 0.0
  %2157 = vmatpush.msra.mxu0 0.0
  %2158 = vmatpush.msra.mxu0 0.0
  %2159 = vmatpush.msra.mxu0 0.0
  %2160 = vmatpush.msra.mxu0 0.0
  %2161 = vmatpush.msra.mxu0 0.0
  %2162 = vmatpush.msra.mxu0 0.0
  %2163 = vmatpush.msra.mxu0 0.0
  %2164 = vmatpush.msra.mxu0 0.0
  %2165 = vmatpush.msra.mxu0 %v2145
  %2166 = vmatmul.f32.gmra.mxu0 %v2148
  %v2167 = vpop.f32.mrf.mxu0
  %v2168 = vadd.f32 0.0, %v2167
  %2169 = vdwg.mxu0
  %2170 = vrot.lane.b32.xlu0 %v153, 112
  %v2171 = vpop.permute.xlu0 %2170
  %2172 = vrot.lane.b32.xlu0 %v153, 80
  %v2173 = vpop.permute.xlu0 %2172
  %v2174 = vsel %vm171, %v2171, 0
  %v2176 = vsel %vm171, %v2173, 0
  %2178 = vmatpush.xpose.msra.mxu0 0.0
  %2179 = vmatpush.xpose.msra.mxu0 0.0
  %2180 = vmatpush.xpose.msra.mxu0 0.0
  %2181 = vmatpush.xpose.msra.mxu0 0.0
  %2182 = vmatpush.xpose.msra.mxu0 0.0
  %2183 = vmatpush.xpose.msra.mxu0 0.0
  %2184 = vmatpush.xpose.msra.mxu0 0.0
  %2185 = vmatpush.xpose.msra.mxu0 0.0
  %2186 = vmatpush.xpose.msra.mxu0 0.0
  %2187 = vmatpush.xpose.msra.mxu0 0.0
  %2188 = vmatpush.xpose.msra.mxu0 0.0
  %2189 = vmatpush.xpose.msra.mxu0 0.0
  %2190 = vmatpush.xpose.msra.mxu0 0.0
  %2191 = vmatpush.xpose.msra.mxu0 0.0
  %2192 = vmatpush.xpose.msra.mxu0 0.0
  %2193 = vmatpush.xpose.msra.mxu0 %v2176
  %2194 = vmatmul.f32.gmra.mxu0 %v2174
  %v2195 = vpop.f32.mrf.mxu0
  %v2196 = vadd.f32 %v2105, %v2195
  %2197 = vdwg.mxu0
  %v2198 = vsel %vm196, %v2196, -inf
  %2199 = vmax.xlane.f32.xlu0 %v2198
  %v2200 = vpop.xlane.xlu0 %2199
  %v2201 = vsub.f32 %v2196, %v2200
  %v2202 = vmul.f32 %v2201, 1.442695
  %v2203 = vpow.pop %v2202
  %v2204 = vsel %vm196, %v2203, 0.0
  %2205 = vadd.xlane.f32.xlu0 %v2204
  %v2206 = vpop.xlane.xlu0 %2205
  %v2207 = vrcp.pop %v2206
  %v2208 = vmul.f32 %v2203, %v2207
  %2209 = vrot.lane.b32.xlu0 %v153, 48
  %v2210 = vpop.permute.xlu0 %2209
  %v2213 = vsel %vm196, %v2208, 0
  %2215 = vmatpush.msra.mxu0 0.0
  %2216 = vmatpush.msra.mxu0 0.0
  %2217 = vmatpush.msra.mxu0 0.0
  %2218 = vmatpush.msra.mxu0 0.0
  %2219 = vmatpush.msra.mxu0 0.0
  %2220 = vmatpush.msra.mxu0 0.0
  %2221 = vmatpush.msra.mxu0 0.0
  %2222 = vmatpush.msra.mxu0 0.0
  %2223 = vmatpush.msra.mxu0 0.0
  %2224 = vmatpush.msra.mxu0 0.0
  %2225 = vmatpush.msra.mxu0 0.0
  %2226 = vmatpush.msra.mxu0 0.0
  %2227 = vmatpush.msra.mxu0 0.0
  %2228 = vmatpush.msra.mxu0 0.0
  %2229 = vmatpush.msra.mxu0 0.0
  %2230 = vmatpush.msra.mxu0 %v2210
  %2231 = vmatmul.f32.gmra.mxu0 %v2213
  %v2232 = vpop.f32.mrf.mxu0
  %v2233 = vadd.f32 0.0, %v2232
  %2234 = vdwg.mxu0
  %v2236 = vsel %vm171, %v2233, 0
  %2238 = vmatpush.msra.mxu0 0.0
  %2239 = vmatpush.msra.mxu0 0.0
  %2240 = vmatpush.msra.mxu0 0.0
  %2241 = vmatpush.msra.mxu0 0.0
  %2242 = vmatpush.msra.mxu0 0.0
  %2243 = vmatpush.msra.mxu0 0.0
  %2244 = vmatpush.msra.mxu0 0.0
  %2245 = vmatpush.msra.mxu0 0.0
  %2246 = vmatpush.msra.mxu0 0.0
  %2247 = vmatpush.msra.mxu0 0.0
  %2248 = vmatpush.msra.mxu0 0.0
  %2249 = vmatpush.msra.mxu0 0.0
  %2250 = vmatpush.msra.mxu0 0.0
  %2251 = vmatpush.msra.mxu0 0.0
  %2252 = vmatpush.msra.mxu0 %v42
  %2253 = vmatpush.msra.mxu0 %v41
  %2254 = vmatmul.f32.gmra.mxu0 %v2236
  %v2255 = vpop.f32.mrf.mxu0
  %v2256 = vadd.f32 0.0, %v2255
  %2257 = vdwg.mxu0
  %v2259 = vsel %vm171, %v2168, 0
  %2261 = vmatpush.msra.mxu0 0.0
  %2262 = vmatpush.msra.mxu0 0.0
  %2263 = vmatpush.msra.mxu0 0.0
  %2264 = vmatpush.msra.mxu0 0.0
  %2265 = vmatpush.msra.mxu0 0.0
  %2266 = vmatpush.msra.mxu0 0.0
  %2267 = vmatpush.msra.mxu0 0.0
  %2268 = vmatpush.msra.mxu0 0.0
  %2269 = vmatpush.msra.mxu0 0.0
  %2270 = vmatpush.msra.mxu0 0.0
  %2271 = vmatpush.msra.mxu0 0.0
  %2272 = vmatpush.msra.mxu0 0.0
  %2273 = vmatpush.msra.mxu0 0.0
  %2274 = vmatpush.msra.mxu0 0.0
  %2275 = vmatpush.msra.mxu0 %v40
  %2276 = vmatpush.msra.mxu0 %v39
  %2277 = vmatmul.f32.gmra.mxu0 %v2259
  %v2278 = vpop.f32.mrf.mxu0
  %v2279 = vadd.f32 %v2256, %v2278
  %2280 = vdwg.mxu0
  %v2281 = vperm.slane %v34, 4
  %2283 = vrot.lane.b32.xlu0 %v156, 96
  %v2284 = vpop.permute.xlu0 %2283
  %v2285 = vsel %vm171, %v156, 0
  %v2287 = vsel %vm171, %v2284, 0
  %2289 = vmatpush.xpose.msra.mxu0 0.0
  %2290 = vmatpush.xpose.msra.mxu0 0.0
  %2291 = vmatpush.xpose.msra.mxu0 0.0
  %2292 = vmatpush.xpose.msra.mxu0 0.0
  %2293 = vmatpush.xpose.msra.mxu0 0.0
  %2294 = vmatpush.xpose.msra.mxu0 0.0
  %2295 = vmatpush.xpose.msra.mxu0 0.0
  %2296 = vmatpush.xpose.msra.mxu0 0.0
  %2297 = vmatpush.xpose.msra.mxu0 0.0
  %2298 = vmatpush.xpose.msra.mxu0 0.0
  %2299 = vmatpush.xpose.msra.mxu0 0.0
  %2300 = vmatpush.xpose.msra.mxu0 0.0
  %2301 = vmatpush.xpose.msra.mxu0 0.0
  %2302 = vmatpush.xpose.msra.mxu0 0.0
  %2303 = vmatpush.xpose.msra.mxu0 0.0
  %2304 = vmatpush.xpose.msra.mxu0 %v2287
  %2305 = vmatmul.f32.gmra.mxu0 %v2285
  %v2306 = vpop.f32.mrf.mxu0
  %v2307 = vadd.f32 %v2281, %v2306
  %2308 = vdwg.mxu0
  %v2309 = vsel %vm196, %v2307, -inf
  %2310 = vmax.xlane.f32.xlu0 %v2309
  %v2311 = vpop.xlane.xlu0 %2310
  %v2312 = vsub.f32 %v2307, %v2311
  %v2313 = vmul.f32 %v2312, 1.442695
  %v2314 = vpow.pop %v2313
  %v2315 = vsel %vm196, %v2314, 0.0
  %2316 = vadd.xlane.f32.xlu0 %v2315
  %v2317 = vpop.xlane.xlu0 %2316
  %v2318 = vrcp.pop %v2317
  %v2319 = vmul.f32 %v2314, %v2318
  %2320 = vrot.lane.b32.xlu0 %v156, 64
  %v2321 = vpop.permute.xlu0 %2320
  %v2324 = vsel %vm196, %v2319, 0
  %2326 = vmatpush.msra.mxu0 0.0
  %2327 = vmatpush.msra.mxu0 0.0
  %2328 = vmatpush.msra.mxu0 0.0
  %2329 = vmatpush.msra.mxu0 0.0
  %2330 = vmatpush.msra.mxu0 0.0
  %2331 = vmatpush.msra.mxu0 0.0
  %2332 = vmatpush.msra.mxu0 0.0
  %2333 = vmatpush.msra.mxu0 0.0
  %2334 = vmatpush.msra.mxu0 0.0
  %2335 = vmatpush.msra.mxu0 0.0
  %2336 = vmatpush.msra.mxu0 0.0
  %2337 = vmatpush.msra.mxu0 0.0
  %2338 = vmatpush.msra.mxu0 0.0
  %2339 = vmatpush.msra.mxu0 0.0
  %2340 = vmatpush.msra.mxu0 0.0
  %2341 = vmatpush.msra.mxu0 %v2321
  %2342 = vmatmul.f32.gmra.mxu0 %v2324
  %v2343 = vpop.f32.mrf.mxu0
  %v2344 = vadd.f32 0.0, %v2343
  %2345 = vdwg.mxu0
  %2346 = vrot.lane.b32.xlu0 %v156, 112
  %v2347 = vpop.permute.xlu0 %2346
  %2348 = vrot.lane.b32.xlu0 %v156, 80
  %v2349 = vpop.permute.xlu0 %2348
  %v2350 = vsel %vm171, %v2347, 0
  %v2352 = vsel %vm171, %v2349, 0
  %2354 = vmatpush.xpose.msra.mxu0 0.0
  %2355 = vmatpush.xpose.msra.mxu0 0.0
  %2356 = vmatpush.xpose.msra.mxu0 0.0
  %2357 = vmatpush.xpose.msra.mxu0 0.0
  %2358 = vmatpush.xpose.msra.mxu0 0.0
  %2359 = vmatpush.xpose.msra.mxu0 0.0
  %2360 = vmatpush.xpose.msra.mxu0 0.0
  %2361 = vmatpush.xpose.msra.mxu0 0.0
  %2362 = vmatpush.xpose.msra.mxu0 0.0
  %2363 = vmatpush.xpose.msra.mxu0 0.0
  %2364 = vmatpush.xpose.msra.mxu0 0.0
  %2365 = vmatpush.xpose.msra.mxu0 0.0
  %2366 = vmatpush.xpose.msra.mxu0 0.0
  %2367 = vmatpush.xpose.msra.mxu0 0.0
  %2368 = vmatpush.xpose.msra.mxu0 0.0
  %2369 = vmatpush.xpose.msra.mxu0 %v2352
  %2370 = vmatmul.f32.gmra.mxu0 %v2350
  %v2371 = vpop.f32.mrf.mxu0
  %v2372 = vadd.f32 %v2281, %v2371
  %2373 = vdwg.mxu0
  %v2374 = vsel %vm196, %v2372, -inf
  %2375 = vmax.xlane.f32.xlu0 %v2374
  %v2376 = vpop.xlane.xlu0 %2375
  %v2377 = vsub.f32 %v2372, %v2376
  %v2378 = vmul.f32 %v2377, 1.442695
  %v2379 = vpow.pop %v2378
  %v2380 = vsel %vm196, %v2379, 0.0
  %2381 = vadd.xlane.f32.xlu0 %v2380
  %v2382 = vpop.xlane.xlu0 %2381
  %v2383 = vrcp.pop %v2382
  %v2384 = vmul.f32 %v2379, %v2383
  %2385 = vrot.lane.b32.xlu0 %v156, 48
  %v2386 = vpop.permute.xlu0 %2385
  %v2389 = vsel %vm196, %v2384, 0
  %2391 = vmatpush.msra.mxu0 0.0
  %2392 = vmatpush.msra.mxu0 0.0
  %2393 = vmatpush.msra.mxu0 0.0
  %2394 = vmatpush.msra.mxu0 0.0
  %2395 = vmatpush.msra.mxu0 0.0
  %2396 = vmatpush.msra.mxu0 0.0
  %2397 = vmatpush.msra.mxu0 0.0
  %2398 = vmatpush.msra.mxu0 0.0
  %2399 = vmatpush.msra.mxu0 0.0
  %2400 = vmatpush.msra.mxu0 0.0
  %2401 = vmatpush.msra.mxu0 0.0
  %2402 = vmatpush.msra.mxu0 0.0
  %2403 = vmatpush.msra.mxu0 0.0
  %2404 = vmatpush.msra.mxu0 0.0
  %2405 = vmatpush.msra.mxu0 0.0
  %2406 = vmatpush.msra.mxu0 %v2386
  %2407 = vmatmul.f32.gmra.mxu0 %v2389
  %v2408 = vpop.f32.mrf.mxu0
  %v2409 = vadd.f32 0.0, %v2408
  %2410 = vdwg.mxu0
  %v2412 = vsel %vm171, %v2409, 0
  %2414 = vmatpush.msra.mxu0 0.0
  %2415 = vmatpush.msra.mxu0 0.0
  %2416 = vmatpush.msra.mxu0 0.0
  %2417 = vmatpush.msra.mxu0 0.0
  %2418 = vmatpush.msra.mxu0 0.0
  %2419 = vmatpush.msra.mxu0 0.0
  %2420 = vmatpush.msra.mxu0 0.0
  %2421 = vmatpush.msra.mxu0 0.0
  %2422 = vmatpush.msra.mxu0 0.0
  %2423 = vmatpush.msra.mxu0 0.0
  %2424 = vmatpush.msra.mxu0 0.0
  %2425 = vmatpush.msra.mxu0 0.0
  %2426 = vmatpush.msra.mxu0 0.0
  %2427 = vmatpush.msra.mxu0 0.0
  %2428 = vmatpush.msra.mxu0 %v42
  %2429 = vmatpush.msra.mxu0 %v41
  %2430 = vmatmul.f32.gmra.mxu0 %v2412
  %v2431 = vpop.f32.mrf.mxu0
  %v2432 = vadd.f32 0.0, %v2431
  %2433 = vdwg.mxu0
  %v2435 = vsel %vm171, %v2344, 0
  %2437 = vmatpush.msra.mxu0 0.0
  %2438 = vmatpush.msra.mxu0 0.0
  %2439 = vmatpush.msra.mxu0 0.0
  %2440 = vmatpush.msra.mxu0 0.0
  %2441 = vmatpush.msra.mxu0 0.0
  %2442 = vmatpush.msra.mxu0 0.0
  %2443 = vmatpush.msra.mxu0 0.0
  %2444 = vmatpush.msra.mxu0 0.0
  %2445 = vmatpush.msra.mxu0 0.0
  %2446 = vmatpush.msra.mxu0 0.0
  %2447 = vmatpush.msra.mxu0 0.0
  %2448 = vmatpush.msra.mxu0 0.0
  %2449 = vmatpush.msra.mxu0 0.0
  %2450 = vmatpush.msra.mxu0 0.0
  %2451 = vmatpush.msra.mxu0 %v40
  %2452 = vmatpush.msra.mxu0 %v39
  %2453 = vmatmul.f32.gmra.mxu0 %v2435
  %v2454 = vpop.f32.mrf.mxu0
  %v2455 = vadd.f32 %v2432, %v2454
  %2456 = vdwg.mxu0
  %v2457 = vperm.slane %v34, 5
  %2459 = vrot.lane.b32.xlu0 %v159, 96
  %v2460 = vpop.permute.xlu0 %2459
  %v2461 = vsel %vm171, %v159, 0
  %v2463 = vsel %vm171, %v2460, 0
  %2465 = vmatpush.xpose.msra.mxu0 0.0
  %2466 = vmatpush.xpose.msra.mxu0 0.0
  %2467 = vmatpush.xpose.msra.mxu0 0.0
  %2468 = vmatpush.xpose.msra.mxu0 0.0
  %2469 = vmatpush.xpose.msra.mxu0 0.0
  %2470 = vmatpush.xpose.msra.mxu0 0.0
  %2471 = vmatpush.xpose.msra.mxu0 0.0
  %2472 = vmatpush.xpose.msra.mxu0 0.0
  %2473 = vmatpush.xpose.msra.mxu0 0.0
  %2474 = vmatpush.xpose.msra.mxu0 0.0
  %2475 = vmatpush.xpose.msra.mxu0 0.0
  %2476 = vmatpush.xpose.msra.mxu0 0.0
  %2477 = vmatpush.xpose.msra.mxu0 0.0
  %2478 = vmatpush.xpose.msra.mxu0 0.0
  %2479 = vmatpush.xpose.msra.mxu0 0.0
  %2480 = vmatpush.xpose.msra.mxu0 %v2463
  %2481 = vmatmul.f32.gmra.mxu0 %v2461
  %v2482 = vpop.f32.mrf.mxu0
  %v2483 = vadd.f32 %v2457, %v2482
  %2484 = vdwg.mxu0
  %v2485 = vsel %vm196, %v2483, -inf
  %2486 = vmax.xlane.f32.xlu0 %v2485
  %v2487 = vpop.xlane.xlu0 %2486
  %v2488 = vsub.f32 %v2483, %v2487
  %v2489 = vmul.f32 %v2488, 1.442695
  %v2490 = vpow.pop %v2489
  %v2491 = vsel %vm196, %v2490, 0.0
  %2492 = vadd.xlane.f32.xlu0 %v2491
  %v2493 = vpop.xlane.xlu0 %2492
  %v2494 = vrcp.pop %v2493
  %v2495 = vmul.f32 %v2490, %v2494
  %2496 = vrot.lane.b32.xlu0 %v159, 64
  %v2497 = vpop.permute.xlu0 %2496
  %v2500 = vsel %vm196, %v2495, 0
  %2502 = vmatpush.msra.mxu0 0.0
  %2503 = vmatpush.msra.mxu0 0.0
  %2504 = vmatpush.msra.mxu0 0.0
  %2505 = vmatpush.msra.mxu0 0.0
  %2506 = vmatpush.msra.mxu0 0.0
  %2507 = vmatpush.msra.mxu0 0.0
  %2508 = vmatpush.msra.mxu0 0.0
  %2509 = vmatpush.msra.mxu0 0.0
  %2510 = vmatpush.msra.mxu0 0.0
  %2511 = vmatpush.msra.mxu0 0.0
  %2512 = vmatpush.msra.mxu0 0.0
  %2513 = vmatpush.msra.mxu0 0.0
  %2514 = vmatpush.msra.mxu0 0.0
  %2515 = vmatpush.msra.mxu0 0.0
  %2516 = vmatpush.msra.mxu0 0.0
  %2517 = vmatpush.msra.mxu0 %v2497
  %2518 = vmatmul.f32.gmra.mxu0 %v2500
  %v2519 = vpop.f32.mrf.mxu0
  %v2520 = vadd.f32 0.0, %v2519
  %2521 = vdwg.mxu0
  %2522 = vrot.lane.b32.xlu0 %v159, 112
  %v2523 = vpop.permute.xlu0 %2522
  %2524 = vrot.lane.b32.xlu0 %v159, 80
  %v2525 = vpop.permute.xlu0 %2524
  %v2526 = vsel %vm171, %v2523, 0
  %v2528 = vsel %vm171, %v2525, 0
  %2530 = vmatpush.xpose.msra.mxu0 0.0
  %2531 = vmatpush.xpose.msra.mxu0 0.0
  %2532 = vmatpush.xpose.msra.mxu0 0.0
  %2533 = vmatpush.xpose.msra.mxu0 0.0
  %2534 = vmatpush.xpose.msra.mxu0 0.0
  %2535 = vmatpush.xpose.msra.mxu0 0.0
  %2536 = vmatpush.xpose.msra.mxu0 0.0
  %2537 = vmatpush.xpose.msra.mxu0 0.0
  %2538 = vmatpush.xpose.msra.mxu0 0.0
  %2539 = vmatpush.xpose.msra.mxu0 0.0
  %2540 = vmatpush.xpose.msra.mxu0 0.0
  %2541 = vmatpush.xpose.msra.mxu0 0.0
  %2542 = vmatpush.xpose.msra.mxu0 0.0
  %2543 = vmatpush.xpose.msra.mxu0 0.0
  %2544 = vmatpush.xpose.msra.mxu0 0.0
  %2545 = vmatpush.xpose.msra.mxu0 %v2528
  %2546 = vmatmul.f32.gmra.mxu0 %v2526
  %v2547 = vpop.f32.mrf.mxu0
  %v2548 = vadd.f32 %v2457, %v2547
  %2549 = vdwg.mxu0
  %v2550 = vsel %vm196, %v2548, -inf
  %2551 = vmax.xlane.f32.xlu0 %v2550
  %v2552 = vpop.xlane.xlu0 %2551
  %v2553 = vsub.f32 %v2548, %v2552
  %v2554 = vmul.f32 %v2553, 1.442695
  %v2555 = vpow.pop %v2554
  %v2556 = vsel %vm196, %v2555, 0.0
  %2557 = vadd.xlane.f32.xlu0 %v2556
  %v2558 = vpop.xlane.xlu0 %2557
  %v2559 = vrcp.pop %v2558
  %v2560 = vmul.f32 %v2555, %v2559
  %2561 = vrot.lane.b32.xlu0 %v159, 48
  %v2562 = vpop.permute.xlu0 %2561
  %v2565 = vsel %vm196, %v2560, 0
  %2567 = vmatpush.msra.mxu0 0.0
  %2568 = vmatpush.msra.mxu0 0.0
  %2569 = vmatpush.msra.mxu0 0.0
  %2570 = vmatpush.msra.mxu0 0.0
  %2571 = vmatpush.msra.mxu0 0.0
  %2572 = vmatpush.msra.mxu0 0.0
  %2573 = vmatpush.msra.mxu0 0.0
  %2574 = vmatpush.msra.mxu0 0.0
  %2575 = vmatpush.msra.mxu0 0.0
  %2576 = vmatpush.msra.mxu0 0.0
  %2577 = vmatpush.msra.mxu0 0.0
  %2578 = vmatpush.msra.mxu0 0.0
  %2579 = vmatpush.msra.mxu0 0.0
  %2580 = vmatpush.msra.mxu0 0.0
  %2581 = vmatpush.msra.mxu0 0.0
  %2582 = vmatpush.msra.mxu0 %v2562
  %2583 = vmatmul.f32.gmra.mxu0 %v2565
  %v2584 = vpop.f32.mrf.mxu0
  %v2585 = vadd.f32 0.0, %v2584
  %2586 = vdwg.mxu0
  %v2588 = vsel %vm171, %v2585, 0
  %2590 = vmatpush.msra.mxu0 0.0
  %2591 = vmatpush.msra.mxu0 0.0
  %2592 = vmatpush.msra.mxu0 0.0
  %2593 = vmatpush.msra.mxu0 0.0
  %2594 = vmatpush.msra.mxu0 0.0
  %2595 = vmatpush.msra.mxu0 0.0
  %2596 = vmatpush.msra.mxu0 0.0
  %2597 = vmatpush.msra.mxu0 0.0
  %2598 = vmatpush.msra.mxu0 0.0
  %2599 = vmatpush.msra.mxu0 0.0
  %2600 = vmatpush.msra.mxu0 0.0
  %2601 = vmatpush.msra.mxu0 0.0
  %2602 = vmatpush.msra.mxu0 0.0
  %2603 = vmatpush.msra.mxu0 0.0
  %2604 = vmatpush.msra.mxu0 %v42
  %2605 = vmatpush.msra.mxu0 %v41
  %2606 = vmatmul.f32.gmra.mxu0 %v2588
  %v2607 = vpop.f32.mrf.mxu0
  %v2608 = vadd.f32 0.0, %v2607
  %2609 = vdwg.mxu0
  %v2611 = vsel %vm171, %v2520, 0
  %2613 = vmatpush.msra.mxu0 0.0
  %2614 = vmatpush.msra.mxu0 0.0
  %2615 = vmatpush.msra.mxu0 0.0
  %2616 = vmatpush.msra.mxu0 0.0
  %2617 = vmatpush.msra.mxu0 0.0
  %2618 = vmatpush.msra.mxu0 0.0
  %2619 = vmatpush.msra.mxu0 0.0
  %2620 = vmatpush.msra.mxu0 0.0
  %2621 = vmatpush.msra.mxu0 0.0
  %2622 = vmatpush.msra.mxu0 0.0
  %2623 = vmatpush.msra.mxu0 0.0
  %2624 = vmatpush.msra.mxu0 0.0
  %2625 = vmatpush.msra.mxu0 0.0
  %2626 = vmatpush.msra.mxu0 0.0
  %2627 = vmatpush.msra.mxu0 %v40
  %2628 = vmatpush.msra.mxu0 %v39
  %2629 = vmatmul.f32.gmra.mxu0 %v2611
  %v2630 = vpop.f32.mrf.mxu0
  %v2631 = vadd.f32 %v2608, %v2630
  %2632 = vdwg.mxu0
  %v2633 = vperm.slane %v34, 6
  %2635 = vrot.lane.b32.xlu0 %v162, 96
  %v2636 = vpop.permute.xlu0 %2635
  %v2637 = vsel %vm171, %v162, 0
  %v2639 = vsel %vm171, %v2636, 0
  %2641 = vmatpush.xpose.msra.mxu0 0.0
  %2642 = vmatpush.xpose.msra.mxu0 0.0
  %2643 = vmatpush.xpose.msra.mxu0 0.0
  %2644 = vmatpush.xpose.msra.mxu0 0.0
  %2645 = vmatpush.xpose.msra.mxu0 0.0
  %2646 = vmatpush.xpose.msra.mxu0 0.0
  %2647 = vmatpush.xpose.msra.mxu0 0.0
  %2648 = vmatpush.xpose.msra.mxu0 0.0
  %2649 = vmatpush.xpose.msra.mxu0 0.0
  %2650 = vmatpush.xpose.msra.mxu0 0.0
  %2651 = vmatpush.xpose.msra.mxu0 0.0
  %2652 = vmatpush.xpose.msra.mxu0 0.0
  %2653 = vmatpush.xpose.msra.mxu0 0.0
  %2654 = vmatpush.xpose.msra.mxu0 0.0
  %2655 = vmatpush.xpose.msra.mxu0 0.0
  %2656 = vmatpush.xpose.msra.mxu0 %v2639
  %2657 = vmatmul.f32.gmra.mxu0 %v2637
  %v2658 = vpop.f32.mrf.mxu0
  %v2659 = vadd.f32 %v2633, %v2658
  %2660 = vdwg.mxu0
  %v2661 = vsel %vm196, %v2659, -inf
  %2662 = vmax.xlane.f32.xlu0 %v2661
  %v2663 = vpop.xlane.xlu0 %2662
  %v2664 = vsub.f32 %v2659, %v2663
  %v2665 = vmul.f32 %v2664, 1.442695
  %v2666 = vpow.pop %v2665
  %v2667 = vsel %vm196, %v2666, 0.0
  %2668 = vadd.xlane.f32.xlu0 %v2667
  %v2669 = vpop.xlane.xlu0 %2668
  %v2670 = vrcp.pop %v2669
  %v2671 = vmul.f32 %v2666, %v2670
  %2672 = vrot.lane.b32.xlu0 %v162, 64
  %v2673 = vpop.permute.xlu0 %2672
  %v2676 = vsel %vm196, %v2671, 0
  %2678 = vmatpush.msra.mxu0 0.0
  %2679 = vmatpush.msra.mxu0 0.0
  %2680 = vmatpush.msra.mxu0 0.0
  %2681 = vmatpush.msra.mxu0 0.0
  %2682 = vmatpush.msra.mxu0 0.0
  %2683 = vmatpush.msra.mxu0 0.0
  %2684 = vmatpush.msra.mxu0 0.0
  %2685 = vmatpush.msra.mxu0 0.0
  %2686 = vmatpush.msra.mxu0 0.0
  %2687 = vmatpush.msra.mxu0 0.0
  %2688 = vmatpush.msra.mxu0 0.0
  %2689 = vmatpush.msra.mxu0 0.0
  %2690 = vmatpush.msra.mxu0 0.0
  %2691 = vmatpush.msra.mxu0 0.0
  %2692 = vmatpush.msra.mxu0 0.0
  %2693 = vmatpush.msra.mxu0 %v2673
  %2694 = vmatmul.f32.gmra.mxu0 %v2676
  %v2695 = vpop.f32.mrf.mxu0
  %v2696 = vadd.f32 0.0, %v2695
  %2697 = vdwg.mxu0
  %2698 = vrot.lane.b32.xlu0 %v162, 112
  %v2699 = vpop.permute.xlu0 %2698
  %2700 = vrot.lane.b32.xlu0 %v162, 80
  %v2701 = vpop.permute.xlu0 %2700
  %v2702 = vsel %vm171, %v2699, 0
  %v2704 = vsel %vm171, %v2701, 0
  %2706 = vmatpush.xpose.msra.mxu0 0.0
  %2707 = vmatpush.xpose.msra.mxu0 0.0
  %2708 = vmatpush.xpose.msra.mxu0 0.0
  %2709 = vmatpush.xpose.msra.mxu0 0.0
  %2710 = vmatpush.xpose.msra.mxu0 0.0
  %2711 = vmatpush.xpose.msra.mxu0 0.0
  %2712 = vmatpush.xpose.msra.mxu0 0.0
  %2713 = vmatpush.xpose.msra.mxu0 0.0
  %2714 = vmatpush.xpose.msra.mxu0 0.0
  %2715 = vmatpush.xpose.msra.mxu0 0.0
  %2716 = vmatpush.xpose.msra.mxu0 0.0
  %2717 = vmatpush.xpose.msra.mxu0 0.0
  %2718 = vmatpush.xpose.msra.mxu0 0.0
  %2719 = vmatpush.xpose.msra.mxu0 0.0
  %2720 = vmatpush.xpose.msra.mxu0 0.0
  %2721 = vmatpush.xpose.msra.mxu0 %v2704
  %2722 = vmatmul.f32.gmra.mxu0 %v2702
  %v2723 = vpop.f32.mrf.mxu0
  %v2724 = vadd.f32 %v2633, %v2723
  %2725 = vdwg.mxu0
  %v2726 = vsel %vm196, %v2724, -inf
  %2727 = vmax.xlane.f32.xlu0 %v2726
  %v2728 = vpop.xlane.xlu0 %2727
  %v2729 = vsub.f32 %v2724, %v2728
  %v2730 = vmul.f32 %v2729, 1.442695
  %v2731 = vpow.pop %v2730
  %v2732 = vsel %vm196, %v2731, 0.0
  %2733 = vadd.xlane.f32.xlu0 %v2732
  %v2734 = vpop.xlane.xlu0 %2733
  %v2735 = vrcp.pop %v2734
  %v2736 = vmul.f32 %v2731, %v2735
  %2737 = vrot.lane.b32.xlu0 %v162, 48
  %v2738 = vpop.permute.xlu0 %2737
  %v2741 = vsel %vm196, %v2736, 0
  %2743 = vmatpush.msra.mxu0 0.0
  %2744 = vmatpush.msra.mxu0 0.0
  %2745 = vmatpush.msra.mxu0 0.0
  %2746 = vmatpush.msra.mxu0 0.0
  %2747 = vmatpush.msra.mxu0 0.0
  %2748 = vmatpush.msra.mxu0 0.0
  %2749 = vmatpush.msra.mxu0 0.0
  %2750 = vmatpush.msra.mxu0 0.0
  %2751 = vmatpush.msra.mxu0 0.0
  %2752 = vmatpush.msra.mxu0 0.0
  %2753 = vmatpush.msra.mxu0 0.0
  %2754 = vmatpush.msra.mxu0 0.0
  %2755 = vmatpush.msra.mxu0 0.0
  %2756 = vmatpush.msra.mxu0 0.0
  %2757 = vmatpush.msra.mxu0 0.0
  %2758 = vmatpush.msra.mxu0 %v2738
  %2759 = vmatmul.f32.gmra.mxu0 %v2741
  %v2760 = vpop.f32.mrf.mxu0
  %v2761 = vadd.f32 0.0, %v2760
  %2762 = vdwg.mxu0
  %v2764 = vsel %vm171, %v2761, 0
  %2766 = vmatpush.msra.mxu0 0.0
  %2767 = vmatpush.msra.mxu0 0.0
  %2768 = vmatpush.msra.mxu0 0.0
  %2769 = vmatpush.msra.mxu0 0.0
  %2770 = vmatpush.msra.mxu0 0.0
  %2771 = vmatpush.msra.mxu0 0.0
  %2772 = vmatpush.msra.mxu0 0.0
  %2773 = vmatpush.msra.mxu0 0.0
  %2774 = vmatpush.msra.mxu0 0.0
  %2775 = vmatpush.msra.mxu0 0.0
  %2776 = vmatpush.msra.mxu0 0.0
  %2777 = vmatpush.msra.mxu0 0.0
  %2778 = vmatpush.msra.mxu0 0.0
  %2779 = vmatpush.msra.mxu0 0.0
  %2780 = vmatpush.msra.mxu0 %v42
  %2781 = vmatpush.msra.mxu0 %v41
  %2782 = vmatmul.f32.gmra.mxu0 %v2764
  %v2783 = vpop.f32.mrf.mxu0
  %v2784 = vadd.f32 0.0, %v2783
  %2785 = vdwg.mxu0
  %v2787 = vsel %vm171, %v2696, 0
  %2789 = vmatpush.msra.mxu0 0.0
  %2790 = vmatpush.msra.mxu0 0.0
  %2791 = vmatpush.msra.mxu0 0.0
  %2792 = vmatpush.msra.mxu0 0.0
  %2793 = vmatpush.msra.mxu0 0.0
  %2794 = vmatpush.msra.mxu0 0.0
  %2795 = vmatpush.msra.mxu0 0.0
  %2796 = vmatpush.msra.mxu0 0.0
  %2797 = vmatpush.msra.mxu0 0.0
  %2798 = vmatpush.msra.mxu0 0.0
  %2799 = vmatpush.msra.mxu0 0.0
  %2800 = vmatpush.msra.mxu0 0.0
  %2801 = vmatpush.msra.mxu0 0.0
  %2802 = vmatpush.msra.mxu0 0.0
  %2803 = vmatpush.msra.mxu0 %v40
  %2804 = vmatpush.msra.mxu0 %v39
  %2805 = vmatmul.f32.gmra.mxu0 %v2787
  %v2806 = vpop.f32.mrf.mxu0
  %v2807 = vadd.f32 %v2784, %v2806
  %2808 = vdwg.mxu0
  %v2809 = vperm.slane %v34, 7
  %2811 = vrot.lane.b32.xlu0 %v165, 96
  %v2812 = vpop.permute.xlu0 %2811
  %v2813 = vsel %vm171, %v165, 0
  %v2815 = vsel %vm171, %v2812, 0
  %2817 = vmatpush.xpose.msra.mxu0 0.0
  %2818 = vmatpush.xpose.msra.mxu0 0.0
  %2819 = vmatpush.xpose.msra.mxu0 0.0
  %2820 = vmatpush.xpose.msra.mxu0 0.0
  %2821 = vmatpush.xpose.msra.mxu0 0.0
  %2822 = vmatpush.xpose.msra.mxu0 0.0
  %2823 = vmatpush.xpose.msra.mxu0 0.0
  %2824 = vmatpush.xpose.msra.mxu0 0.0
  %2825 = vmatpush.xpose.msra.mxu0 0.0
  %2826 = vmatpush.xpose.msra.mxu0 0.0
  %2827 = vmatpush.xpose.msra.mxu0 0.0
  %2828 = vmatpush.xpose.msra.mxu0 0.0
  %2829 = vmatpush.xpose.msra.mxu0 0.0
  %2830 = vmatpush.xpose.msra.mxu0 0.0
  %2831 = vmatpush.xpose.msra.mxu0 0.0
  %2832 = vmatpush.xpose.msra.mxu0 %v2815
  %2833 = vmatmul.f32.gmra.mxu0 %v2813
  %v2834 = vpop.f32.mrf.mxu0
  %v2835 = vadd.f32 %v2809, %v2834
  %2836 = vdwg.mxu0
  %v2837 = vsel %vm196, %v2835, -inf
  %2838 = vmax.xlane.f32.xlu0 %v2837
  %v2839 = vpop.xlane.xlu0 %2838
  %v2840 = vsub.f32 %v2835, %v2839
  %v2841 = vmul.f32 %v2840, 1.442695
  %v2842 = vpow.pop %v2841
  %v2843 = vsel %vm196, %v2842, 0.0
  %2844 = vadd.xlane.f32.xlu0 %v2843
  %v2845 = vpop.xlane.xlu0 %2844
  %v2846 = vrcp.pop %v2845
  %v2847 = vmul.f32 %v2842, %v2846
  %2848 = vrot.lane.b32.xlu0 %v165, 64
  %v2849 = vpop.permute.xlu0 %2848
  %v2852 = vsel %vm196, %v2847, 0
  %2854 = vmatpush.msra.mxu0 0.0
  %2855 = vmatpush.msra.mxu0 0.0
  %2856 = vmatpush.msra.mxu0 0.0
  %2857 = vmatpush.msra.mxu0 0.0
  %2858 = vmatpush.msra.mxu0 0.0
  %2859 = vmatpush.msra.mxu0 0.0
  %2860 = vmatpush.msra.mxu0 0.0
  %2861 = vmatpush.msra.mxu0 0.0
  %2862 = vmatpush.msra.mxu0 0.0
  %2863 = vmatpush.msra.mxu0 0.0
  %2864 = vmatpush.msra.mxu0 0.0
  %2865 = vmatpush.msra.mxu0 0.0
  %2866 = vmatpush.msra.mxu0 0.0
  %2867 = vmatpush.msra.mxu0 0.0
  %2868 = vmatpush.msra.mxu0 0.0
  %2869 = vmatpush.msra.mxu0 %v2849
  %2870 = vmatmul.f32.gmra.mxu0 %v2852
  %v2871 = vpop.f32.mrf.mxu0
  %v2872 = vadd.f32 0.0, %v2871
  %2873 = vdwg.mxu0
  %2874 = vrot.lane.b32.xlu0 %v165, 112
  %v2875 = vpop.permute.xlu0 %2874
  %2876 = vrot.lane.b32.xlu0 %v165, 80
  %v2877 = vpop.permute.xlu0 %2876
  %v2878 = vsel %vm171, %v2875, 0
  %v2880 = vsel %vm171, %v2877, 0
  %2882 = vmatpush.xpose.msra.mxu0 0.0
  %2883 = vmatpush.xpose.msra.mxu0 0.0
  %2884 = vmatpush.xpose.msra.mxu0 0.0
  %2885 = vmatpush.xpose.msra.mxu0 0.0
  %2886 = vmatpush.xpose.msra.mxu0 0.0
  %2887 = vmatpush.xpose.msra.mxu0 0.0
  %2888 = vmatpush.xpose.msra.mxu0 0.0
  %2889 = vmatpush.xpose.msra.mxu0 0.0
  %2890 = vmatpush.xpose.msra.mxu0 0.0
  %2891 = vmatpush.xpose.msra.mxu0 0.0
  %2892 = vmatpush.xpose.msra.mxu0 0.0
  %2893 = vmatpush.xpose.msra.mxu0 0.0
  %2894 = vmatpush.xpose.msra.mxu0 0.0
  %2895 = vmatpush.xpose.msra.mxu0 0.0
  %2896 = vmatpush.xpose.msra.mxu0 0.0
  %2897 = vmatpush.xpose.msra.mxu0 %v2880
  %2898 = vmatmul.f32.gmra.mxu0 %v2878
  %v2899 = vpop.f32.mrf.mxu0
  %v2900 = vadd.f32 %v2809, %v2899
  %2901 = vdwg.mxu0
  %v2902 = vsel %vm196, %v2900, -inf
  %2903 = vmax.xlane.f32.xlu0 %v2902
  %v2904 = vpop.xlane.xlu0 %2903
  %v2905 = vsub.f32 %v2900, %v2904
  %v2906 = vmul.f32 %v2905, 1.442695
  %v2907 = vpow.pop %v2906
  %v2908 = vsel %vm196, %v2907, 0.0
  %2909 = vadd.xlane.f32.xlu0 %v2908
  %v2910 = vpop.xlane.xlu0 %2909
  %v2911 = vrcp.pop %v2910
  %v2912 = vmul.f32 %v2907, %v2911
  %2913 = vrot.lane.b32.xlu0 %v165, 48
  %v2914 = vpop.permute.xlu0 %2913
  %v2917 = vsel %vm196, %v2912, 0
  %2919 = vmatpush.msra.mxu0 0.0
  %2920 = vmatpush.msra.mxu0 0.0
  %2921 = vmatpush.msra.mxu0 0.0
  %2922 = vmatpush.msra.mxu0 0.0
  %2923 = vmatpush.msra.mxu0 0.0
  %2924 = vmatpush.msra.mxu0 0.0
  %2925 = vmatpush.msra.mxu0 0.0
  %2926 = vmatpush.msra.mxu0 0.0
  %2927 = vmatpush.msra.mxu0 0.0
  %2928 = vmatpush.msra.mxu0 0.0
  %2929 = vmatpush.msra.mxu0 0.0
  %2930 = vmatpush.msra.mxu0 0.0
  %2931 = vmatpush.msra.mxu0 0.0
  %2932 = vmatpush.msra.mxu0 0.0
  %2933 = vmatpush.msra.mxu0 0.0
  %2934 = vmatpush.msra.mxu0 %v2914
  %2935 = vmatmul.f32.gmra.mxu0 %v2917
  %v2936 = vpop.f32.mrf.mxu0
  %v2937 = vadd.f32 0.0, %v2936
  %2938 = vdwg.mxu0
  %v2940 = vsel %vm171, %v2937, 0
  %2942 = vmatpush.msra.mxu0 0.0
  %2943 = vmatpush.msra.mxu0 0.0
  %2944 = vmatpush.msra.mxu0 0.0
  %2945 = vmatpush.msra.mxu0 0.0
  %2946 = vmatpush.msra.mxu0 0.0
  %2947 = vmatpush.msra.mxu0 0.0
  %2948 = vmatpush.msra.mxu0 0.0
  %2949 = vmatpush.msra.mxu0 0.0
  %2950 = vmatpush.msra.mxu0 0.0
  %2951 = vmatpush.msra.mxu0 0.0
  %2952 = vmatpush.msra.mxu0 0.0
  %2953 = vmatpush.msra.mxu0 0.0
  %2954 = vmatpush.msra.mxu0 0.0
  %2955 = vmatpush.msra.mxu0 0.0
  %2956 = vmatpush.msra.mxu0 %v42
  %2957 = vmatpush.msra.mxu0 %v41
  %2958 = vmatmul.f32.gmra.mxu0 %v2940
  %v2959 = vpop.f32.mrf.mxu0
  %v2960 = vadd.f32 0.0, %v2959
  %2961 = vdwg.mxu0
  %v2963 = vsel %vm171, %v2872, 0
  %2965 = vmatpush.msra.mxu0 0.0
  %2966 = vmatpush.msra.mxu0 0.0
  %2967 = vmatpush.msra.mxu0 0.0
  %2968 = vmatpush.msra.mxu0 0.0
  %2969 = vmatpush.msra.mxu0 0.0
  %2970 = vmatpush.msra.mxu0 0.0
  %2971 = vmatpush.msra.mxu0 0.0
  %2972 = vmatpush.msra.mxu0 0.0
  %2973 = vmatpush.msra.mxu0 0.0
  %2974 = vmatpush.msra.mxu0 0.0
  %2975 = vmatpush.msra.mxu0 0.0
  %2976 = vmatpush.msra.mxu0 0.0
  %2977 = vmatpush.msra.mxu0 0.0
  %2978 = vmatpush.msra.mxu0 0.0
  %2979 = vmatpush.msra.mxu0 %v40
  %2980 = vmatpush.msra.mxu0 %v39
  %2981 = vmatmul.f32.gmra.mxu0 %v2963
  %v2982 = vpop.f32.mrf.mxu0
  %v2983 = vadd.f32 %v2960, %v2982
  %2984 = vdwg.mxu0
  %v2985 = vperm.slane %v51, 1
  %v2986 = vadd.f32 %v343, %v2985
  %v2987 = vadd.f32 %v519, %v2985
  %v2988 = vadd.f32 %v695, %v2985
  %v2989 = vadd.f32 %v871, %v2985
  %v2990 = vadd.f32 %v1047, %v2985
  %v2991 = vadd.f32 %v1223, %v2985
  %v2992 = vadd.f32 %v1399, %v2985
  %v2993 = vadd.f32 %v1575, %v2985
  %v2994 = vadd.f32 %v1751, %v2985
  %v2995 = vadd.f32 %v1927, %v2985
  %v2996 = vadd.f32 %v2103, %v2985
  %v2997 = vadd.f32 %v2279, %v2985
  %v2998 = vadd.f32 %v2455, %v2985
  %v2999 = vadd.f32 %v2631, %v2985
  %v3000 = vadd.f32 %v2807, %v2985
  %v3001 = vadd.f32 %v2983, %v2985
  %v3002 = vadd.f32 %v2986, %v17
  %v3003 = vadd.f32 %v2987, %v18
  %v3004 = vadd.f32 %v2988, %v19
  %v3005 = vadd.f32 %v2989, %v20
  %v3006 = vadd.f32 %v2990, %v21
  %v3007 = vadd.f32 %v2991, %v22
  %v3008 = vadd.f32 %v2992, %v23
  %v3009 = vadd.f32 %v2993, %v24
  %v3010 = vadd.f32 %v2994, %v25
  %v3011 = vadd.f32 %v2995, %v26
  %v3012 = vadd.f32 %v2996, %v27
  %v3013 = vadd.f32 %v2997, %v28
  %v3014 = vadd.f32 %v2998, %v29
  %v3015 = vadd.f32 %v2999, %v30
  %v3016 = vadd.f32 %v3000, %v31
  %v3017 = vadd.f32 %v3001, %v32
  %v3018 = vsel %vm53, %v3002, 0.0
  %3019 = vadd.xlane.f32.xlu0 %v3018
  %v3020 = vpop.xlane.xlu0 %3019
  %v3021 = vsel %vm53, %v3003, 0.0
  %3022 = vadd.xlane.f32.xlu0 %v3021
  %v3023 = vpop.xlane.xlu0 %3022
  %v3024 = vsel %vm53, %v3004, 0.0
  %3025 = vadd.xlane.f32.xlu0 %v3024
  %v3026 = vpop.xlane.xlu0 %3025
  %v3027 = vsel %vm53, %v3005, 0.0
  %3028 = vadd.xlane.f32.xlu0 %v3027
  %v3029 = vpop.xlane.xlu0 %3028
  %v3030 = vsel %vm53, %v3006, 0.0
  %3031 = vadd.xlane.f32.xlu0 %v3030
  %v3032 = vpop.xlane.xlu0 %3031
  %v3033 = vsel %vm53, %v3007, 0.0
  %3034 = vadd.xlane.f32.xlu0 %v3033
  %v3035 = vpop.xlane.xlu0 %3034
  %v3036 = vsel %vm53, %v3008, 0.0
  %3037 = vadd.xlane.f32.xlu0 %v3036
  %v3038 = vpop.xlane.xlu0 %3037
  %v3039 = vsel %vm53, %v3009, 0.0
  %3040 = vadd.xlane.f32.xlu0 %v3039
  %v3041 = vpop.xlane.xlu0 %3040
  %v3042 = vsel %vm53, %v3010, 0.0
  %3043 = vadd.xlane.f32.xlu0 %v3042
  %v3044 = vpop.xlane.xlu0 %3043
  %v3045 = vsel %vm53, %v3011, 0.0
  %3046 = vadd.xlane.f32.xlu0 %v3045
  %v3047 = vpop.xlane.xlu0 %3046
  %v3048 = vsel %vm53, %v3012, 0.0
  %3049 = vadd.xlane.f32.xlu0 %v3048
  %v3050 = vpop.xlane.xlu0 %3049
  %v3051 = vsel %vm53, %v3013, 0.0
  %3052 = vadd.xlane.f32.xlu0 %v3051
  %v3053 = vpop.xlane.xlu0 %3052
  %v3054 = vsel %vm53, %v3014, 0.0
  %3055 = vadd.xlane.f32.xlu0 %v3054
  %v3056 = vpop.xlane.xlu0 %3055
  %v3057 = vsel %vm53, %v3015, 0.0
  %3058 = vadd.xlane.f32.xlu0 %v3057
  %v3059 = vpop.xlane.xlu0 %3058
  %v3060 = vsel %vm53, %v3016, 0.0
  %3061 = vadd.xlane.f32.xlu0 %v3060
  %v3062 = vpop.xlane.xlu0 %3061
  %v3063 = vsel %vm53, %v3017, 0.0
  %3064 = vadd.xlane.f32.xlu0 %v3063
  %v3065 = vpop.xlane.xlu0 %3064
  %v3066 = vrcp.pop 32.0
  %v3067 = vmul.f32 32.0, %v3066
  %v3068 = vsub.f32 1.0, %v3067
  %v3069 = vmul.f32 %v3066, %v3068
  %v3070 = vadd.f32 %v3066, %v3069
  %vm3071 = vweird.f32 %v3066
  %v3072 = vsel %vm3071, %v3066, %v3070
  %v3073 = vmul.f32 %v3020, %v3072
  %v3074 = vmul.f32 %v3023, %v3072
  %v3075 = vmul.f32 %v3026, %v3072
  %v3076 = vmul.f32 %v3029, %v3072
  %v3077 = vmul.f32 %v3032, %v3072
  %v3078 = vmul.f32 %v3035, %v3072
  %v3079 = vmul.f32 %v3038, %v3072
  %v3080 = vmul.f32 %v3041, %v3072
  %v3081 = vmul.f32 %v3044, %v3072
  %v3082 = vmul.f32 %v3047, %v3072
  %v3083 = vmul.f32 %v3050, %v3072
  %v3084 = vmul.f32 %v3053, %v3072
  %v3085 = vmul.f32 %v3056, %v3072
  %v3086 = vmul.f32 %v3059, %v3072
  %v3087 = vmul.f32 %v3062, %v3072
  %v3088 = vmul.f32 %v3065, %v3072
  %v3089 = vsub.f32 %v3002, %v3073
  %v3090 = vsub.f32 %v3003, %v3074
  %v3091 = vsub.f32 %v3004, %v3075
  %v3092 = vsub.f32 %v3005, %v3076
  %v3093 = vsub.f32 %v3006, %v3077
  %v3094 = vsub.f32 %v3007, %v3078
  %v3095 = vsub.f32 %v3008, %v3079
  %v3096 = vsub.f32 %v3009, %v3080
  %v3097 = vsub.f32 %v3010, %v3081
  %v3098 = vsub.f32 %v3011, %v3082
  %v3099 = vsub.f32 %v3012, %v3083
  %v3100 = vsub.f32 %v3013, %v3084
  %v3101 = vsub.f32 %v3014, %v3085
  %v3102 = vsub.f32 %v3015, %v3086
  %v3103 = vsub.f32 %v3016, %v3087
  %v3104 = vsub.f32 %v3017, %v3088
  %v3105 = vmul.f32 %v3089, %v3089
  %v3106 = vmul.f32 %v3090, %v3090
  %v3107 = vmul.f32 %v3091, %v3091
  %v3108 = vmul.f32 %v3092, %v3092
  %v3109 = vmul.f32 %v3093, %v3093
  %v3110 = vmul.f32 %v3094, %v3094
  %v3111 = vmul.f32 %v3095, %v3095
  %v3112 = vmul.f32 %v3096, %v3096
  %v3113 = vmul.f32 %v3097, %v3097
  %v3114 = vmul.f32 %v3098, %v3098
  %v3115 = vmul.f32 %v3099, %v3099
  %v3116 = vmul.f32 %v3100, %v3100
  %v3117 = vmul.f32 %v3101, %v3101
  %v3118 = vmul.f32 %v3102, %v3102
  %v3119 = vmul.f32 %v3103, %v3103
  %v3120 = vmul.f32 %v3104, %v3104
  %v3121 = vsel %vm53, %v3105, 0.0
  %3122 = vadd.xlane.f32.xlu0 %v3121
  %v3123 = vpop.xlane.xlu0 %3122
  %v3124 = vsel %vm53, %v3106, 0.0
  %3125 = vadd.xlane.f32.xlu0 %v3124
  %v3126 = vpop.xlane.xlu0 %3125
  %v3127 = vsel %vm53, %v3107, 0.0
  %3128 = vadd.xlane.f32.xlu0 %v3127
  %v3129 = vpop.xlane.xlu0 %3128
  %v3130 = vsel %vm53, %v3108, 0.0
  %3131 = vadd.xlane.f32.xlu0 %v3130
  %v3132 = vpop.xlane.xlu0 %3131
  %v3133 = vsel %vm53, %v3109, 0.0
  %3134 = vadd.xlane.f32.xlu0 %v3133
  %v3135 = vpop.xlane.xlu0 %3134
  %v3136 = vsel %vm53, %v3110, 0.0
  %3137 = vadd.xlane.f32.xlu0 %v3136
  %v3138 = vpop.xlane.xlu0 %3137
  %v3139 = vsel %vm53, %v3111, 0.0
  %3140 = vadd.xlane.f32.xlu0 %v3139
  %v3141 = vpop.xlane.xlu0 %3140
  %v3142 = vsel %vm53, %v3112, 0.0
  %3143 = vadd.xlane.f32.xlu0 %v3142
  %v3144 = vpop.xlane.xlu0 %3143
  %v3145 = vsel %vm53, %v3113, 0.0
  %3146 = vadd.xlane.f32.xlu0 %v3145
  %v3147 = vpop.xlane.xlu0 %3146
  %v3148 = vsel %vm53, %v3114, 0.0
  %3149 = vadd.xlane.f32.xlu0 %v3148
  %v3150 = vpop.xlane.xlu0 %3149
  %v3151 = vsel %vm53, %v3115, 0.0
  %3152 = vadd.xlane.f32.xlu0 %v3151
  %v3153 = vpop.xlane.xlu0 %3152
  %v3154 = vsel %vm53, %v3116, 0.0
  %3155 = vadd.xlane.f32.xlu0 %v3154
  %v3156 = vpop.xlane.xlu0 %3155
  %v3157 = vsel %vm53, %v3117, 0.0
  %3158 = vadd.xlane.f32.xlu0 %v3157
  %v3159 = vpop.xlane.xlu0 %3158
  %v3160 = vsel %vm53, %v3118, 0.0
  %3161 = vadd.xlane.f32.xlu0 %v3160
  %v3162 = vpop.xlane.xlu0 %3161
  %v3163 = vsel %vm53, %v3119, 0.0
  %3164 = vadd.xlane.f32.xlu0 %v3163
  %v3165 = vpop.xlane.xlu0 %3164
  %v3166 = vsel %vm53, %v3120, 0.0
  %3167 = vadd.xlane.f32.xlu0 %v3166
  %v3168 = vpop.xlane.xlu0 %3167
  %v3169 = vmul.f32 %v3123, %v3072
  %v3170 = vmul.f32 %v3126, %v3072
  %v3171 = vmul.f32 %v3129, %v3072
  %v3172 = vmul.f32 %v3132, %v3072
  %v3173 = vmul.f32 %v3135, %v3072
  %v3174 = vmul.f32 %v3138, %v3072
  %v3175 = vmul.f32 %v3141, %v3072
  %v3176 = vmul.f32 %v3144, %v3072
  %v3177 = vmul.f32 %v3147, %v3072
  %v3178 = vmul.f32 %v3150, %v3072
  %v3179 = vmul.f32 %v3153, %v3072
  %v3180 = vmul.f32 %v3156, %v3072
  %v3181 = vmul.f32 %v3159, %v3072
  %v3182 = vmul.f32 %v3162, %v3072
  %v3183 = vmul.f32 %v3165, %v3072
  %v3184 = vmul.f32 %v3168, %v3072
  %v3185 = vadd.f32 %v3169, 1e-12
  %v3186 = vadd.f32 %v3170, 1e-12
  %v3187 = vadd.f32 %v3171, 1e-12
  %v3188 = vadd.f32 %v3172, 1e-12
  %v3189 = vadd.f32 %v3173, 1e-12
  %v3190 = vadd.f32 %v3174, 1e-12
  %v3191 = vadd.f32 %v3175, 1e-12
  %v3192 = vadd.f32 %v3176, 1e-12
  %v3193 = vadd.f32 %v3177, 1e-12
  %v3194 = vadd.f32 %v3178, 1e-12
  %v3195 = vadd.f32 %v3179, 1e-12
  %v3196 = vadd.f32 %v3180, 1e-12
  %v3197 = vadd.f32 %v3181, 1e-12
  %v3198 = vadd.f32 %v3182, 1e-12
  %v3199 = vadd.f32 %v3183, 1e-12
  %v3200 = vadd.f32 %v3184, 1e-12
  %v3201 = vrsqrt.pop %v3185
  %v3202 = vmul.f32 %v3201, %v3185
  %v3203 = vmul.f32 %v3202, %v3201
  %v3204 = vmul.f32 0.5, %v3203
  %v3205 = vsub.f32 1.5, %v3204
  %v3206 = vmul.f32 %v3201, %v3205
  %vm3207 = vweird.f32 %v3185
  %vm3208 = vweird.f32 %v3201
  %vm3209 = vmor %vm3207, %vm3208
  %v3210 = vsel %vm3209, %v3201, %v3206
  %v3211 = vrsqrt.pop %v3186
  %v3212 = vmul.f32 %v3211, %v3186
  %v3213 = vmul.f32 %v3212, %v3211
  %v3214 = vmul.f32 0.5, %v3213
  %v3215 = vsub.f32 1.5, %v3214
  %v3216 = vmul.f32 %v3211, %v3215
  %vm3217 = vweird.f32 %v3186
  %vm3218 = vweird.f32 %v3211
  %vm3219 = vmor %vm3217, %vm3218
  %v3220 = vsel %vm3219, %v3211, %v3216
  %v3221 = vrsqrt.pop %v3187
  %v3222 = vmul.f32 %v3221, %v3187
  %v3223 = vmul.f32 %v3222, %v3221
  %v3224 = vmul.f32 0.5, %v3223
  %v3225 = vsub.f32 1.5, %v3224
  %v3226 = vmul.f32 %v3221, %v3225
  %vm3227 = vweird.f32 %v3187
  %vm3228 = vweird.f32 %v3221
  %vm3229 = vmor %vm3227, %vm3228
  %v3230 = vsel %vm3229, %v3221, %v3226
  %v3231 = vrsqrt.pop %v3188
  %v3232 = vmul.f32 %v3231, %v3188
  %v3233 = vmul.f32 %v3232, %v3231
  %v3234 = vmul.f32 0.5, %v3233
  %v3235 = vsub.f32 1.5, %v3234
  %v3236 = vmul.f32 %v3231, %v3235
  %vm3237 = vweird.f32 %v3188
  %vm3238 = vweird.f32 %v3231
  %vm3239 = vmor %vm3237, %vm3238
  %v3240 = vsel %vm3239, %v3231, %v3236
  %v3241 = vrsqrt.pop %v3189
  %v3242 = vmul.f32 %v3241, %v3189
  %v3243 = vmul.f32 %v3242, %v3241
  %v3244 = vmul.f32 0.5, %v3243
  %v3245 = vsub.f32 1.5, %v3244
  %v3246 = vmul.f32 %v3241, %v3245
  %vm3247 = vweird.f32 %v3189
  %vm3248 = vweird.f32 %v3241
  %vm3249 = vmor %vm3247, %vm3248
  %v3250 = vsel %vm3249, %v3241, %v3246
  %v3251 = vrsqrt.pop %v3190
  %v3252 = vmul.f32 %v3251, %v3190
  %v3253 = vmul.f32 %v3252, %v3251
  %v3254 = vmul.f32 0.5, %v3253
  %v3255 = vsub.f32 1.5, %v3254
  %v3256 = vmul.f32 %v3251, %v3255
  %vm3257 = vweird.f32 %v3190
  %vm3258 = vweird.f32 %v3251
  %vm3259 = vmor %vm3257, %vm3258
  %v3260 = vsel %vm3259, %v3251, %v3256
  %v3261 = vrsqrt.pop %v3191
  %v3262 = vmul.f32 %v3261, %v3191
  %v3263 = vmul.f32 %v3262, %v3261
  %v3264 = vmul.f32 0.5, %v3263
  %v3265 = vsub.f32 1.5, %v3264
  %v3266 = vmul.f32 %v3261, %v3265
  %vm3267 = vweird.f32 %v3191
  %vm3268 = vweird.f32 %v3261
  %vm3269 = vmor %vm3267, %vm3268
  %v3270 = vsel %vm3269, %v3261, %v3266
  %v3271 = vrsqrt.pop %v3192
  %v3272 = vmul.f32 %v3271, %v3192
  %v3273 = vmul.f32 %v3272, %v3271
  %v3274 = vmul.f32 0.5, %v3273
  %v3275 = vsub.f32 1.5, %v3274
  %v3276 = vmul.f32 %v3271, %v3275
  %vm3277 = vweird.f32 %v3192
  %vm3278 = vweird.f32 %v3271
  %vm3279 = vmor %vm3277, %vm3278
  %v3280 = vsel %vm3279, %v3271, %v3276
  %v3281 = vrsqrt.pop %v3193
  %v3282 = vmul.f32 %v3281, %v3193
  %v3283 = vmul.f32 %v3282, %v3281
  %v3284 = vmul.f32 0.5, %v3283
  %v3285 = vsub.f32 1.5, %v3284
  %v3286 = vmul.f32 %v3281, %v3285
  %vm3287 = vweird.f32 %v3193
  %vm3288 = vweird.f32 %v3281
  %vm3289 = vmor %vm3287, %vm3288
  %v3290 = vsel %vm3289, %v3281, %v3286
  %v3291 = vrsqrt.pop %v3194
  %v3292 = vmul.f32 %v3291, %v3194
  %v3293 = vmul.f32 %v3292, %v3291
  %v3294 = vmul.f32 0.5, %v3293
  %v3295 = vsub.f32 1.5, %v3294
  %v3296 = vmul.f32 %v3291, %v3295
  %vm3297 = vweird.f32 %v3194
  %vm3298 = vweird.f32 %v3291
  %vm3299 = vmor %vm3297, %vm3298
  %v3300 = vsel %vm3299, %v3291, %v3296
  %v3301 = vrsqrt.pop %v3195
  %v3302 = vmul.f32 %v3301, %v3195
  %v3303 = vmul.f32 %v3302, %v3301
  %v3304 = vmul.f32 0.5, %v3303
  %v3305 = vsub.f32 1.5, %v3304
  %v3306 = vmul.f32 %v3301, %v3305
  %vm3307 = vweird.f32 %v3195
  %vm3308 = vweird.f32 %v3301
  %vm3309 = vmor %vm3307, %vm3308
  %v3310 = vsel %vm3309, %v3301, %v3306
  %v3311 = vrsqrt.pop %v3196
  %v3312 = vmul.f32 %v3311, %v3196
  %v3313 = vmul.f32 %v3312, %v3311
  %v3314 = vmul.f32 0.5, %v3313
  %v3315 = vsub.f32 1.5, %v3314
  %v3316 = vmul.f32 %v3311, %v3315
  %vm3317 = vweird.f32 %v3196
  %vm3318 = vweird.f32 %v3311
  %vm3319 = vmor %vm3317, %vm3318
  %v3320 = vsel %vm3319, %v3311, %v3316
  %v3321 = vrsqrt.pop %v3197
  %v3322 = vmul.f32 %v3321, %v3197
  %v3323 = vmul.f32 %v3322, %v3321
  %v3324 = vmul.f32 0.5, %v3323
  %v3325 = vsub.f32 1.5, %v3324
  %v3326 = vmul.f32 %v3321, %v3325
  %vm3327 = vweird.f32 %v3197
  %vm3328 = vweird.f32 %v3321
  %vm3329 = vmor %vm3327, %vm3328
  %v3330 = vsel %vm3329, %v3321, %v3326
  %v3331 = vrsqrt.pop %v3198
  %v3332 = vmul.f32 %v3331, %v3198
  %v3333 = vmul.f32 %v3332, %v3331
  %v3334 = vmul.f32 0.5, %v3333
  %v3335 = vsub.f32 1.5, %v3334
  %v3336 = vmul.f32 %v3331, %v3335
  %vm3337 = vweird.f32 %v3198
  %vm3338 = vweird.f32 %v3331
  %vm3339 = vmor %vm3337, %vm3338
  %v3340 = vsel %vm3339, %v3331, %v3336
  %v3341 = vrsqrt.pop %v3199
  %v3342 = vmul.f32 %v3341, %v3199
  %v3343 = vmul.f32 %v3342, %v3341
  %v3344 = vmul.f32 0.5, %v3343
  %v3345 = vsub.f32 1.5, %v3344
  %v3346 = vmul.f32 %v3341, %v3345
  %vm3347 = vweird.f32 %v3199
  %vm3348 = vweird.f32 %v3341
  %vm3349 = vmor %vm3347, %vm3348
  %v3350 = vsel %vm3349, %v3341, %v3346
  %v3351 = vrsqrt.pop %v3200
  %v3352 = vmul.f32 %v3351, %v3200
  %v3353 = vmul.f32 %v3352, %v3351
  %v3354 = vmul.f32 0.5, %v3353
  %v3355 = vsub.f32 1.5, %v3354
  %v3356 = vmul.f32 %v3351, %v3355
  %vm3357 = vweird.f32 %v3200
  %vm3358 = vweird.f32 %v3351
  %vm3359 = vmor %vm3357, %vm3358
  %v3360 = vsel %vm3359, %v3351, %v3356
  %v3361 = vmul.f32 %v3089, %v3210
  %v3362 = vmul.f32 %v3090, %v3220
  %v3363 = vmul.f32 %v3091, %v3230
  %v3364 = vmul.f32 %v3092, %v3240
  %v3365 = vmul.f32 %v3093, %v3250
  %v3366 = vmul.f32 %v3094, %v3260
  %v3367 = vmul.f32 %v3095, %v3270
  %v3368 = vmul.f32 %v3096, %v3280
  %v3369 = vmul.f32 %v3097, %v3290
  %v3370 = vmul.f32 %v3098, %v3300
  %v3371 = vmul.f32 %v3099, %v3310
  %v3372 = vmul.f32 %v3100, %v3320
  %v3373 = vmul.f32 %v3101, %v3330
  %v3374 = vmul.f32 %v3102, %v3340
  %v3375 = vmul.f32 %v3103, %v3350
  %v3376 = vmul.f32 %v3104, %v3360
  %v3377 = vperm.slane %v51, 2
  %v3378 = vmul.f32 %v3361, %v3377
  %v3379 = vmul.f32 %v3362, %v3377
  %v3380 = vmul.f32 %v3363, %v3377
  %v3381 = vmul.f32 %v3364, %v3377
  %v3382 = vmul.f32 %v3365, %v3377
  %v3383 = vmul.f32 %v3366, %v3377
  %v3384 = vmul.f32 %v3367, %v3377
  %v3385 = vmul.f32 %v3368, %v3377
  %v3386 = vmul.f32 %v3369, %v3377
  %v3387 = vmul.f32 %v3370, %v3377
  %v3388 = vmul.f32 %v3371, %v3377
  %v3389 = vmul.f32 %v3372, %v3377
  %v3390 = vmul.f32 %v3373, %v3377
  %v3391 = vmul.f32 %v3374, %v3377
  %v3392 = vmul.f32 %v3375, %v3377
  %v3393 = vmul.f32 %v3376, %v3377
  %v3394 = vperm.slane %v51, 3
  %v3395 = vadd.f32 %v3378, %v3394
  %v3396 = vadd.f32 %v3379, %v3394
  %v3397 = vadd.f32 %v3380, %v3394
  %v3398 = vadd.f32 %v3381, %v3394
  %v3399 = vadd.f32 %v3382, %v3394
  %v3400 = vadd.f32 %v3383, %v3394
  %v3401 = vadd.f32 %v3384, %v3394
  %v3402 = vadd.f32 %v3385, %v3394
  %v3403 = vadd.f32 %v3386, %v3394
  %v3404 = vadd.f32 %v3387, %v3394
  %v3405 = vadd.f32 %v3388, %v3394
  %v3406 = vadd.f32 %v3389, %v3394
  %v3407 = vadd.f32 %v3390, %v3394
  %v3408 = vadd.f32 %v3391, %v3394
  %v3409 = vadd.f32 %v3392, %v3394
  %v3410 = vadd.f32 %v3393, %v3394
  %3415 = vrot.lane.b32.xlu0 %v39, 96
  %v3416 = vpop.permute.xlu0 %3415
  %3417 = vrot.lane.b32.xlu0 %v40, 96
  %v3418 = vpop.permute.xlu0 %3417
  %3419 = vrot.lane.b32.xlu0 %v41, 96
  %v3420 = vpop.permute.xlu0 %3419
  %3421 = vrot.lane.b32.xlu0 %v42, 96
  %v3422 = vpop.permute.xlu0 %3421
  %3428 = vrot.lane.b32.xlu0 %v2985, 96
  %v3429 = vpop.permute.xlu0 %3428
  %v3432 = vsel %vm53, %v3395, 0
  %v3435 = vsel %vm53, %v3396, 0
  %v3438 = vsel %vm53, %v3397, 0
  %v3441 = vsel %vm53, %v3398, 0
  %v3444 = vsel %vm53, %v3399, 0
  %v3447 = vsel %vm53, %v3400, 0
  %v3450 = vsel %vm53, %v3401, 0
  %v3453 = vsel %vm53, %v3402, 0
  %v3456 = vsel %vm53, %v3403, 0
  %v3459 = vsel %vm53, %v3404, 0
  %v3462 = vsel %vm53, %v3405, 0
  %v3465 = vsel %vm53, %v3406, 0
  %v3468 = vsel %vm53, %v3407, 0
  %v3471 = vsel %vm53, %v3408, 0
  %v3474 = vsel %vm53, %v3409, 0
  %v3477 = vsel %vm53, %v3410, 0
  %3479 = vmatpush.msra.mxu0 0.0
  %3480 = vmatpush.msra.mxu0 0.0
  %3481 = vmatpush.msra.mxu0 0.0
  %3482 = vmatpush.msra.mxu0 0.0
  %3483 = vmatpush.msra.mxu0 0.0
  %3484 = vmatpush.msra.mxu0 0.0
  %3485 = vmatpush.msra.mxu0 0.0
  %3486 = vmatpush.msra.mxu0 0.0
  %3487 = vmatpush.msra.mxu0 0.0
  %3488 = vmatpush.msra.mxu0 0.0
  %3489 = vmatpush.msra.mxu0 0.0
  %3490 = vmatpush.msra.mxu0 0.0
  %3491 = vmatpush.msra.mxu0 %v3422
  %3492 = vmatpush.msra.mxu0 %v3420
  %3493 = vmatpush.msra.mxu0 %v3418
  %3494 = vmatpush.msra.mxu0 %v3416
  %3495 = vmatmul.f32.gmra.mxu0 %v3432
  %v3496 = vpop.f32.mrf.mxu0
  %v3497 = vadd.f32 %v3429, %v3496
  %3498 = vmatmul.f32.gmra.mxu0 %v3435
  %v3499 = vpop.f32.mrf.mxu0
  %v3500 = vadd.f32 %v3429, %v3499
  %3501 = vmatmul.f32.gmra.mxu0 %v3438
  %v3502 = vpop.f32.mrf.mxu0
  %v3503 = vadd.f32 %v3429, %v3502
  %3504 = vmatmul.f32.gmra.mxu0 %v3441
  %v3505 = vpop.f32.mrf.mxu0
  %v3506 = vadd.f32 %v3429, %v3505
  %3507 = vmatmul.f32.gmra.mxu0 %v3444
  %v3508 = vpop.f32.mrf.mxu0
  %v3509 = vadd.f32 %v3429, %v3508
  %3510 = vmatmul.f32.gmra.mxu0 %v3447
  %v3511 = vpop.f32.mrf.mxu0
  %v3512 = vadd.f32 %v3429, %v3511
  %3513 = vmatmul.f32.gmra.mxu0 %v3450
  %v3514 = vpop.f32.mrf.mxu0
  %v3515 = vadd.f32 %v3429, %v3514
  %3516 = vmatmul.f32.gmra.mxu0 %v3453
  %v3517 = vpop.f32.mrf.mxu0
  %v3518 = vadd.f32 %v3429, %v3517
  %3519 = vmatmul.f32.gmra.mxu0 %v3456
  %v3520 = vpop.f32.mrf.mxu0
  %v3521 = vadd.f32 %v3429, %v3520
  %3522 = vmatmul.f32.gmra.mxu0 %v3459
  %v3523 = vpop.f32.mrf.mxu0
  %v3524 = vadd.f32 %v3429, %v3523
  %3525 = vmatmul.f32.gmra.mxu0 %v3462
  %v3526 = vpop.f32.mrf.mxu0
  %v3527 = vadd.f32 %v3429, %v3526
  %3528 = vmatmul.f32.gmra.mxu0 %v3465
  %v3529 = vpop.f32.mrf.mxu0
  %v3530 = vadd.f32 %v3429, %v3529
  %3531 = vmatmul.f32.gmra.mxu0 %v3468
  %v3532 = vpop.f32.mrf.mxu0
  %v3533 = vadd.f32 %v3429, %v3532
  %3534 = vmatmul.f32.gmra.mxu0 %v3471
  %v3535 = vpop.f32.mrf.mxu0
  %v3536 = vadd.f32 %v3429, %v3535
  %3537 = vmatmul.f32.gmra.mxu0 %v3474
  %v3538 = vpop.f32.mrf.mxu0
  %v3539 = vadd.f32 %v3429, %v3538
  %3540 = vmatmul.f32.gmra.mxu0 %v3477
  %v3541 = vpop.f32.mrf.mxu0
  %v3542 = vadd.f32 %v3429, %v3541
  %3543 = vdwg.mxu0
  %v3544 = vmul.f32 %v3497, 0.5
  %v3545 = vmul.f32 %v3500, 0.5
  %v3546 = vmul.f32 %v3503, 0.5
  %v3547 = vmul.f32 %v3506, 0.5
  %v3548 = vmul.f32 %v3509, 0.5
  %v3549 = vmul.f32 %v3512, 0.5
  %v3550 = vmul.f32 %v3515, 0.5
  %v3551 = vmul.f32 %v3518, 0.5
  %v3552 = vmul.f32 %v3521, 0.5
  %v3553 = vmul.f32 %v3524, 0.5
  %v3554 = vmul.f32 %v3527, 0.5
  %v3555 = vmul.f32 %v3530, 0.5
  %v3556 = vmul.f32 %v3533, 0.5
  %v3557 = vmul.f32 %v3536, 0.5
  %v3558 = vmul.f32 %v3539, 0.5
  %v3559 = vmul.f32 %v3542, 0.5
  %v3560 = vmul.f32 %v3497, 0.70710677
  %v3561 = vmul.f32 %v3500, 0.70710677
  %v3562 = vmul.f32 %v3503, 0.70710677
  %v3563 = vmul.f32 %v3506, 0.70710677
  %v3564 = vmul.f32 %v3509, 0.70710677
  %v3565 = vmul.f32 %v3512, 0.70710677
  %v3566 = vmul.f32 %v3515, 0.70710677
  %v3567 = vmul.f32 %v3518, 0.70710677
  %v3568 = vmul.f32 %v3521, 0.70710677
  %v3569 = vmul.f32 %v3524, 0.70710677
  %v3570 = vmul.f32 %v3527, 0.70710677
  %v3571 = vmul.f32 %v3530, 0.70710677
  %v3572 = vmul.f32 %v3533, 0.70710677
  %v3573 = vmul.f32 %v3536, 0.70710677
  %v3574 = vmul.f32 %v3539, 0.70710677
  %v3575 = vmul.f32 %v3542, 0.70710677
  %v3576 = vand.u32 2147483647, %v3560
  %v3577 = vand.u32 2147483647, %v3561
  %v3578 = vand.u32 2147483647, %v3562
  %v3579 = vand.u32 2147483647, %v3563
  %v3580 = vand.u32 2147483647, %v3564
  %v3581 = vand.u32 2147483647, %v3565
  %v3582 = vand.u32 2147483647, %v3566
  %v3583 = vand.u32 2147483647, %v3567
  %v3584 = vand.u32 2147483647, %v3568
  %v3585 = vand.u32 2147483647, %v3569
  %v3586 = vand.u32 2147483647, %v3570
  %v3587 = vand.u32 2147483647, %v3571
  %v3588 = vand.u32 2147483647, %v3572
  %v3589 = vand.u32 2147483647, %v3573
  %v3590 = vand.u32 2147483647, %v3574
  %v3591 = vand.u32 2147483647, %v3575
  %v3592 = vmul.f32 %v3576, 0.3275911
  %v3593 = vmul.f32 %v3577, 0.3275911
  %v3594 = vmul.f32 %v3578, 0.3275911
  %v3595 = vmul.f32 %v3579, 0.3275911
  %v3596 = vmul.f32 %v3580, 0.3275911
  %v3597 = vmul.f32 %v3581, 0.3275911
  %v3598 = vmul.f32 %v3582, 0.3275911
  %v3599 = vmul.f32 %v3583, 0.3275911
  %v3600 = vmul.f32 %v3584, 0.3275911
  %v3601 = vmul.f32 %v3585, 0.3275911
  %v3602 = vmul.f32 %v3586, 0.3275911
  %v3603 = vmul.f32 %v3587, 0.3275911
  %v3604 = vmul.f32 %v3588, 0.3275911
  %v3605 = vmul.f32 %v3589, 0.3275911
  %v3606 = vmul.f32 %v3590, 0.3275911
  %v3607 = vmul.f32 %v3591, 0.3275911
  %v3608 = vadd.f32 %v3592, 1.0
  %v3609 = vadd.f32 %v3593, 1.0
  %v3610 = vadd.f32 %v3594, 1.0
  %v3611 = vadd.f32 %v3595, 1.0
  %v3612 = vadd.f32 %v3596, 1.0
  %v3613 = vadd.f32 %v3597, 1.0
  %v3614 = vadd.f32 %v3598, 1.0
  %v3615 = vadd.f32 %v3599, 1.0
  %v3616 = vadd.f32 %v3600, 1.0
  %v3617 = vadd.f32 %v3601, 1.0
  %v3618 = vadd.f32 %v3602, 1.0
  %v3619 = vadd.f32 %v3603, 1.0
  %v3620 = vadd.f32 %v3604, 1.0
  %v3621 = vadd.f32 %v3605, 1.0
  %v3622 = vadd.f32 %v3606, 1.0
  %v3623 = vadd.f32 %v3607, 1.0
  %v3624 = vrcp.pop %v3608
  %v3625 = vmul.f32 %v3608, %v3624
  %v3626 = vsub.f32 1.0, %v3625
  %v3627 = vmul.f32 %v3624, %v3626
  %v3628 = vadd.f32 %v3624, %v3627
  %vm3629 = vweird.f32 %v3608
  %vm3630 = vweird.f32 %v3624
  %vm3631 = vmor %vm3629, %vm3630
  %v3632 = vsel %vm3631, %v3624, %v3628
  %v3633 = vand.u32 2147483647, %v3608
  %vm3634 = vcmp.eq.f32.partialorder %v3633, 8.507059e+37
  %v3635 = vand.u32 %v3608, 2147483648
  %v3636 = vor.u32 1.1754944e-38, %v3635
  %v3637 = vsel %vm3634, %v3636, %v3632
  %v3638 = vmul.f32 1.0, %v3637
  %v3639 = vrcp.pop %v3609
  %v3640 = vmul.f32 %v3609, %v3639
  %v3641 = vsub.f32 1.0, %v3640
  %v3642 = vmul.f32 %v3639, %v3641
  %v3643 = vadd.f32 %v3639, %v3642
  %vm3644 = vweird.f32 %v3609
  %vm3645 = vweird.f32 %v3639
  %vm3646 = vmor %vm3644, %vm3645
  %v3647 = vsel %vm3646, %v3639, %v3643
  %v3648 = vand.u32 2147483647, %v3609
  %vm3649 = vcmp.eq.f32.partialorder %v3648, 8.507059e+37
  %v3650 = vand.u32 %v3609, 2147483648
  %v3651 = vor.u32 1.1754944e-38, %v3650
  %v3652 = vsel %vm3649, %v3651, %v3647
  %v3653 = vmul.f32 1.0, %v3652
  %v3654 = vrcp.pop %v3610
  %v3655 = vmul.f32 %v3610, %v3654
  %v3656 = vsub.f32 1.0, %v3655
  %v3657 = vmul.f32 %v3654, %v3656
  %v3658 = vadd.f32 %v3654, %v3657
  %vm3659 = vweird.f32 %v3610
  %vm3660 = vweird.f32 %v3654
  %vm3661 = vmor %vm3659, %vm3660
  %v3662 = vsel %vm3661, %v3654, %v3658
  %v3663 = vand.u32 2147483647, %v3610
  %vm3664 = vcmp.eq.f32.partialorder %v3663, 8.507059e+37
  %v3665 = vand.u32 %v3610, 2147483648
  %v3666 = vor.u32 1.1754944e-38, %v3665
  %v3667 = vsel %vm3664, %v3666, %v3662
  %v3668 = vmul.f32 1.0, %v3667
  %v3669 = vrcp.pop %v3611
  %v3670 = vmul.f32 %v3611, %v3669
  %v3671 = vsub.f32 1.0, %v3670
  %v3672 = vmul.f32 %v3669, %v3671
  %v3673 = vadd.f32 %v3669, %v3672
  %vm3674 = vweird.f32 %v3611
  %vm3675 = vweird.f32 %v3669
  %vm3676 = vmor %vm3674, %vm3675
  %v3677 = vsel %vm3676, %v3669, %v3673
  %v3678 = vand.u32 2147483647, %v3611
  %vm3679 = vcmp.eq.f32.partialorder %v3678, 8.507059e+37
  %v3680 = vand.u32 %v3611, 2147483648
  %v3681 = vor.u32 1.1754944e-38, %v3680
  %v3682 = vsel %vm3679, %v3681, %v3677
  %v3683 = vmul.f32 1.0, %v3682
  %v3684 = vrcp.pop %v3612
  %v3685 = vmul.f32 %v3612, %v3684
  %v3686 = vsub.f32 1.0, %v3685
  %v3687 = vmul.f32 %v3684, %v3686
  %v3688 = vadd.f32 %v3684, %v3687
  %vm3689 = vweird.f32 %v3612
  %vm3690 = vweird.f32 %v3684
  %vm3691 = vmor %vm3689, %vm3690
  %v3692 = vsel %vm3691, %v3684, %v3688
  %v3693 = vand.u32 2147483647, %v3612
  %vm3694 = vcmp.eq.f32.partialorder %v3693, 8.507059e+37
  %v3695 = vand.u32 %v3612, 2147483648
  %v3696 = vor.u32 1.1754944e-38, %v3695
  %v3697 = vsel %vm3694, %v3696, %v3692
  %v3698 = vmul.f32 1.0, %v3697
  %v3699 = vrcp.pop %v3613
  %v3700 = vmul.f32 %v3613, %v3699
  %v3701 = vsub.f32 1.0, %v3700
  %v3702 = vmul.f32 %v3699, %v3701
  %v3703 = vadd.f32 %v3699, %v3702
  %vm3704 = vweird.f32 %v3613
  %vm3705 = vweird.f32 %v3699
  %vm3706 = vmor %vm3704, %vm3705
  %v3707 = vsel %vm3706, %v3699, %v3703
  %v3708 = vand.u32 2147483647, %v3613
  %vm3709 = vcmp.eq.f32.partialorder %v3708, 8.507059e+37
  %v3710 = vand.u32 %v3613, 2147483648
  %v3711 = vor.u32 1.1754944e-38, %v3710
  %v3712 = vsel %vm3709, %v3711, %v3707
  %v3713 = vmul.f32 1.0, %v3712
  %v3714 = vrcp.pop %v3614
  %v3715 = vmul.f32 %v3614, %v3714
  %v3716 = vsub.f32 1.0, %v3715
  %v3717 = vmul.f32 %v3714, %v3716
  %v3718 = vadd.f32 %v3714, %v3717
  %vm3719 = vweird.f32 %v3614
  %vm3720 = vweird.f32 %v3714
  %vm3721 = vmor %vm3719, %vm3720
  %v3722 = vsel %vm3721, %v3714, %v3718
  %v3723 = vand.u32 2147483647, %v3614
  %vm3724 = vcmp.eq.f32.partialorder %v3723, 8.507059e+37
  %v3725 = vand.u32 %v3614, 2147483648
  %v3726 = vor.u32 1.1754944e-38, %v3725
  %v3727 = vsel %vm3724, %v3726, %v3722
  %v3728 = vmul.f32 1.0, %v3727
  %v3729 = vrcp.pop %v3615
  %v3730 = vmul.f32 %v3615, %v3729
  %v3731 = vsub.f32 1.0, %v3730
  %v3732 = vmul.f32 %v3729, %v3731
  %v3733 = vadd.f32 %v3729, %v3732
  %vm3734 = vweird.f32 %v3615
  %vm3735 = vweird.f32 %v3729
  %vm3736 = vmor %vm3734, %vm3735
  %v3737 = vsel %vm3736, %v3729, %v3733
  %v3738 = vand.u32 2147483647, %v3615
  %vm3739 = vcmp.eq.f32.partialorder %v3738, 8.507059e+37
  %v3740 = vand.u32 %v3615, 2147483648
  %v3741 = vor.u32 1.1754944e-38, %v3740
  %v3742 = vsel %vm3739, %v3741, %v3737
  %v3743 = vmul.f32 1.0, %v3742
  %v3744 = vrcp.pop %v3616
  %v3745 = vmul.f32 %v3616, %v3744
  %v3746 = vsub.f32 1.0, %v3745
  %v3747 = vmul.f32 %v3744, %v3746
  %v3748 = vadd.f32 %v3744, %v3747
  %vm3749 = vweird.f32 %v3616
  %vm3750 = vweird.f32 %v3744
  %vm3751 = vmor %vm3749, %vm3750
  %v3752 = vsel %vm3751, %v3744, %v3748
  %v3753 = vand.u32 2147483647, %v3616
  %vm3754 = vcmp.eq.f32.partialorder %v3753, 8.507059e+37
  %v3755 = vand.u32 %v3616, 2147483648
  %v3756 = vor.u32 1.1754944e-38, %v3755
  %v3757 = vsel %vm3754, %v3756, %v3752
  %v3758 = vmul.f32 1.0, %v3757
  %v3759 = vrcp.pop %v3617
  %v3760 = vmul.f32 %v3617, %v3759
  %v3761 = vsub.f32 1.0, %v3760
  %v3762 = vmul.f32 %v3759, %v3761
  %v3763 = vadd.f32 %v3759, %v3762
  %vm3764 = vweird.f32 %v3617
  %vm3765 = vweird.f32 %v3759
  %vm3766 = vmor %vm3764, %vm3765
  %v3767 = vsel %vm3766, %v3759, %v3763
  %v3768 = vand.u32 2147483647, %v3617
  %vm3769 = vcmp.eq.f32.partialorder %v3768, 8.507059e+37
  %v3770 = vand.u32 %v3617, 2147483648
  %v3771 = vor.u32 1.1754944e-38, %v3770
  %v3772 = vsel %vm3769, %v3771, %v3767
  %v3773 = vmul.f32 1.0, %v3772
  %v3774 = vrcp.pop %v3618
  %v3775 = vmul.f32 %v3618, %v3774
  %v3776 = vsub.f32 1.0, %v3775
  %v3777 = vmul.f32 %v3774, %v3776
  %v3778 = vadd.f32 %v3774, %v3777
  %vm3779 = vweird.f32 %v3618
  %vm3780 = vweird.f32 %v3774
  %vm3781 = vmor %vm3779, %vm3780
  %v3782 = vsel %vm3781, %v3774, %v3778
  %v3783 = vand.u32 2147483647, %v3618
  %vm3784 = vcmp.eq.f32.partialorder %v3783, 8.507059e+37
  %v3785 = vand.u32 %v3618, 2147483648
  %v3786 = vor.u32 1.1754944e-38, %v3785
  %v3787 = vsel %vm3784, %v3786, %v3782
  %v3788 = vmul.f32 1.0, %v3787
  %v3789 = vrcp.pop %v3619
  %v3790 = vmul.f32 %v3619, %v3789
  %v3791 = vsub.f32 1.0, %v3790
  %v3792 = vmul.f32 %v3789, %v3791
  %v3793 = vadd.f32 %v3789, %v3792
  %vm3794 = vweird.f32 %v3619
  %vm3795 = vweird.f32 %v3789
  %vm3796 = vmor %vm3794, %vm3795
  %v3797 = vsel %vm3796, %v3789, %v3793
  %v3798 = vand.u32 2147483647, %v3619
  %vm3799 = vcmp.eq.f32.partialorder %v3798, 8.507059e+37
  %v3800 = vand.u32 %v3619, 2147483648
  %v3801 = vor.u32 1.1754944e-38, %v3800
  %v3802 = vsel %vm3799, %v3801, %v3797
  %v3803 = vmul.f32 1.0, %v3802
  %v3804 = vrcp.pop %v3620
  %v3805 = vmul.f32 %v3620, %v3804
  %v3806 = vsub.f32 1.0, %v3805
  %v3807 = vmul.f32 %v3804, %v3806
  %v3808 = vadd.f32 %v3804, %v3807
  %vm3809 = vweird.f32 %v3620
  %vm3810 = vweird.f32 %v3804
  %vm3811 = vmor %vm3809, %vm3810
  %v3812 = vsel %vm3811, %v3804, %v3808
  %v3813 = vand.u32 2147483647, %v3620
  %vm3814 = vcmp.eq.f32.partialorder %v3813, 8.507059e+37
  %v3815 = vand.u32 %v3620, 2147483648
  %v3816 = vor.u32 1.1754944e-38, %v3815
  %v3817 = vsel %vm3814, %v3816, %v3812
  %v3818 = vmul.f32 1.0, %v3817
  %v3819 = vrcp.pop %v3621
  %v3820 = vmul.f32 %v3621, %v3819
  %v3821 = vsub.f32 1.0, %v3820
  %v3822 = vmul.f32 %v3819, %v3821
  %v3823 = vadd.f32 %v3819, %v3822
  %vm3824 = vweird.f32 %v3621
  %vm3825 = vweird.f32 %v3819
  %vm3826 = vmor %vm3824, %vm3825
  %v3827 = vsel %vm3826, %v3819, %v3823
  %v3828 = vand.u32 2147483647, %v3621
  %vm3829 = vcmp.eq.f32.partialorder %v3828, 8.507059e+37
  %v3830 = vand.u32 %v3621, 2147483648
  %v3831 = vor.u32 1.1754944e-38, %v3830
  %v3832 = vsel %vm3829, %v3831, %v3827
  %v3833 = vmul.f32 1.0, %v3832
  %v3834 = vrcp.pop %v3622
  %v3835 = vmul.f32 %v3622, %v3834
  %v3836 = vsub.f32 1.0, %v3835
  %v3837 = vmul.f32 %v3834, %v3836
  %v3838 = vadd.f32 %v3834, %v3837
  %vm3839 = vweird.f32 %v3622
  %vm3840 = vweird.f32 %v3834
  %vm3841 = vmor %vm3839, %vm3840
  %v3842 = vsel %vm3841, %v3834, %v3838
  %v3843 = vand.u32 2147483647, %v3622
  %vm3844 = vcmp.eq.f32.partialorder %v3843, 8.507059e+37
  %v3845 = vand.u32 %v3622, 2147483648
  %v3846 = vor.u32 1.1754944e-38, %v3845
  %v3847 = vsel %vm3844, %v3846, %v3842
  %v3848 = vmul.f32 1.0, %v3847
  %v3849 = vrcp.pop %v3623
  %v3850 = vmul.f32 %v3623, %v3849
  %v3851 = vsub.f32 1.0, %v3850
  %v3852 = vmul.f32 %v3849, %v3851
  %v3853 = vadd.f32 %v3849, %v3852
  %vm3854 = vweird.f32 %v3623
  %vm3855 = vweird.f32 %v3849
  %vm3856 = vmor %vm3854, %vm3855
  %v3857 = vsel %vm3856, %v3849, %v3853
  %v3858 = vand.u32 2147483647, %v3623
  %vm3859 = vcmp.eq.f32.partialorder %v3858, 8.507059e+37
  %v3860 = vand.u32 %v3623, 2147483648
  %v3861 = vor.u32 1.1754944e-38, %v3860
  %v3862 = vsel %vm3859, %v3861, %v3857
  %v3863 = vmul.f32 1.0, %v3862
  %v3864 = vmul.f32 %v3638, 1.0614054
  %v3865 = vmul.f32 %v3653, 1.0614054
  %v3866 = vmul.f32 %v3668, 1.0614054
  %v3867 = vmul.f32 %v3683, 1.0614054
  %v3868 = vmul.f32 %v3698, 1.0614054
  %v3869 = vmul.f32 %v3713, 1.0614054
  %v3870 = vmul.f32 %v3728, 1.0614054
  %v3871 = vmul.f32 %v3743, 1.0614054
  %v3872 = vmul.f32 %v3758, 1.0614054
  %v3873 = vmul.f32 %v3773, 1.0614054
  %v3874 = vmul.f32 %v3788, 1.0614054
  %v3875 = vmul.f32 %v3803, 1.0614054
  %v3876 = vmul.f32 %v3818, 1.0614054
  %v3877 = vmul.f32 %v3833, 1.0614054
  %v3878 = vmul.f32 %v3848, 1.0614054
  %v3879 = vmul.f32 %v3863, 1.0614054
  %v3880 = vadd.f32 %v3864, -1.4531521
  %v3881 = vadd.f32 %v3865, -1.4531521
  %v3882 = vadd.f32 %v3866, -1.4531521
  %v3883 = vadd.f32 %v3867, -1.4531521
  %v3884 = vadd.f32 %v3868, -1.4531521
  %v3885 = vadd.f32 %v3869, -1.4531521
  %v3886 = vadd.f32 %v3870, -1.4531521
  %v3887 = vadd.f32 %v3871, -1.4531521
  %v3888 = vadd.f32 %v3872, -1.4531521
  %v3889 = vadd.f32 %v3873, -1.4531521
  %v3890 = vadd.f32 %v3874, -1.4531521
  %v3891 = vadd.f32 %v3875, -1.4531521
  %v3892 = vadd.f32 %v3876, -1.4531521
  %v3893 = vadd.f32 %v3877, -1.4531521
  %v3894 = vadd.f32 %v3878, -1.4531521
  %v3895 = vadd.f32 %v3879, -1.4531521
  %v3896 = vmul.f32 %v3880, %v3638
  %v3897 = vmul.f32 %v3881, %v3653
  %v3898 = vmul.f32 %v3882, %v3668
  %v3899 = vmul.f32 %v3883, %v3683
  %v3900 = vmul.f32 %v3884, %v3698
  %v3901 = vmul.f32 %v3885, %v3713
  %v3902 = vmul.f32 %v3886, %v3728
  %v3903 = vmul.f32 %v3887, %v3743
  %v3904 = vmul.f32 %v3888, %v3758
  %v3905 = vmul.f32 %v3889, %v3773
  %v3906 = vmul.f32 %v3890, %v3788
  %v3907 = vmul.f32 %v3891, %v3803
  %v3908 = vmul.f32 %v3892, %v3818
  %v3909 = vmul.f32 %v3893, %v3833
  %v3910 = vmul.f32 %v3894, %v3848
  %v3911 = vmul.f32 %v3895, %v3863
  %v3912 = vadd.f32 %v3896, 1.4214138
  %v3913 = vadd.f32 %v3897, 1.4214138
  %v3914 = vadd.f32 %v3898, 1.4214138
  %v3915 = vadd.f32 %v3899, 1.4214138
  %v3916 = vadd.f32 %v3900, 1.4214138
  %v3917 = vadd.f32 %v3901, 1.4214138
  %v3918 = vadd.f32 %v3902, 1.4214138
  %v3919 = vadd.f32 %v3903, 1.4214138
  %v3920 = vadd.f32 %v3904, 1.4214138
  %v3921 = vadd.f32 %v3905, 1.4214138
  %v3922 = vadd.f32 %v3906, 1.4214138
  %v3923 = vadd.f32 %v3907, 1.4214138
  %v3924 = vadd.f32 %v3908, 1.4214138
  %v3925 = vadd.f32 %v3909, 1.4214138
  %v3926 = vadd.f32 %v3910, 1.4214138
  %v3927 = vadd.f32 %v3911, 1.4214138
  %v3928 = vmul.f32 %v3912, %v3638
  %v3929 = vmul.f32 %v3913, %v3653
  %v3930 = vmul.f32 %v3914, %v3668
  %v3931 = vmul.f32 %v3915, %v3683
  %v3932 = vmul.f32 %v3916, %v3698
  %v3933 = vmul.f32 %v3917, %v3713
  %v3934 = vmul.f32 %v3918, %v3728
  %v3935 = vmul.f32 %v3919, %v3743
  %v3936 = vmul.f32 %v3920, %v3758
  %v3937 = vmul.f32 %v3921, %v3773
  %v3938 = vmul.f32 %v3922, %v3788
  %v3939 = vmul.f32 %v3923, %v3803
  %v3940 = vmul.f32 %v3924, %v3818
  %v3941 = vmul.f32 %v3925, %v3833
  %v3942 = vmul.f32 %v3926, %v3848
  %v3943 = vmul.f32 %v3927, %v3863
  %v3944 = vadd.f32 %v3928, -0.28449672
  %v3945 = vadd.f32 %v3929, -0.28449672
  %v3946 = vadd.f32 %v3930, -0.28449672
  %v3947 = vadd.f32 %v3931, -0.28449672
  %v3948 = vadd.f32 %v3932, -0.28449672
  %v3949 = vadd.f32 %v3933, -0.28449672
  %v3950 = vadd.f32 %v3934, -0.28449672
  %v3951 = vadd.f32 %v3935, -0.28449672
  %v3952 = vadd.f32 %v3936, -0.28449672
  %v3953 = vadd.f32 %v3937, -0.28449672
  %v3954 = vadd.f32 %v3938, -0.28449672
  %v3955 = vadd.f32 %v3939, -0.28449672
  %v3956 = vadd.f32 %v3940, -0.28449672
  %v3957 = vadd.f32 %v3941, -0.28449672
  %v3958 = vadd.f32 %v3942, -0.28449672
  %v3959 = vadd.f32 %v3943, -0.28449672
  %v3960 = vmul.f32 %v3944, %v3638
  %v3961 = vmul.f32 %v3945, %v3653
  %v3962 = vmul.f32 %v3946, %v3668
  %v3963 = vmul.f32 %v3947, %v3683
  %v3964 = vmul.f32 %v3948, %v3698
  %v3965 = vmul.f32 %v3949, %v3713
  %v3966 = vmul.f32 %v3950, %v3728
  %v3967 = vmul.f32 %v3951, %v3743
  %v3968 = vmul.f32 %v3952, %v3758
  %v3969 = vmul.f32 %v3953, %v3773
  %v3970 = vmul.f32 %v3954, %v3788
  %v3971 = vmul.f32 %v3955, %v3803
  %v3972 = vmul.f32 %v3956, %v3818
  %v3973 = vmul.f32 %v3957, %v3833
  %v3974 = vmul.f32 %v3958, %v3848
  %v3975 = vmul.f32 %v3959, %v3863
  %v3976 = vadd.f32 %v3960, 0.2548296
  %v3977 = vadd.f32 %v3961, 0.2548296
  %v3978 = vadd.f32 %v3962, 0.2548296
  %v3979 = vadd.f32 %v3963, 0.2548296
  %v3980 = vadd.f32 %v3964, 0.2548296
  %v3981 = vadd.f32 %v3965, 0.2548296
  %v3982 = vadd.f32 %v3966, 0.2548296
  %v3983 = vadd.f32 %v3967, 0.2548296
  %v3984 = vadd.f32 %v3968, 0.2548296
  %v3985 = vadd.f32 %v3969, 0.2548296
  %v3986 = vadd.f32 %v3970, 0.2548296
  %v3987 = vadd.f32 %v3971, 0.2548296
  %v3988 = vadd.f32 %v3972, 0.2548296
  %v3989 = vadd.f32 %v3973, 0.2548296
  %v3990 = vadd.f32 %v3974, 0.2548296
  %v3991 = vadd.f32 %v3975, 0.2548296
  %v3992 = vmul.f32 %v3976, %v3638
  %v3993 = vmul.f32 %v3977, %v3653
  %v3994 = vmul.f32 %v3978, %v3668
  %v3995 = vmul.f32 %v3979, %v3683
  %v3996 = vmul.f32 %v3980, %v3698
  %v3997 = vmul.f32 %v3981, %v3713
  %v3998 = vmul.f32 %v3982, %v3728
  %v3999 = vmul.f32 %v3983, %v3743
  %v4000 = vmul.f32 %v3984, %v3758
  %v4001 = vmul.f32 %v3985, %v3773
  %v4002 = vmul.f32 %v3986, %v3788
  %v4003 = vmul.f32 %v3987, %v3803
  %v4004 = vmul.f32 %v3988, %v3818
  %v4005 = vmul.f32 %v3989, %v3833
  %v4006 = vmul.f32 %v3990, %v3848
  %v4007 = vmul.f32 %v3991, %v3863
  %v4008 = vsub.f32 0.0, %v3576
  %v4009 = vsub.f32 0.0, %v3577
  %v4010 = vsub.f32 0.0, %v3578
  %v4011 = vsub.f32 0.0, %v3579
  %v4012 = vsub.f32 0.0, %v3580
  %v4013 = vsub.f32 0.0, %v3581
  %v4014 = vsub.f32 0.0, %v3582
  %v4015 = vsub.f32 0.0, %v3583
  %v4016 = vsub.f32 0.0, %v3584
  %v4017 = vsub.f32 0.0, %v3585
  %v4018 = vsub.f32 0.0, %v3586
  %v4019 = vsub.f32 0.0, %v3587
  %v4020 = vsub.f32 0.0, %v3588
  %v4021 = vsub.f32 0.0, %v3589
  %v4022 = vsub.f32 0.0, %v3590
  %v4023 = vsub.f32 0.0, %v3591
  %v4024 = vmul.f32 %v4008, %v3576
  %v4025 = vmul.f32 %v4009, %v3577
  %v4026 = vmul.f32 %v4010, %v3578
  %v4027 = vmul.f32 %v4011, %v3579
  %v4028 = vmul.f32 %v4012, %v3580
  %v4029 = vmul.f32 %v4013, %v3581
  %v4030 = vmul.f32 %v4014, %v3582
  %v4031 = vmul.f32 %v4015, %v3583
  %v4032 = vmul.f32 %v4016, %v3584
  %v4033 = vmul.f32 %v4017, %v3585
  %v4034 = vmul.f32 %v4018, %v3586
  %v4035 = vmul.f32 %v4019, %v3587
  %v4036 = vmul.f32 %v4020, %v3588
  %v4037 = vmul.f32 %v4021, %v3589
  %v4038 = vmul.f32 %v4022, %v3590
  %v4039 = vmul.f32 %v4023, %v3591
  %v4040 = vmul.f32 %v4024, 1.442695
  %v4041 = vpow.pop %v4040
  %v4042 = vmul.f32 %v4025, 1.442695
  %v4043 = vpow.pop %v4042
  %v4044 = vmul.f32 %v4026, 1.442695
  %v4045 = vpow.pop %v4044
  %v4046 = vmul.f32 %v4027, 1.442695
  %v4047 = vpow.pop %v4046
  %v4048 = vmul.f32 %v4028, 1.442695
  %v4049 = vpow.pop %v4048
  %v4050 = vmul.f32 %v4029, 1.442695
  %v4051 = vpow.pop %v4050
  %v4052 = vmul.f32 %v4030, 1.442695
  %v4053 = vpow.pop %v4052
  %v4054 = vmul.f32 %v4031, 1.442695
  %v4055 = vpow.pop %v4054
  %v4056 = vmul.f32 %v4032, 1.442695
  %v4057 = vpow.pop %v4056
  %v4058 = vmul.f32 %v4033, 1.442695
  %v4059 = vpow.pop %v4058
  %v4060 = vmul.f32 %v4034, 1.442695
  %v4061 = vpow.pop %v4060
  %v4062 = vmul.f32 %v4035, 1.442695
  %v4063 = vpow.pop %v4062
  %v4064 = vmul.f32 %v4036, 1.442695
  %v4065 = vpow.pop %v4064
  %v4066 = vmul.f32 %v4037, 1.442695
  %v4067 = vpow.pop %v4066
  %v4068 = vmul.f32 %v4038, 1.442695
  %v4069 = vpow.pop %v4068
  %v4070 = vmul.f32 %v4039, 1.442695
  %v4071 = vpow.pop %v4070
  %v4072 = vmul.f32 %v3992, %v4041
  %v4073 = vmul.f32 %v3993, %v4043
  %v4074 = vmul.f32 %v3994, %v4045
  %v4075 = vmul.f32 %v3995, %v4047
  %v4076 = vmul.f32 %v3996, %v4049
  %v4077 = vmul.f32 %v3997, %v4051
  %v4078 = vmul.f32 %v3998, %v4053
  %v4079 = vmul.f32 %v3999, %v4055
  %v4080 = vmul.f32 %v4000, %v4057
  %v4081 = vmul.f32 %v4001, %v4059
  %v4082 = vmul.f32 %v4002, %v4061
  %v4083 = vmul.f32 %v4003, %v4063
  %v4084 = vmul.f32 %v4004, %v4065
  %v4085 = vmul.f32 %v4005, %v4067
  %v4086 = vmul.f32 %v4006, %v4069
  %v4087 = vmul.f32 %v4007, %v4071
  %v4088 = vsub.f32 1.0, %v4072
  %v4089 = vsub.f32 1.0, %v4073
  %v4090 = vsub.f32 1.0, %v4074
  %v4091 = vsub.f32 1.0, %v4075
  %v4092 = vsub.f32 1.0, %v4076
  %v4093 = vsub.f32 1.0, %v4077
  %v4094 = vsub.f32 1.0, %v4078
  %v4095 = vsub.f32 1.0, %v4079
  %v4096 = vsub.f32 1.0, %v4080
  %v4097 = vsub.f32 1.0, %v4081
  %v4098 = vsub.f32 1.0, %v4082
  %v4099 = vsub.f32 1.0, %v4083
  %v4100 = vsub.f32 1.0, %v4084
  %v4101 = vsub.f32 1.0, %v4085
  %v4102 = vsub.f32 1.0, %v4086
  %v4103 = vsub.f32 1.0, %v4087
  %vm4104 = vcmp.ge.f32.partialorder %v3560, 0.0
  %vm4105 = vcmp.ge.f32.partialorder %v3561, 0.0
  %vm4106 = vcmp.ge.f32.partialorder %v3562, 0.0
  %vm4107 = vcmp.ge.f32.partialorder %v3563, 0.0
  %vm4108 = vcmp.ge.f32.partialorder %v3564, 0.0
  %vm4109 = vcmp.ge.f32.partialorder %v3565, 0.0
  %vm4110 = vcmp.ge.f32.partialorder %v3566, 0.0
  %vm4111 = vcmp.ge.f32.partialorder %v3567, 0.0
  %vm4112 = vcmp.ge.f32.partialorder %v3568, 0.0
  %vm4113 = vcmp.ge.f32.partialorder %v3569, 0.0
  %vm4114 = vcmp.ge.f32.partialorder %v3570, 0.0
  %vm4115 = vcmp.ge.f32.partialorder %v3571, 0.0
  %vm4116 = vcmp.ge.f32.partialorder %v3572, 0.0
  %vm4117 = vcmp.ge.f32.partialorder %v3573, 0.0
  %vm4118 = vcmp.ge.f32.partialorder %v3574, 0.0
  %vm4119 = vcmp.ge.f32.partialorder %v3575, 0.0
  %v4120 = vsub.f32 0.0, %v4088
  %v4121 = vsub.f32 0.0, %v4089
  %v4122 = vsub.f32 0.0, %v4090
  %v4123 = vsub.f32 0.0, %v4091
  %v4124 = vsub.f32 0.0, %v4092
  %v4125 = vsub.f32 0.0, %v4093
  %v4126 = vsub.f32 0.0, %v4094
  %v4127 = vsub.f32 0.0, %v4095
  %v4128 = vsub.f32 0.0, %v4096
  %v4129 = vsub.f32 0.0, %v4097
  %v4130 = vsub.f32 0.0, %v4098
  %v4131 = vsub.f32 0.0, %v4099
  %v4132 = vsub.f32 0.0, %v4100
  %v4133 = vsub.f32 0.0, %v4101
  %v4134 = vsub.f32 0.0, %v4102
  %v4135 = vsub.f32 0.0, %v4103
  %v4136 = vsel %vm4104, %v4088, %v4120
  %v4137 = vsel %vm4105, %v4089, %v4121
  %v4138 = vsel %vm4106, %v4090, %v4122
  %v4139 = vsel %vm4107, %v4091, %v4123
  %v4140 = vsel %vm4108, %v4092, %v4124
  %v4141 = vsel %vm4109, %v4093, %v4125
  %v4142 = vsel %vm4110, %v4094, %v4126
  %v4143 = vsel %vm4111, %v4095, %v4127
  %v4144 = vsel %vm4112, %v4096, %v4128
  %v4145 = vsel %vm4113, %v4097, %v4129
  %v4146 = vsel %vm4114, %v4098, %v4130
  %v4147 = vsel %vm4115, %v4099, %v4131
  %v4148 = vsel %vm4116, %v4100, %v4132
  %v4149 = vsel %vm4117, %v4101, %v4133
  %v4150 = vsel %vm4118, %v4102, %v4134
  %v4151 = vsel %vm4119, %v4103, %v4135
  %v4152 = vadd.f32 %v4136, 1.0
  %v4153 = vadd.f32 %v4137, 1.0
  %v4154 = vadd.f32 %v4138, 1.0
  %v4155 = vadd.f32 %v4139, 1.0
  %v4156 = vadd.f32 %v4140, 1.0
  %v4157 = vadd.f32 %v4141, 1.0
  %v4158 = vadd.f32 %v4142, 1.0
  %v4159 = vadd.f32 %v4143, 1.0
  %v4160 = vadd.f32 %v4144, 1.0
  %v4161 = vadd.f32 %v4145, 1.0
  %v4162 = vadd.f32 %v4146, 1.0
  %v4163 = vadd.f32 %v4147, 1.0
  %v4164 = vadd.f32 %v4148, 1.0
  %v4165 = vadd.f32 %v4149, 1.0
  %v4166 = vadd.f32 %v4150, 1.0
  %v4167 = vadd.f32 %v4151, 1.0
  %v4168 = vmul.f32 %v3544, %v4152
  %v4169 = vmul.f32 %v3545, %v4153
  %v4170 = vmul.f32 %v3546, %v4154
  %v4171 = vmul.f32 %v3547, %v4155
  %v4172 = vmul.f32 %v3548, %v4156
  %v4173 = vmul.f32 %v3549, %v4157
  %v4174 = vmul.f32 %v3550, %v4158
  %v4175 = vmul.f32 %v3551, %v4159
  %v4176 = vmul.f32 %v3552, %v4160
  %v4177 = vmul.f32 %v3553, %v4161
  %v4178 = vmul.f32 %v3554, %v4162
  %v4179 = vmul.f32 %v3555, %v4163
  %v4180 = vmul.f32 %v3556, %v4164
  %v4181 = vmul.f32 %v3557, %v4165
  %v4182 = vmul.f32 %v3558, %v4166
  %v4183 = vmul.f32 %v3559, %v4167
  %v4184 = vperm.slane %v51, 4
  %vm4185 = vcmask 523264
  %v4187 = vsel %vm4185, %v4168, 0
  %v4190 = vsel %vm4185, %v4169, 0
  %v4193 = vsel %vm4185, %v4170, 0
  %v4196 = vsel %vm4185, %v4171, 0
  %v4199 = vsel %vm4185, %v4172, 0
  %v4202 = vsel %vm4185, %v4173, 0
  %v4205 = vsel %vm4185, %v4174, 0
  %v4208 = vsel %vm4185, %v4175, 0
  %v4211 = vsel %vm4185, %v4176, 0
  %v4214 = vsel %vm4185, %v4177, 0
  %v4217 = vsel %vm4185, %v4178, 0
  %v4220 = vsel %vm4185, %v4179, 0
  %v4223 = vsel %vm4185, %v4180, 0
  %v4226 = vsel %vm4185, %v4181, 0
  %v4229 = vsel %vm4185, %v4182, 0
  %v4232 = vsel %vm4185, %v4183, 0
  %4234 = vmatpush.msra.mxu0 0.0
  %4235 = vmatpush.msra.mxu0 0.0
  %4236 = vmatpush.msra.mxu0 0.0
  %4237 = vmatpush.msra.mxu0 0.0
  %4238 = vmatpush.msra.mxu0 0.0
  %4239 = vmatpush.msra.mxu0 0.0
  %4240 = vmatpush.msra.mxu0 0.0
  %4241 = vmatpush.msra.mxu0 0.0
  %4242 = vmatpush.msra.mxu0 %v50
  %4243 = vmatpush.msra.mxu0 %v49
  %4244 = vmatpush.msra.mxu0 %v48
  %4245 = vmatpush.msra.mxu0 %v47
  %4246 = vmatpush.msra.mxu0 %v46
  %4247 = vmatpush.msra.mxu0 %v45
  %4248 = vmatpush.msra.mxu0 %v44
  %4249 = vmatpush.msra.mxu0 %v43
  %4250 = vmatmul.f32.gmra.mxu0 %v4187
  %v4251 = vpop.f32.mrf.mxu0
  %v4252 = vadd.f32 %v4184, %v4251
  %4253 = vmatmul.f32.gmra.mxu0 %v4190
  %v4254 = vpop.f32.mrf.mxu0
  %v4255 = vadd.f32 %v4184, %v4254
  %4256 = vmatmul.f32.gmra.mxu0 %v4193
  %v4257 = vpop.f32.mrf.mxu0
  %v4258 = vadd.f32 %v4184, %v4257
  %4259 = vmatmul.f32.gmra.mxu0 %v4196
  %v4260 = vpop.f32.mrf.mxu0
  %v4261 = vadd.f32 %v4184, %v4260
  %4262 = vmatmul.f32.gmra.mxu0 %v4199
  %v4263 = vpop.f32.mrf.mxu0
  %v4264 = vadd.f32 %v4184, %v4263
  %4265 = vmatmul.f32.gmra.mxu0 %v4202
  %v4266 = vpop.f32.mrf.mxu0
  %v4267 = vadd.f32 %v4184, %v4266
  %4268 = vmatmul.f32.gmra.mxu0 %v4205
  %v4269 = vpop.f32.mrf.mxu0
  %v4270 = vadd.f32 %v4184, %v4269
  %4271 = vmatmul.f32.gmra.mxu0 %v4208
  %v4272 = vpop.f32.mrf.mxu0
  %v4273 = vadd.f32 %v4184, %v4272
  %4274 = vmatmul.f32.gmra.mxu0 %v4211
  %v4275 = vpop.f32.mrf.mxu0
  %v4276 = vadd.f32 %v4184, %v4275
  %4277 = vmatmul.f32.gmra.mxu0 %v4214
  %v4278 = vpop.f32.mrf.mxu0
  %v4279 = vadd.f32 %v4184, %v4278
  %4280 = vmatmul.f32.gmra.mxu0 %v4217
  %v4281 = vpop.f32.mrf.mxu0
  %v4282 = vadd.f32 %v4184, %v4281
  %4283 = vmatmul.f32.gmra.mxu0 %v4220
  %v4284 = vpop.f32.mrf.mxu0
  %v4285 = vadd.f32 %v4184, %v4284
  %4286 = vmatmul.f32.gmra.mxu0 %v4223
  %v4287 = vpop.f32.mrf.mxu0
  %v4288 = vadd.f32 %v4184, %v4287
  %4289 = vmatmul.f32.gmra.mxu0 %v4226
  %v4290 = vpop.f32.mrf.mxu0
  %v4291 = vadd.f32 %v4184, %v4290
  %4292 = vmatmul.f32.gmra.mxu0 %v4229
  %v4293 = vpop.f32.mrf.mxu0
  %v4294 = vadd.f32 %v4184, %v4293
  %4295 = vmatmul.f32.gmra.mxu0 %v4232
  %v4296 = vpop.f32.mrf.mxu0
  %v4297 = vadd.f32 %v4184, %v4296
  %4298 = vdwg.mxu0
  %v4299 = vadd.f32 %v4252, %v3395
  %v4300 = vadd.f32 %v4255, %v3396
  %v4301 = vadd.f32 %v4258, %v3397
  %v4302 = vadd.f32 %v4261, %v3398
  %v4303 = vadd.f32 %v4264, %v3399
  %v4304 = vadd.f32 %v4267, %v3400
  %v4305 = vadd.f32 %v4270, %v3401
  %v4306 = vadd.f32 %v4273, %v3402
  %v4307 = vadd.f32 %v4276, %v3403
  %v4308 = vadd.f32 %v4279, %v3404
  %v4309 = vadd.f32 %v4282, %v3405
  %v4310 = vadd.f32 %v4285, %v3406
  %v4311 = vadd.f32 %v4288, %v3407
  %v4312 = vadd.f32 %v4291, %v3408
  %v4313 = vadd.f32 %v4294, %v3409
  %v4314 = vadd.f32 %v4297, %v3410
  %v4315 = vsel %vm53, %v4299, 0.0
  %4316 = vadd.xlane.f32.xlu0 %v4315
  %v4317 = vpop.xlane.xlu0 %4316
  %v4318 = vsel %vm53, %v4300, 0.0
  %4319 = vadd.xlane.f32.xlu0 %v4318
  %v4320 = vpop.xlane.xlu0 %4319
  %v4321 = vsel %vm53, %v4301, 0.0
  %4322 = vadd.xlane.f32.xlu0 %v4321
  %v4323 = vpop.xlane.xlu0 %4322
  %v4324 = vsel %vm53, %v4302, 0.0
  %4325 = vadd.xlane.f32.xlu0 %v4324
  %v4326 = vpop.xlane.xlu0 %4325
  %v4327 = vsel %vm53, %v4303, 0.0
  %4328 = vadd.xlane.f32.xlu0 %v4327
  %v4329 = vpop.xlane.xlu0 %4328
  %v4330 = vsel %vm53, %v4304, 0.0
  %4331 = vadd.xlane.f32.xlu0 %v4330
  %v4332 = vpop.xlane.xlu0 %4331
  %v4333 = vsel %vm53, %v4305, 0.0
  %4334 = vadd.xlane.f32.xlu0 %v4333
  %v4335 = vpop.xlane.xlu0 %4334
  %v4336 = vsel %vm53, %v4306, 0.0
  %4337 = vadd.xlane.f32.xlu0 %v4336
  %v4338 = vpop.xlane.xlu0 %4337
  %v4339 = vsel %vm53, %v4307, 0.0
  %4340 = vadd.xlane.f32.xlu0 %v4339
  %v4341 = vpop.xlane.xlu0 %4340
  %v4342 = vsel %vm53, %v4308, 0.0
  %4343 = vadd.xlane.f32.xlu0 %v4342
  %v4344 = vpop.xlane.xlu0 %4343
  %v4345 = vsel %vm53, %v4309, 0.0
  %4346 = vadd.xlane.f32.xlu0 %v4345
  %v4347 = vpop.xlane.xlu0 %4346
  %v4348 = vsel %vm53, %v4310, 0.0
  %4349 = vadd.xlane.f32.xlu0 %v4348
  %v4350 = vpop.xlane.xlu0 %4349
  %v4351 = vsel %vm53, %v4311, 0.0
  %4352 = vadd.xlane.f32.xlu0 %v4351
  %v4353 = vpop.xlane.xlu0 %4352
  %v4354 = vsel %vm53, %v4312, 0.0
  %4355 = vadd.xlane.f32.xlu0 %v4354
  %v4356 = vpop.xlane.xlu0 %4355
  %v4357 = vsel %vm53, %v4313, 0.0
  %4358 = vadd.xlane.f32.xlu0 %v4357
  %v4359 = vpop.xlane.xlu0 %4358
  %v4360 = vsel %vm53, %v4314, 0.0
  %4361 = vadd.xlane.f32.xlu0 %v4360
  %v4362 = vpop.xlane.xlu0 %4361
  %v4363 = vmul.f32 %v4317, %v3072
  %v4364 = vmul.f32 %v4320, %v3072
  %v4365 = vmul.f32 %v4323, %v3072
  %v4366 = vmul.f32 %v4326, %v3072
  %v4367 = vmul.f32 %v4329, %v3072
  %v4368 = vmul.f32 %v4332, %v3072
  %v4369 = vmul.f32 %v4335, %v3072
  %v4370 = vmul.f32 %v4338, %v3072
  %v4371 = vmul.f32 %v4341, %v3072
  %v4372 = vmul.f32 %v4344, %v3072
  %v4373 = vmul.f32 %v4347, %v3072
  %v4374 = vmul.f32 %v4350, %v3072
  %v4375 = vmul.f32 %v4353, %v3072
  %v4376 = vmul.f32 %v4356, %v3072
  %v4377 = vmul.f32 %v4359, %v3072
  %v4378 = vmul.f32 %v4362, %v3072
  %v4379 = vsub.f32 %v4299, %v4363
  %v4380 = vsub.f32 %v4300, %v4364
  %v4381 = vsub.f32 %v4301, %v4365
  %v4382 = vsub.f32 %v4302, %v4366
  %v4383 = vsub.f32 %v4303, %v4367
  %v4384 = vsub.f32 %v4304, %v4368
  %v4385 = vsub.f32 %v4305, %v4369
  %v4386 = vsub.f32 %v4306, %v4370
  %v4387 = vsub.f32 %v4307, %v4371
  %v4388 = vsub.f32 %v4308, %v4372
  %v4389 = vsub.f32 %v4309, %v4373
  %v4390 = vsub.f32 %v4310, %v4374
  %v4391 = vsub.f32 %v4311, %v4375
  %v4392 = vsub.f32 %v4312, %v4376
  %v4393 = vsub.f32 %v4313, %v4377
  %v4394 = vsub.f32 %v4314, %v4378
  %v4395 = vmul.f32 %v4379, %v4379
  %v4396 = vmul.f32 %v4380, %v4380
  %v4397 = vmul.f32 %v4381, %v4381
  %v4398 = vmul.f32 %v4382, %v4382
  %v4399 = vmul.f32 %v4383, %v4383
  %v4400 = vmul.f32 %v4384, %v4384
  %v4401 = vmul.f32 %v4385, %v4385
  %v4402 = vmul.f32 %v4386, %v4386
  %v4403 = vmul.f32 %v4387, %v4387
  %v4404 = vmul.f32 %v4388, %v4388
  %v4405 = vmul.f32 %v4389, %v4389
  %v4406 = vmul.f32 %v4390, %v4390
  %v4407 = vmul.f32 %v4391, %v4391
  %v4408 = vmul.f32 %v4392, %v4392
  %v4409 = vmul.f32 %v4393, %v4393
  %v4410 = vmul.f32 %v4394, %v4394
  %v4411 = vsel %vm53, %v4395, 0.0
  %4412 = vadd.xlane.f32.xlu0 %v4411
  %v4413 = vpop.xlane.xlu0 %4412
  %v4414 = vsel %vm53, %v4396, 0.0
  %4415 = vadd.xlane.f32.xlu0 %v4414
  %v4416 = vpop.xlane.xlu0 %4415
  %v4417 = vsel %vm53, %v4397, 0.0
  %4418 = vadd.xlane.f32.xlu0 %v4417
  %v4419 = vpop.xlane.xlu0 %4418
  %v4420 = vsel %vm53, %v4398, 0.0
  %4421 = vadd.xlane.f32.xlu0 %v4420
  %v4422 = vpop.xlane.xlu0 %4421
  %v4423 = vsel %vm53, %v4399, 0.0
  %4424 = vadd.xlane.f32.xlu0 %v4423
  %v4425 = vpop.xlane.xlu0 %4424
  %v4426 = vsel %vm53, %v4400, 0.0
  %4427 = vadd.xlane.f32.xlu0 %v4426
  %v4428 = vpop.xlane.xlu0 %4427
  %v4429 = vsel %vm53, %v4401, 0.0
  %4430 = vadd.xlane.f32.xlu0 %v4429
  %v4431 = vpop.xlane.xlu0 %4430
  %v4432 = vsel %vm53, %v4402, 0.0
  %4433 = vadd.xlane.f32.xlu0 %v4432
  %v4434 = vpop.xlane.xlu0 %4433
  %v4435 = vsel %vm53, %v4403, 0.0
  %4436 = vadd.xlane.f32.xlu0 %v4435
  %v4437 = vpop.xlane.xlu0 %4436
  %v4438 = vsel %vm53, %v4404, 0.0
  %4439 = vadd.xlane.f32.xlu0 %v4438
  %v4440 = vpop.xlane.xlu0 %4439
  %v4441 = vsel %vm53, %v4405, 0.0
  %4442 = vadd.xlane.f32.xlu0 %v4441
  %v4443 = vpop.xlane.xlu0 %4442
  %v4444 = vsel %vm53, %v4406, 0.0
  %4445 = vadd.xlane.f32.xlu0 %v4444
  %v4446 = vpop.xlane.xlu0 %4445
  %v4447 = vsel %vm53, %v4407, 0.0
  %4448 = vadd.xlane.f32.xlu0 %v4447
  %v4449 = vpop.xlane.xlu0 %4448
  %v4450 = vsel %vm53, %v4408, 0.0
  %4451 = vadd.xlane.f32.xlu0 %v4450
  %v4452 = vpop.xlane.xlu0 %4451
  %v4453 = vsel %vm53, %v4409, 0.0
  %4454 = vadd.xlane.f32.xlu0 %v4453
  %v4455 = vpop.xlane.xlu0 %4454
  %v4456 = vsel %vm53, %v4410, 0.0
  %4457 = vadd.xlane.f32.xlu0 %v4456
  %v4458 = vpop.xlane.xlu0 %4457
  %v4459 = vmul.f32 %v4413, %v3072
  %v4460 = vmul.f32 %v4416, %v3072
  %v4461 = vmul.f32 %v4419, %v3072
  %v4462 = vmul.f32 %v4422, %v3072
  %v4463 = vmul.f32 %v4425, %v3072
  %v4464 = vmul.f32 %v4428, %v3072
  %v4465 = vmul.f32 %v4431, %v3072
  %v4466 = vmul.f32 %v4434, %v3072
  %v4467 = vmul.f32 %v4437, %v3072
  %v4468 = vmul.f32 %v4440, %v3072
  %v4469 = vmul.f32 %v4443, %v3072
  %v4470 = vmul.f32 %v4446, %v3072
  %v4471 = vmul.f32 %v4449, %v3072
  %v4472 = vmul.f32 %v4452, %v3072
  %v4473 = vmul.f32 %v4455, %v3072
  %v4474 = vmul.f32 %v4458, %v3072
  %v4475 = vadd.f32 %v4459, 1e-12
  %v4476 = vadd.f32 %v4460, 1e-12
  %v4477 = vadd.f32 %v4461, 1e-12
  %v4478 = vadd.f32 %v4462, 1e-12
  %v4479 = vadd.f32 %v4463, 1e-12
  %v4480 = vadd.f32 %v4464, 1e-12
  %v4481 = vadd.f32 %v4465, 1e-12
  %v4482 = vadd.f32 %v4466, 1e-12
  %v4483 = vadd.f32 %v4467, 1e-12
  %v4484 = vadd.f32 %v4468, 1e-12
  %v4485 = vadd.f32 %v4469, 1e-12
  %v4486 = vadd.f32 %v4470, 1e-12
  %v4487 = vadd.f32 %v4471, 1e-12
  %v4488 = vadd.f32 %v4472, 1e-12
  %v4489 = vadd.f32 %v4473, 1e-12
  %v4490 = vadd.f32 %v4474, 1e-12
  %v4491 = vrsqrt.pop %v4475
  %v4492 = vmul.f32 %v4491, %v4475
  %v4493 = vmul.f32 %v4492, %v4491
  %v4494 = vmul.f32 0.5, %v4493
  %v4495 = vsub.f32 1.5, %v4494
  %v4496 = vmul.f32 %v4491, %v4495
  %vm4497 = vweird.f32 %v4475
  %vm4498 = vweird.f32 %v4491
  %vm4499 = vmor %vm4497, %vm4498
  %v4500 = vsel %vm4499, %v4491, %v4496
  %v4501 = vrsqrt.pop %v4476
  %v4502 = vmul.f32 %v4501, %v4476
  %v4503 = vmul.f32 %v4502, %v4501
  %v4504 = vmul.f32 0.5, %v4503
  %v4505 = vsub.f32 1.5, %v4504
  %v4506 = vmul.f32 %v4501, %v4505
  %vm4507 = vweird.f32 %v4476
  %vm4508 = vweird.f32 %v4501
  %vm4509 = vmor %vm4507, %vm4508
  %v4510 = vsel %vm4509, %v4501, %v4506
  %v4511 = vrsqrt.pop %v4477
  %v4512 = vmul.f32 %v4511, %v4477
  %v4513 = vmul.f32 %v4512, %v4511
  %v4514 = vmul.f32 0.5, %v4513
  %v4515 = vsub.f32 1.5, %v4514
  %v4516 = vmul.f32 %v4511, %v4515
  %vm4517 = vweird.f32 %v4477
  %vm4518 = vweird.f32 %v4511
  %vm4519 = vmor %vm4517, %vm4518
  %v4520 = vsel %vm4519, %v4511, %v4516
  %v4521 = vrsqrt.pop %v4478
  %v4522 = vmul.f32 %v4521, %v4478
  %v4523 = vmul.f32 %v4522, %v4521
  %v4524 = vmul.f32 0.5, %v4523
  %v4525 = vsub.f32 1.5, %v4524
  %v4526 = vmul.f32 %v4521, %v4525
  %vm4527 = vweird.f32 %v4478
  %vm4528 = vweird.f32 %v4521
  %vm4529 = vmor %vm4527, %vm4528
  %v4530 = vsel %vm4529, %v4521, %v4526
  %v4531 = vrsqrt.pop %v4479
  %v4532 = vmul.f32 %v4531, %v4479
  %v4533 = vmul.f32 %v4532, %v4531
  %v4534 = vmul.f32 0.5, %v4533
  %v4535 = vsub.f32 1.5, %v4534
  %v4536 = vmul.f32 %v4531, %v4535
  %vm4537 = vweird.f32 %v4479
  %vm4538 = vweird.f32 %v4531
  %vm4539 = vmor %vm4537, %vm4538
  %v4540 = vsel %vm4539, %v4531, %v4536
  %v4541 = vrsqrt.pop %v4480
  %v4542 = vmul.f32 %v4541, %v4480
  %v4543 = vmul.f32 %v4542, %v4541
  %v4544 = vmul.f32 0.5, %v4543
  %v4545 = vsub.f32 1.5, %v4544
  %v4546 = vmul.f32 %v4541, %v4545
  %vm4547 = vweird.f32 %v4480
  %vm4548 = vweird.f32 %v4541
  %vm4549 = vmor %vm4547, %vm4548
  %v4550 = vsel %vm4549, %v4541, %v4546
  %v4551 = vrsqrt.pop %v4481
  %v4552 = vmul.f32 %v4551, %v4481
  %v4553 = vmul.f32 %v4552, %v4551
  %v4554 = vmul.f32 0.5, %v4553
  %v4555 = vsub.f32 1.5, %v4554
  %v4556 = vmul.f32 %v4551, %v4555
  %vm4557 = vweird.f32 %v4481
  %vm4558 = vweird.f32 %v4551
  %vm4559 = vmor %vm4557, %vm4558
  %v4560 = vsel %vm4559, %v4551, %v4556
  %v4561 = vrsqrt.pop %v4482
  %v4562 = vmul.f32 %v4561, %v4482
  %v4563 = vmul.f32 %v4562, %v4561
  %v4564 = vmul.f32 0.5, %v4563
  %v4565 = vsub.f32 1.5, %v4564
  %v4566 = vmul.f32 %v4561, %v4565
  %vm4567 = vweird.f32 %v4482
  %vm4568 = vweird.f32 %v4561
  %vm4569 = vmor %vm4567, %vm4568
  %v4570 = vsel %vm4569, %v4561, %v4566
  %v4571 = vrsqrt.pop %v4483
  %v4572 = vmul.f32 %v4571, %v4483
  %v4573 = vmul.f32 %v4572, %v4571
  %v4574 = vmul.f32 0.5, %v4573
  %v4575 = vsub.f32 1.5, %v4574
  %v4576 = vmul.f32 %v4571, %v4575
  %vm4577 = vweird.f32 %v4483
  %vm4578 = vweird.f32 %v4571
  %vm4579 = vmor %vm4577, %vm4578
  %v4580 = vsel %vm4579, %v4571, %v4576
  %v4581 = vrsqrt.pop %v4484
  %v4582 = vmul.f32 %v4581, %v4484
  %v4583 = vmul.f32 %v4582, %v4581
  %v4584 = vmul.f32 0.5, %v4583
  %v4585 = vsub.f32 1.5, %v4584
  %v4586 = vmul.f32 %v4581, %v4585
  %vm4587 = vweird.f32 %v4484
  %vm4588 = vweird.f32 %v4581
  %vm4589 = vmor %vm4587, %vm4588
  %v4590 = vsel %vm4589, %v4581, %v4586
  %v4591 = vrsqrt.pop %v4485
  %v4592 = vmul.f32 %v4591, %v4485
  %v4593 = vmul.f32 %v4592, %v4591
  %v4594 = vmul.f32 0.5, %v4593
  %v4595 = vsub.f32 1.5, %v4594
  %v4596 = vmul.f32 %v4591, %v4595
  %vm4597 = vweird.f32 %v4485
  %vm4598 = vweird.f32 %v4591
  %vm4599 = vmor %vm4597, %vm4598
  %v4600 = vsel %vm4599, %v4591, %v4596
  %v4601 = vrsqrt.pop %v4486
  %v4602 = vmul.f32 %v4601, %v4486
  %v4603 = vmul.f32 %v4602, %v4601
  %v4604 = vmul.f32 0.5, %v4603
  %v4605 = vsub.f32 1.5, %v4604
  %v4606 = vmul.f32 %v4601, %v4605
  %vm4607 = vweird.f32 %v4486
  %vm4608 = vweird.f32 %v4601
  %vm4609 = vmor %vm4607, %vm4608
  %v4610 = vsel %vm4609, %v4601, %v4606
  %v4611 = vrsqrt.pop %v4487
  %v4612 = vmul.f32 %v4611, %v4487
  %v4613 = vmul.f32 %v4612, %v4611
  %v4614 = vmul.f32 0.5, %v4613
  %v4615 = vsub.f32 1.5, %v4614
  %v4616 = vmul.f32 %v4611, %v4615
  %vm4617 = vweird.f32 %v4487
  %vm4618 = vweird.f32 %v4611
  %vm4619 = vmor %vm4617, %vm4618
  %v4620 = vsel %vm4619, %v4611, %v4616
  %v4621 = vrsqrt.pop %v4488
  %v4622 = vmul.f32 %v4621, %v4488
  %v4623 = vmul.f32 %v4622, %v4621
  %v4624 = vmul.f32 0.5, %v4623
  %v4625 = vsub.f32 1.5, %v4624
  %v4626 = vmul.f32 %v4621, %v4625
  %vm4627 = vweird.f32 %v4488
  %vm4628 = vweird.f32 %v4621
  %vm4629 = vmor %vm4627, %vm4628
  %v4630 = vsel %vm4629, %v4621, %v4626
  %v4631 = vrsqrt.pop %v4489
  %v4632 = vmul.f32 %v4631, %v4489
  %v4633 = vmul.f32 %v4632, %v4631
  %v4634 = vmul.f32 0.5, %v4633
  %v4635 = vsub.f32 1.5, %v4634
  %v4636 = vmul.f32 %v4631, %v4635
  %vm4637 = vweird.f32 %v4489
  %vm4638 = vweird.f32 %v4631
  %vm4639 = vmor %vm4637, %vm4638
  %v4640 = vsel %vm4639, %v4631, %v4636
  %v4641 = vrsqrt.pop %v4490
  %v4642 = vmul.f32 %v4641, %v4490
  %v4643 = vmul.f32 %v4642, %v4641
  %v4644 = vmul.f32 0.5, %v4643
  %v4645 = vsub.f32 1.5, %v4644
  %v4646 = vmul.f32 %v4641, %v4645
  %vm4647 = vweird.f32 %v4490
  %vm4648 = vweird.f32 %v4641
  %vm4649 = vmor %vm4647, %vm4648
  %v4650 = vsel %vm4649, %v4641, %v4646
  %v4651 = vmul.f32 %v4379, %v4500
  %v4652 = vmul.f32 %v4380, %v4510
  %v4653 = vmul.f32 %v4381, %v4520
  %v4654 = vmul.f32 %v4382, %v4530
  %v4655 = vmul.f32 %v4383, %v4540
  %v4656 = vmul.f32 %v4384, %v4550
  %v4657 = vmul.f32 %v4385, %v4560
  %v4658 = vmul.f32 %v4386, %v4570
  %v4659 = vmul.f32 %v4387, %v4580
  %v4660 = vmul.f32 %v4388, %v4590
  %v4661 = vmul.f32 %v4389, %v4600
  %v4662 = vmul.f32 %v4390, %v4610
  %v4663 = vmul.f32 %v4391, %v4620
  %v4664 = vmul.f32 %v4392, %v4630
  %v4665 = vmul.f32 %v4393, %v4640
  %v4666 = vmul.f32 %v4394, %v4650
  %v4667 = vperm.slane %v51, 5
  %v4668 = vmul.f32 %v4651, %v4667
  %v4669 = vmul.f32 %v4652, %v4667
  %v4670 = vmul.f32 %v4653, %v4667
  %v4671 = vmul.f32 %v4654, %v4667
  %v4672 = vmul.f32 %v4655, %v4667
  %v4673 = vmul.f32 %v4656, %v4667
  %v4674 = vmul.f32 %v4657, %v4667
  %v4675 = vmul.f32 %v4658, %v4667
  %v4676 = vmul.f32 %v4659, %v4667
  %v4677 = vmul.f32 %v4660, %v4667
  %v4678 = vmul.f32 %v4661, %v4667
  %v4679 = vmul.f32 %v4662, %v4667
  %v4680 = vmul.f32 %v4663, %v4667
  %v4681 = vmul.f32 %v4664, %v4667
  %v4682 = vmul.f32 %v4665, %v4667
  %v4683 = vmul.f32 %v4666, %v4667
  %v4684 = vperm.slane %v51, 6
  %v4685 = vadd.f32 %v4668, %v4684
  %v4686 = vadd.f32 %v4669, %v4684
  %v4687 = vadd.f32 %v4670, %v4684
  %v4688 = vadd.f32 %v4671, %v4684
  %v4689 = vadd.f32 %v4672, %v4684
  %v4690 = vadd.f32 %v4673, %v4684
  %v4691 = vadd.f32 %v4674, %v4684
  %v4692 = vadd.f32 %v4675, %v4684
  %v4693 = vadd.f32 %v4676, %v4684
  %v4694 = vadd.f32 %v4677, %v4684
  %v4695 = vadd.f32 %v4678, %v4684
  %v4696 = vadd.f32 %v4679, %v4684
  %v4697 = vadd.f32 %v4680, %v4684
  %v4698 = vadd.f32 %v4681, %v4684
  %v4699 = vadd.f32 %v4682, %v4684
  %v4700 = vadd.f32 %v4683, %v4684
  %4701 = vst.msk [vmem:[%s4] sm:$0xff] %vm53, %v4685
  %4702 = vst.msk [vmem:[%s4 + $0x8] sm:$0xff] %vm53, %v4686
  %4703 = vst.msk [vmem:[%s4 + $0x10] sm:$0xff] %vm53, %v4687
  %4704 = vst.msk [vmem:[%s4 + $0x18] sm:$0xff] %vm53, %v4688
  %4705 = vst.msk [vmem:[%s4 + $0x20] sm:$0xff] %vm53, %v4689
  %4706 = vst.msk [vmem:[%s4 + $0x28] sm:$0xff] %vm53, %v4690
  %4707 = vst.msk [vmem:[%s4 + $0x30] sm:$0xff] %vm53, %v4691
  %4708 = vst.msk [vmem:[%s4 + $0x38] sm:$0xff] %vm53, %v4692
  %4709 = vst.msk [vmem:[%s4 + $0x40] sm:$0xff] %vm53, %v4693
  %4710 = vst.msk [vmem:[%s4 + $0x48] sm:$0xff] %vm53, %v4694
  %4711 = vst.msk [vmem:[%s4 + $0x50] sm:$0xff] %vm53, %v4695
  %4712 = vst.msk [vmem:[%s4 + $0x58] sm:$0xff] %vm53, %v4696
  %4713 = vst.msk [vmem:[%s4 + $0x60] sm:$0xff] %vm53, %v4697
  %4714 = vst.msk [vmem:[%s4 + $0x68] sm:$0xff] %vm53, %v4698
  %4715 = vst.msk [vmem:[%s4 + $0x70] sm:$0xff] %vm53, %v4699
  %4716 = vst.msk [vmem:[%s4 + $0x78] sm:$0xff] %vm53, %v4700
  // Predicated region
  $region18: #{tpu_custom_call.1} parent=0 // pred_check
    _
  $region19: #{tpu_custom_call.1} parent=0 // pred_check_branch
    %4718 = sbr.rel (0) target = $region21
  $region20: #{tpu_custom_call.1} parent=0 // pred_region
    _
  $region21: #{tpu_custom_call.1} parent=0 // pred_fallthru
    _
  // Predicated region
  $region22: #{tpu_custom_call.1} parent=0 // pred_check
    _
  $region23: #{tpu_custom_call.1} parent=0 // pred_check_branch
    %4720 = sbr.rel (0) target = $region25
  $region24: #{tpu_custom_call.1} parent=0 // pred_region
    _
  $region25: #{tpu_custom_call.1} parent=0 // pred_fallthru
    _

</llo_original>
